<compile_context>
chip_gen: v5e
topology: v5e:2x2
jax: 0.10.0
libtpu: 0.0.40
codegen_flags: <defaults>
</compile_context>

<pallas_src>
import numpy as np
import jax
import jax.numpy as jnp
from jax.experimental import pallas as pl
from jax.experimental.pallas import tpu as pltpu

_EPS = 1e-5


def _round_up(v, m):
    return (v + m - 1) // m * m


def _aux_head_kernel(x_ref, pool_ref, w1_ref, scale_ref, shift_ref, w2_ref,
                     wl_ref, b_ref, out_ref):
    """Fused aux-head forward on one batch tile.

    x_ref:     (TN, S, C)    f32, S = H*W   (NHWC flattened spatially)
    pool_ref:  (4, S)        f32, avg-pool matrix (1/25 entries), pos = oh*2+ow
    w1_ref:    (C, 128)      bf16, 1x1 conv weight (transposed)
    scale_ref: (1, 128)      f32, folded BN scale  = gamma / sqrt(var+eps)
    shift_ref: (1, 128)      f32, folded BN shift  = beta - mean*scale
    w2_ref:    (512, 768)    bf16, 2x2 conv weight, row = (kh*2+kw)*128 + ic
    wl_ref:    (768, PC)     bf16, classifier weight, classes zero-padded to PC
    b_ref:     (1, PC)       f32, classifier bias (zero-padded)
    out_ref:   (TN, PC)      f32 logits (padded classes)
    """
    tn, s, c = x_ref.shape
    k1 = w1_ref.shape[1]            # 128

    # ReLU (f32, VPU).
    x = jnp.maximum(x_ref[...], 0.0)

    # 1x1 conv first (commutes with avg-pool) -> lane-dense 128 channels.
    z = jnp.dot(x.reshape(tn * s, c).astype(jnp.bfloat16), w1_ref[...],
                preferred_element_type=jnp.float32)            # (TN*S, 128)
    z3 = z.reshape(tn, s, k1)

    # AvgPool2d(5, stride=2) as a small batched matmul: (TN,4,S) x (TN,S,128).
    pool_b = jnp.broadcast_to(pool_ref[...], (tn, 4, s))
    pooled = jnp.einsum("nps,nsk->npk", pool_b, z3,
                        preferred_element_type=jnp.float32)    # (TN, 4, 128)

    # Folded BatchNorm + ReLU (f32, lane-dense over the 128 channels).
    y1 = jnp.maximum(pooled * scale_ref[...] + shift_ref[...], 0.0)

    # 2x2 VALID conv over the 2x2 pooled map == one (TN,512)@(512,768) matmul.
    y2 = jnp.dot(y1.reshape(tn, 4 * k1).astype(jnp.bfloat16), w2_ref[...],
                 preferred_element_type=jnp.float32)           # (TN, 768)
    y2 = jnp.maximum(y2, 0.0)

    # Classifier (padded, lane-dense output).
    logits = jnp.dot(y2.astype(jnp.bfloat16), wl_ref[...],
                     preferred_element_type=jnp.float32)
    out_ref[...] = logits + b_ref[...]


def auxiliary_head_imagenet(x_nchw, params):
    """Wrapper: NCHW input, PyTorch-layout params -> (N, num_classes) logits."""
    n, c, h, w = x_nchw.shape
    ph = (h - 5) // 2 + 1
    pw = (w - 5) // 2 + 1
    assert ph == 2 and pw == 2, (
        "Linear(768) in the classifier requires a 2x2 pooled map "
        "(use 7x7 or 8x8 spatial input)")

    f32, bf16 = jnp.float32, jnp.bfloat16
    s = h * w
    c1 = params["conv1_w"].shape[0]        # 128
    c2 = params["conv2_w"].shape[0]        # 768
    num_classes = params["fc_w"].shape[0]

    # ---- activations: NCHW -> (N, H*W, C), batch padded to a sublane multiple
    x = jnp.transpose(x_nchw, (0, 2, 3, 1)).astype(f32).reshape(n, s, c)
    if n <= 128:
        tile_n = _round_up(n, 8)
        padded_n = tile_n
    else:
        tile_n = 128
        padded_n = _round_up(n, 128)
    if padded_n != n:
        x = jnp.pad(x, ((0, padded_n - n), (0, 0), (0, 0)))

    # ---- 5x5 / stride-2 average pool as a (4, H*W) matrix, pos = oh*2+ow
    pool_np = np.zeros((4, s), np.float32)
    for oh in range(2):
        for ow in range(2):
            p = oh * 2 + ow
            for r in range(oh * 2, oh * 2 + 5):
                for col in range(ow * 2, ow * 2 + 5):
                    pool_np[p, r * w + col] = 1.0 / 25.0
    pool = jnp.asarray(pool_np)

    # ---- weights: bf16 MXU operands, BN folded to f32 scale/shift
    # 1x1 conv weight: torch (128, C, 1, 1) -> (C, 128)
    w1 = jnp.transpose(params["conv1_w"][:, :, 0, 0], (1, 0)).astype(bf16)
    inv_std = 1.0 / jnp.sqrt(params["bn_var"].astype(f32) + _EPS)
    scale = (params["bn_gamma"] * inv_std).astype(f32).reshape(1, c1)
    shift = (params["bn_beta"] - params["bn_mean"] * params["bn_gamma"] * inv_std
             ).astype(f32).reshape(1, c1)
    # 2x2 conv weight: torch (768, 128, 2, 2) -> (kh, kw, ic, oc) -> (512, 768),
    # row index = (kh*2+kw)*128 + ic, matching y1.reshape(TN, 4*128).
    w2 = jnp.transpose(params["conv2_w"], (2, 3, 1, 0)).reshape(4 * c1, c2).astype(bf16)
    # Classifier: (num_classes, 768) -> (768, PC) with classes zero-padded to 128
    pc = _round_up(max(num_classes, 128), 128)
    wl = jnp.zeros((c2, pc), f32).at[:, :num_classes].set(
        jnp.transpose(params["fc_w"], (1, 0))).astype(bf16)
    b = jnp.zeros((1, pc), f32).at[:, :num_classes].set(
        params["fc_b"].reshape(1, -1))

    resident = lambda i: (0, 0)
    out = pl.pallas_call(
        _aux_head_kernel,
        out_shape=jax.ShapeDtypeStruct((padded_n, pc), f32),
        grid=(padded_n // tile_n,),
        in_specs=[
            pl.BlockSpec((tile_n, s, c), lambda i: (i, 0, 0)),   # x, tiled on N
            pl.BlockSpec((4, s), resident),                      # pooling matrix
            pl.BlockSpec((c, c1), resident),                     # w1
            pl.BlockSpec((1, c1), resident),                     # BN scale
            pl.BlockSpec((1, c1), resident),                     # BN shift
            pl.BlockSpec((4 * c1, c2), resident),                # w2
            pl.BlockSpec((c2, pc), resident),                    # classifier w
            pl.BlockSpec((1, pc), resident),                     # classifier b
        ],
        out_specs=pl.BlockSpec((tile_n, pc), lambda i: (i, 0)),
        compiler_params=pltpu.CompilerParams(
            dimension_semantics=("parallel",)),
    )(x, pool, w1, scale, shift, w2, wl, b)

    return out[:n, :num_classes]


def _reference(x_nchw, params):
    """Pure-JAX reference (NCHW, mirrors the PyTorch module in eval mode)."""
    x = jnp.maximum(x_nchw, 0.0)
    x = jax.lax.reduce_window(x, 0.0, jax.lax.add,
                              (1, 1, 5, 5), (1, 1, 2, 2), "VALID") / 25.0
    x = jnp.einsum("nchw,oc->nohw", x, params["conv1_w"][:, :, 0, 0])
    inv_std = 1.0 / jnp.sqrt(params["bn_var"] + _EPS)
    scale = params["bn_gamma"] * inv_std
    shift = params["bn_beta"] - params["bn_mean"] * params["bn_gamma"] * inv_std
    x = jnp.maximum(x * scale[None, :, None, None] + shift[None, :, None, None], 0.0)
    x = jax.lax.conv_general_dilated(x, params["conv2_w"], (1, 1), "VALID",
                                     dimension_numbers=("NCHW", "OIHW", "NCHW"))
    x = jnp.maximum(x, 0.0)
    x = x.reshape(x.shape[0], -1)
    return x @ params["fc_w"].T + params["fc_b"]


if __name__ == "__main__":
    # TODO(synk): BatchNorm2d is implemented in inference mode (running stats);
    # training-mode batch statistics are not reproduced here.
    N, C, H, W = 2, 4, 7, 7
    num_classes = 10

    key = jax.random.PRNGKey(0)
    ks = jax.random.split(key, 9)
    x = jax.random.normal(ks[0], (N, C, H, W), jnp.float32)
    params = {
        "conv1_w": jax.random.normal(ks[1], (128, C, 1, 1), jnp.float32) * 0.1,
        "bn_gamma": jax.random.uniform(ks[2], (128,), jnp.float32, 0.5, 1.5),
        "bn_beta": jax.random.normal(ks[3], (128,), jnp.float32) * 0.1,
        "bn_mean": jax.random.normal(ks[4], (128,), jnp.float32) * 0.1,
        "bn_var": jax.random.uniform(ks[5], (128,), jnp.float32, 0.5, 1.5),
        "conv2_w": jax.random.normal(ks[6], (768, 128, 2, 2), jnp.float32) * 0.05,
        "fc_w": jax.random.normal(ks[7], (num_classes, 768), jnp.float32) * 0.05,
        "fc_b": jax.random.normal(ks[8], (num_classes,), jnp.float32) * 0.1,
    }

    out = jax.block_until_ready(auxiliary_head_imagenet(x, params))
    ref = jax.block_until_ready(_reference(x, params))

    assert out.shape == (N, num_classes), out.shape
    # bf16 MXU operands with f32 accumulation -> slightly looser tolerance.
    assert jnp.allclose(out, ref, rtol=2e-2, atol=2e-2), (
        f"max abs diff {jnp.max(jnp.abs(out - ref))}")

    print("KERNEL_OK")
</pallas_src>

<mosaic_0001>
module attributes {stable_mosaic.version = 11 : i64} {
  func.func @_aux_head_kernel(%arg0: i32, %arg1: memref<8x49x4xf32, #tpu.memory_space<vmem>>, %arg2: memref<4x49xf32, #tpu.memory_space<vmem>>, %arg3: memref<4x128xbf16, #tpu.memory_space<vmem>>, %arg4: memref<1x128xf32, #tpu.memory_space<vmem>>, %arg5: memref<1x128xf32, #tpu.memory_space<vmem>>, %arg6: memref<512x768xbf16, #tpu.memory_space<vmem>>, %arg7: memref<768x128xbf16, #tpu.memory_space<vmem>>, %arg8: memref<1x128xf32, #tpu.memory_space<vmem>>, %arg9: memref<8x128xf32, #tpu.memory_space<vmem>>) attributes {dimension_semantics = [#tpu.dimension_semantics<parallel>], iteration_bounds = array<i64: 1>, scalar_prefetch = 0 : i64, scratch_operands = 0 : i64, tpu.core_type = #tpu.core_type<tc>, window_params = [{transform_indices = @transform_0, window_bounds = array<i64: 8, 49, 4>}, {pipeline_mode = #tpu.pipeline_mode<synchronous>, transform_indices = @transform_1, window_bounds = array<i64: 4, 49>}, {pipeline_mode = #tpu.pipeline_mode<synchronous>, transform_indices = @transform_2, window_bounds = array<i64: 4, 128>}, {pipeline_mode = #tpu.pipeline_mode<synchronous>, transform_indices = @transform_3, window_bounds = array<i64: 1, 128>}, {pipeline_mode = #tpu.pipeline_mode<synchronous>, transform_indices = @transform_4, window_bounds = array<i64: 1, 128>}, {pipeline_mode = #tpu.pipeline_mode<synchronous>, transform_indices = @transform_5, window_bounds = array<i64: 512, 768>}, {pipeline_mode = #tpu.pipeline_mode<synchronous>, transform_indices = @transform_6, window_bounds = array<i64: 768, 128>}, {pipeline_mode = #tpu.pipeline_mode<synchronous>, transform_indices = @transform_7, window_bounds = array<i64: 1, 128>}, {transform_indices = @transform_8, window_bounds = array<i64: 8, 128>}]} {
    %c0 = arith.constant 0 : index
    %c0_0 = arith.constant 0 : index
    %c0_1 = arith.constant 0 : index
    %0 = vector.load %arg1[%c0, %c0_0, %c0_1] : memref<8x49x4xf32, #tpu.memory_space<vmem>>, vector<8x49x4xf32>
    %cst = arith.constant 0.000000e+00 : f32
    %1 = vector.broadcast %cst : f32 to vector<8x49x4xf32>
    %2 = arith.maximumf %0, %1 : vector<8x49x4xf32>
    %3 = vector.shape_cast %2 : vector<8x49x4xf32> to vector<392x4xf32>
    %4 = arith.truncf %3 : vector<392x4xf32> to vector<392x4xbf16>
    %c0_2 = arith.constant 0 : index
    %c0_3 = arith.constant 0 : index
    %5 = vector.load %arg3[%c0_2, %c0_3] : memref<4x128xbf16, #tpu.memory_space<vmem>>, vector<4x128xbf16>
    %cst_4 = arith.constant dense<0.000000e+00> : vector<392x128xf32>
    %6 = tpu.matmul %4, %5, %cst_4 {dimension_numbers = #tpu.dot_dimension_numbers<[1], [0], [0], [1], [0, 0, 1, 1], [], []>} : vector<392x4xbf16>, vector<4x128xbf16>, vector<392x128xf32> -> vector<392x128xf32>
    %7 = vector.shape_cast %6 : vector<392x128xf32> to vector<8x49x128xf32>
    %c0_5 = arith.constant 0 : index
    %c0_6 = arith.constant 0 : index
    %8 = vector.load %arg2[%c0_5, %c0_6] : memref<4x49xf32, #tpu.memory_space<vmem>>, vector<4x49xf32>
    %9 = vector.shape_cast %8 : vector<4x49xf32> to vector<1x4x49xf32>
    %10 = vector.broadcast %9 : vector<1x4x49xf32> to vector<8x4x49xf32>
    "tpu.trace_start"() <{level = 10 : i32, message = "nps,nsk->npk"}> : () -> ()
    %cst_7 = arith.constant dense<0.000000e+00> : vector<8x4x128xf32>
    %11 = tpu.matmul %10, %7, %cst_7 {dimension_numbers = #tpu.dot_dimension_numbers<[2], [1], [1], [2], [0, 0, 0, 1, 1, 2], [0], [0]>} : vector<8x4x49xf32>, vector<8x49x128xf32>, vector<8x4x128xf32> -> vector<8x4x128xf32>
    "tpu.trace_stop"() : () -> ()
    %c0_8 = arith.constant 0 : index
    %c0_9 = arith.constant 0 : index
    %12 = vector.load %arg4[%c0_8, %c0_9] : memref<1x128xf32, #tpu.memory_space<vmem>>, vector<1x128xf32>
    %13 = vector.shape_cast %12 : vector<1x128xf32> to vector<1x1x128xf32>
    %14 = vector.broadcast %13 : vector<1x1x128xf32> to vector<8x4x128xf32>
    %15 = arith.mulf %11, %14 : vector<8x4x128xf32>
    %c0_10 = arith.constant 0 : index
    %c0_11 = arith.constant 0 : index
    %16 = vector.load %arg5[%c0_10, %c0_11] : memref<1x128xf32, #tpu.memory_space<vmem>>, vector<1x128xf32>
    %17 = vector.shape_cast %16 : vector<1x128xf32> to vector<1x1x128xf32>
    %18 = vector.broadcast %17 : vector<1x1x128xf32> to vector<8x4x128xf32>
    %19 = arith.addf %15, %18 : vector<8x4x128xf32>
    %cst_12 = arith.constant 0.000000e+00 : f32
    %20 = vector.broadcast %cst_12 : f32 to vector<8x4x128xf32>
    %21 = arith.maximumf %19, %20 : vector<8x4x128xf32>
    %22 = vector.shape_cast %21 : vector<8x4x128xf32> to vector<8x512xf32>
    %23 = arith.truncf %22 : vector<8x512xf32> to vector<8x512xbf16>
    %c0_13 = arith.constant 0 : index
    %c0_14 = arith.constant 0 : index
    %24 = vector.load %arg6[%c0_13, %c0_14] : memref<512x768xbf16, #tpu.memory_space<vmem>>, vector<512x768xbf16>
    %cst_15 = arith.constant dense<0.000000e+00> : vector<8x768xf32>
    %25 = tpu.matmul %23, %24, %cst_15 {dimension_numbers = #tpu.dot_dimension_numbers<[1], [0], [0], [1], [0, 0, 1, 1], [], []>} : vector<8x512xbf16>, vector<512x768xbf16>, vector<8x768xf32> -> vector<8x768xf32>
    %cst_16 = arith.constant 0.000000e+00 : f32
    %26 = vector.broadcast %cst_16 : f32 to vector<8x768xf32>
    %27 = arith.maximumf %25, %26 : vector<8x768xf32>
    %28 = arith.truncf %27 : vector<8x768xf32> to vector<8x768xbf16>
    %c0_17 = arith.constant 0 : index
    %c0_18 = arith.constant 0 : index
    %29 = vector.load %arg7[%c0_17, %c0_18] : memref<768x128xbf16, #tpu.memory_space<vmem>>, vector<768x128xbf16>
    %cst_19 = arith.constant dense<0.000000e+00> : vector<8x128xf32>
    %30 = tpu.matmul %28, %29, %cst_19 {dimension_numbers = #tpu.dot_dimension_numbers<[1], [0], [0], [1], [0, 0, 1, 1], [], []>} : vector<8x768xbf16>, vector<768x128xbf16>, vector<8x128xf32> -> vector<8x128xf32>
    %c0_20 = arith.constant 0 : index
    %c0_21 = arith.constant 0 : index
    %31 = vector.load %arg8[%c0_20, %c0_21] : memref<1x128xf32, #tpu.memory_space<vmem>>, vector<1x128xf32>
    %32 = vector.broadcast %31 : vector<1x128xf32> to vector<8x128xf32>
    %33 = arith.addf %30, %32 : vector<8x128xf32>
    %c0_22 = arith.constant 0 : index
    %c0_23 = arith.constant 0 : index
    %34 = vector.load %arg9[%c0_22, %c0_23] : memref<8x128xf32, #tpu.memory_space<vmem>>, vector<8x128xf32>
    tpu.vector_store %arg9[%c0_22, %c0_23], %33 {strides = array<i32>} : memref<8x128xf32, #tpu.memory_space<vmem>>, vector<8x128xf32>,
    return
  }
  func.func @transform_0(%arg0: i32) -> (i32, i32, i32) {
    %c0_i32 = arith.constant 0 : i32
    %c0_i32_0 = arith.constant 0 : i32
    %c0_i32_1 = arith.constant 0 : i32
    return %arg0, %c0_i32, %c0_i32_0 : i32, i32, i32
  }
  func.func @transform_1(%arg0: i32) -> (i32, i32) {
    %c0_i32 = arith.constant 0 : i32
    %c0_i32_0 = arith.constant 0 : i32
    %c0_i32_1 = arith.constant 0 : i32
    return %c0_i32, %c0_i32_0 : i32, i32
  }
  func.func @transform_2(%arg0: i32) -> (i32, i32) {
    %c0_i32 = arith.constant 0 : i32
    %c0_i32_0 = arith.constant 0 : i32
    %c0_i32_1 = arith.constant 0 : i32
    return %c0_i32, %c0_i32_0 : i32, i32
  }
  func.func @transform_3(%arg0: i32) -> (i32, i32) {
    %c0_i32 = arith.constant 0 : i32
    %c0_i32_0 = arith.constant 0 : i32
    %c0_i32_1 = arith.constant 0 : i32
    return %c0_i32, %c0_i32_0 : i32, i32
  }
  func.func @transform_4(%arg0: i32) -> (i32, i32) {
    %c0_i32 = arith.constant 0 : i32
    %c0_i32_0 = arith.constant 0 : i32
    %c0_i32_1 = arith.constant 0 : i32
    return %c0_i32, %c0_i32_0 : i32, i32
  }
  func.func @transform_5(%arg0: i32) -> (i32, i32) {
    %c0_i32 = arith.constant 0 : i32
    %c0_i32_0 = arith.constant 0 : i32
    %c0_i32_1 = arith.constant 0 : i32
    return %c0_i32, %c0_i32_0 : i32, i32
  }
  func.func @transform_6(%arg0: i32) -> (i32, i32) {
    %c0_i32 = arith.constant 0 : i32
    %c0_i32_0 = arith.constant 0 : i32
    %c0_i32_1 = arith.constant 0 : i32
    return %c0_i32, %c0_i32_0 : i32, i32
  }
  func.func @transform_7(%arg0: i32) -> (i32, i32) {
    %c0_i32 = arith.constant 0 : i32
    %c0_i32_0 = arith.constant 0 : i32
    %c0_i32_1 = arith.constant 0 : i32
    return %c0_i32, %c0_i32_0 : i32, i32
  }
  func.func @transform_8(%arg0: i32) -> (i32, i32) {
    %c0_i32 = arith.constant 0 : i32
    %c0_i32_0 = arith.constant 0 : i32
    return %arg0, %c0_i32 : i32, i32
  }
}

</mosaic_0001>

<llo_original>
// kernel: tpu_custom_call.1
$region0: #{tpu_custom_call.1}
  #allocation0 [shape = 'u32[]', space=smem, size = 0x4, offset = 0x4, fixed_abs, tag = 'smem constant byte address 0x4 - core index']
  #allocation1 [shape = 'u32[72,128]{1,0:T(1,128)}', space=vmem, size = 0x9000, scoped, tag = 'internal scratch']
  %s0 = inlined_call_operand.vmem [shape: f32[8,49,4], index: 0, kind: input, shape index: {}]
  %s1 = inlined_call_operand.vmem [shape: f32[4,49], index: 1, kind: input, shape index: {}]
  %s2 = inlined_call_operand.vmem [shape: bf16[4,128], index: 2, kind: input, shape index: {}]
  %s3 = inlined_call_operand.vmem [shape: f32[1,128], index: 3, kind: input, shape index: {}]
  %s4 = inlined_call_operand.vmem [shape: f32[1,128], index: 4, kind: input, shape index: {}]
  %s5 = inlined_call_operand.hbm [shape: bf16[512,768], index: 5, kind: input, shape index: {}]
  %s6 = inlined_call_operand.vmem [shape: bf16[768,128], index: 6, kind: input, shape index: {}]
  %s7 = inlined_call_operand.vmem [shape: f32[1,128], index: 7, kind: input, shape index: {}]
  %s8 = inlined_call_operand.hbm [shape: f32[8,128], index: 8, kind: output, shape index: {}]
  %s9 = sld [smem:[#allocation0]]
  $region46: #{tpu_custom_call.1} parent=0
    _
  %s11 = ssub.s32 1, %s9
  %s12 = scalar_select 0, %s11, %s9
  $region1: #{tpu_custom_call.1} parent=0
    #allocation2 [shape = 'u8[786432]{0}', space=vmem, size = 0xc0000, scoped, tag = 'input window, operand 5, single buffered']
    #allocation3 [shape = 's32[1]{0}', space=sflag, size = 0x4, scoped, tag = 'scoped memory for tpu_custom_call.1']
    #allocation4 [shape = 's32[1]{0}', space=sflag, size = 0x4, scoped, tag = 'scoped memory for tpu_custom_call.1']
    #allocation5 [shape = 'u8[4096]{0}', space=vmem, size = 0x1000, scoped, tag = 'output window, operand 0, single buffered']
    %13 = vsyncpa [#allocation3], 0
    %14 = vsyncpa [#allocation4], 0
    // Predicated region
    $region2: #{tpu_custom_call.1} parent=1 // pred_check
      _
    $region3: #{tpu_custom_call.1} parent=1 // pred_check_branch
      %16 = sbr.rel (0) target = $region5
    $region4: #{tpu_custom_call.1} parent=1 // pred_region
      _
    $region5: #{tpu_custom_call.1} parent=1 // pred_fallthru
      _
    // Predicated region
    $region6: #{tpu_custom_call.1} parent=1 // pred_check
      _
    $region7: #{tpu_custom_call.1} parent=1 // pred_check_branch
      %18 = sbr.rel (0) target = $region9
    $region8: #{tpu_custom_call.1} parent=1 // pred_region
      _
    $region9: #{tpu_custom_call.1} parent=1 // pred_fallthru
      _
    // Predicated region
    $region10: #{tpu_custom_call.1} parent=1 // pred_check
      _
    $region11: #{tpu_custom_call.1} parent=1 // pred_check_branch
      %20 = sbr.rel (0) target = $region13
    $region12: #{tpu_custom_call.1} parent=1 // pred_region
      _
    $region13: #{tpu_custom_call.1} parent=1 // pred_fallthru
      _
    // Predicated region
    $region14: #{tpu_custom_call.1} parent=1 // pred_check
      _
    $region15: #{tpu_custom_call.1} parent=1 // pred_check_branch
      %22 = sbr.rel (0) target = $region17
    $region16: #{tpu_custom_call.1} parent=1 // pred_region
      _
    $region17: #{tpu_custom_call.1} parent=1 // pred_fallthru
      _
    // Predicated region
    $region18: #{tpu_custom_call.1} parent=1 // pred_check
      _
    $region19: #{tpu_custom_call.1} parent=1 // pred_check_branch
      %24 = sbr.rel (0) target = $region21
    $region20: #{tpu_custom_call.1} parent=1 // pred_region
      _
    $region21: #{tpu_custom_call.1} parent=1 // pred_fallthru
      _
    // Predicated region
    $region22: #{tpu_custom_call.1} parent=1 // pred_check
      _
    $region23: #{tpu_custom_call.1} parent=1 // pred_check_branch
      %26 = sbr.rel (0) target = $region25
    $region24: #{tpu_custom_call.1} parent=1 // pred_region
      %28 = vsyncadd [#allocation3], 0
      %s29 = sshll.u32 %s5, 4
      %s30 = int_to_ptr.hbm [resolvable:$true] %s29
      %s31 = sshll.u32 [#allocation2], 4
      %s32 = int_to_ptr.vmem [resolvable:$true] %s31
      %37 = dma.hbm_to_vmem [thread:$0]  %s30, 24576, %s32, [#allocation3], 384, 384, 24
    $region25: #{tpu_custom_call.1} parent=1 // pred_fallthru
      _
    // Predicated region
    $region26: #{tpu_custom_call.1} parent=1 // pred_check
      _
    $region27: #{tpu_custom_call.1} parent=1 // pred_check_branch
      %39 = sbr.rel (0) target = $region29
    $region28: #{tpu_custom_call.1} parent=1 // pred_region
      _
    $region29: #{tpu_custom_call.1} parent=1 // pred_fallthru
      _
    // Predicated region
    $region30: #{tpu_custom_call.1} parent=1 // pred_check
      _
    $region31: #{tpu_custom_call.1} parent=1 // pred_check_branch
      %41 = sbr.rel (0) target = $region33
    $region32: #{tpu_custom_call.1} parent=1 // pred_region
      _
    $region33: #{tpu_custom_call.1} parent=1 // pred_fallthru
      _
    // Predicated region
    $region34: #{tpu_custom_call.1} parent=1 // pred_check
      _
    $region35: #{tpu_custom_call.1} parent=1 // pred_check_branch
      %43 = sbr.rel (0) target = $region37
    $region36: #{tpu_custom_call.1} parent=1 // pred_region
      %45 = dma.done [#allocation3], 24576
    $region37: #{tpu_custom_call.1} parent=1 // pred_fallthru
      _
    %v47 = vld [vmem:[%s0] sm:$0xff]
    %v48 = vld [vmem:[%s0 + $0x8] sm:$0xff]
    %v49 = vld [vmem:[%s0 + $0x10] sm:$0xff]
    %v50 = vld [vmem:[%s0 + $0x18] sm:$0xff]
    %v51 = vld [vmem:[%s0 + $0x20] sm:$0xff]
    %v52 = vld [vmem:[%s0 + $0x28] sm:$0xff]
    %v53 = vld [vmem:[%s0 + $0x30] sm:$0x1]
    %v54 = vld [vmem:[%s0 + $0x38] sm:$0xff]
    %v55 = vld [vmem:[%s0 + $0x40] sm:$0xff]
    %v56 = vld [vmem:[%s0 + $0x48] sm:$0xff]
    %v57 = vld [vmem:[%s0 + $0x50] sm:$0xff]
    %v58 = vld [vmem:[%s0 + $0x58] sm:$0xff]
    %v59 = vld [vmem:[%s0 + $0x60] sm:$0xff]
    %v60 = vld [vmem:[%s0 + $0x68] sm:$0x1]
    %v61 = vld [vmem:[%s0 + $0x70] sm:$0xff]
    %v62 = vld [vmem:[%s0 + $0x78] sm:$0xff]
    %v63 = vld [vmem:[%s0 + $0x80] sm:$0xff]
    %v64 = vld [vmem:[%s0 + $0x88] sm:$0xff]
    %v65 = vld [vmem:[%s0 + $0x90] sm:$0xff]
    %v66 = vld [vmem:[%s0 + $0x98] sm:$0xff]
    %v67 = vld [vmem:[%s0 + $0xa0] sm:$0x1]
    %v68 = vld [vmem:[%s0 + $0xa8] sm:$0xff]
    %v69 = vld [vmem:[%s0 + $0xb0] sm:$0xff]
    %v70 = vld [vmem:[%s0 + $0xb8] sm:$0xff]
    %v71 = vld [vmem:[%s0 + $0xc0] sm:$0xff]
    %v72 = vld [vmem:[%s0 + $0xc8] sm:$0xff]
    %v73 = vld [vmem:[%s0 + $0xd0] sm:$0xff]
    %v74 = vld [vmem:[%s0 + $0xd8] sm:$0x1]
    %v75 = vld [vmem:[%s0 + $0xe0] sm:$0xff]
    %v76 = vld [vmem:[%s0 + $0xe8] sm:$0xff]
    %v77 = vld [vmem:[%s0 + $0xf0] sm:$0xff]
    %v78 = vld [vmem:[%s0 + $0xf8] sm:$0xff]
    %v79 = vld [vmem:[%s0 + $0x100] sm:$0xff]
    %v80 = vld [vmem:[%s0 + $0x108] sm:$0xff]
    %v81 = vld [vmem:[%s0 + $0x110] sm:$0x1]
    %v82 = vld [vmem:[%s0 + $0x118] sm:$0xff]
    %v83 = vld [vmem:[%s0 + $0x120] sm:$0xff]
    %v84 = vld [vmem:[%s0 + $0x128] sm:$0xff]
    %v85 = vld [vmem:[%s0 + $0x130] sm:$0xff]
    %v86 = vld [vmem:[%s0 + $0x138] sm:$0xff]
    %v87 = vld [vmem:[%s0 + $0x140] sm:$0xff]
    %v88 = vld [vmem:[%s0 + $0x148] sm:$0x1]
    %v89 = vld [vmem:[%s0 + $0x150] sm:$0xff]
    %v90 = vld [vmem:[%s0 + $0x158] sm:$0xff]
    %v91 = vld [vmem:[%s0 + $0x160] sm:$0xff]
    %v92 = vld [vmem:[%s0 + $0x168] sm:$0xff]
    %v93 = vld [vmem:[%s0 + $0x170] sm:$0xff]
    %v94 = vld [vmem:[%s0 + $0x178] sm:$0xff]
    %v95 = vld [vmem:[%s0 + $0x180] sm:$0x1]
    %v96 = vld [vmem:[%s0 + $0x188] sm:$0xff]
    %v97 = vld [vmem:[%s0 + $0x190] sm:$0xff]
    %v98 = vld [vmem:[%s0 + $0x198] sm:$0xff]
    %v99 = vld [vmem:[%s0 + $0x1a0] sm:$0xff]
    %v100 = vld [vmem:[%s0 + $0x1a8] sm:$0xff]
    %v101 = vld [vmem:[%s0 + $0x1b0] sm:$0xff]
    %v102 = vld [vmem:[%s0 + $0x1b8] sm:$0x1]
    %v103 = vmax.f32 %v47, 0.0
    %v104 = vmax.f32 %v48, 0.0
    %v105 = vmax.f32 %v49, 0.0
    %v106 = vmax.f32 %v50, 0.0
    %v107 = vmax.f32 %v51, 0.0
    %v108 = vmax.f32 %v52, 0.0
    %v109 = vmax.f32 %v53, 0.0
    %v110 = vmax.f32 %v54, 0.0
    %v111 = vmax.f32 %v55, 0.0
    %v112 = vmax.f32 %v56, 0.0
    %v113 = vmax.f32 %v57, 0.0
    %v114 = vmax.f32 %v58, 0.0
    %v115 = vmax.f32 %v59, 0.0
    %v116 = vmax.f32 %v60, 0.0
    %v117 = vmax.f32 %v61, 0.0
    %v118 = vmax.f32 %v62, 0.0
    %v119 = vmax.f32 %v63, 0.0
    %v120 = vmax.f32 %v64, 0.0
    %v121 = vmax.f32 %v65, 0.0
    %v122 = vmax.f32 %v66, 0.0
    %v123 = vmax.f32 %v67, 0.0
    %v124 = vmax.f32 %v68, 0.0
    %v125 = vmax.f32 %v69, 0.0
    %v126 = vmax.f32 %v70, 0.0
    %v127 = vmax.f32 %v71, 0.0
    %v128 = vmax.f32 %v72, 0.0
    %v129 = vmax.f32 %v73, 0.0
    %v130 = vmax.f32 %v74, 0.0
    %v131 = vmax.f32 %v75, 0.0
    %v132 = vmax.f32 %v76, 0.0
    %v133 = vmax.f32 %v77, 0.0
    %v134 = vmax.f32 %v78, 0.0
    %v135 = vmax.f32 %v79, 0.0
    %v136 = vmax.f32 %v80, 0.0
    %v137 = vmax.f32 %v81, 0.0
    %v138 = vmax.f32 %v82, 0.0
    %v139 = vmax.f32 %v83, 0.0
    %v140 = vmax.f32 %v84, 0.0
    %v141 = vmax.f32 %v85, 0.0
    %v142 = vmax.f32 %v86, 0.0
    %v143 = vmax.f32 %v87, 0.0
    %v144 = vmax.f32 %v88, 0.0
    %v145 = vmax.f32 %v89, 0.0
    %v146 = vmax.f32 %v90, 0.0
    %v147 = vmax.f32 %v91, 0.0
    %v148 = vmax.f32 %v92, 0.0
    %v149 = vmax.f32 %v93, 0.0
    %v150 = vmax.f32 %v94, 0.0
    %v151 = vmax.f32 %v95, 0.0
    %v152 = vmax.f32 %v96, 0.0
    %v153 = vmax.f32 %v97, 0.0
    %v154 = vmax.f32 %v98, 0.0
    %v155 = vmax.f32 %v99, 0.0
    %v156 = vmax.f32 %v100, 0.0
    %v157 = vmax.f32 %v101, 0.0
    %v158 = vmax.f32 %v102, 0.0
    %v215 = vrot.slane %v103, 1
    %v216 = vrot.slane %v103, 2
    %v217 = vrot.slane %v103, 3
    %v218 = vrot.slane %v103, 4
    %v219 = vrot.slane %v103, 5
    %v220 = vrot.slane %v103, 6
    %v221 = vrot.slane %v103, 7
    %v222 = vrot.slane %v104, 1
    %v223 = vrot.slane %v104, 2
    %v224 = vrot.slane %v104, 3
    %v225 = vrot.slane %v104, 4
    %v226 = vrot.slane %v104, 5
    %v227 = vrot.slane %v104, 6
    %v228 = vrot.slane %v104, 7
    %v229 = vrot.slane %v105, 1
    %v230 = vrot.slane %v105, 2
    %v231 = vrot.slane %v105, 3
    %v232 = vrot.slane %v105, 4
    %v233 = vrot.slane %v105, 5
    %v234 = vrot.slane %v105, 6
    %v235 = vrot.slane %v105, 7
    %v236 = vrot.slane %v106, 1
    %v237 = vrot.slane %v106, 2
    %v238 = vrot.slane %v106, 3
    %v239 = vrot.slane %v106, 4
    %v240 = vrot.slane %v106, 5
    %v241 = vrot.slane %v106, 6
    %v242 = vrot.slane %v106, 7
    %v243 = vrot.slane %v107, 1
    %v244 = vrot.slane %v107, 2
    %v245 = vrot.slane %v107, 3
    %v246 = vrot.slane %v107, 4
    %v247 = vrot.slane %v107, 5
    %v248 = vrot.slane %v107, 6
    %v249 = vrot.slane %v107, 7
    %v250 = vrot.slane %v108, 1
    %v251 = vrot.slane %v108, 2
    %v252 = vrot.slane %v108, 3
    %v253 = vrot.slane %v108, 4
    %v254 = vrot.slane %v108, 5
    %v255 = vrot.slane %v108, 6
    %v256 = vrot.slane %v108, 7
    %v257 = vrot.slane %v110, 1
    %v258 = vrot.slane %v110, 2
    %v259 = vrot.slane %v110, 3
    %v260 = vrot.slane %v110, 4
    %v261 = vrot.slane %v110, 5
    %v262 = vrot.slane %v110, 6
    %v263 = vrot.slane %v110, 7
    %v264 = vrot.slane %v111, 1
    %v265 = vrot.slane %v111, 2
    %v266 = vrot.slane %v111, 3
    %v267 = vrot.slane %v111, 4
    %v268 = vrot.slane %v111, 5
    %v269 = vrot.slane %v111, 6
    %v270 = vrot.slane %v111, 7
    %v271 = vrot.slane %v112, 1
    %v272 = vrot.slane %v112, 2
    %v273 = vrot.slane %v112, 3
    %v274 = vrot.slane %v112, 4
    %v275 = vrot.slane %v112, 5
    %v276 = vrot.slane %v112, 6
    %v277 = vrot.slane %v112, 7
    %v278 = vrot.slane %v113, 1
    %v279 = vrot.slane %v113, 2
    %v280 = vrot.slane %v113, 3
    %v281 = vrot.slane %v113, 4
    %v282 = vrot.slane %v113, 5
    %v283 = vrot.slane %v113, 6
    %v284 = vrot.slane %v113, 7
    %v285 = vrot.slane %v114, 1
    %v286 = vrot.slane %v114, 2
    %v287 = vrot.slane %v114, 3
    %v288 = vrot.slane %v114, 4
    %v289 = vrot.slane %v114, 5
    %v290 = vrot.slane %v114, 6
    %v291 = vrot.slane %v114, 7
    %v292 = vrot.slane %v115, 1
    %v293 = vrot.slane %v115, 2
    %v294 = vrot.slane %v115, 3
    %v295 = vrot.slane %v115, 4
    %v296 = vrot.slane %v115, 5
    %v297 = vrot.slane %v115, 6
    %v298 = vrot.slane %v115, 7
    %v299 = vrot.slane %v117, 1
    %v300 = vrot.slane %v117, 2
    %v301 = vrot.slane %v117, 3
    %v302 = vrot.slane %v117, 4
    %v303 = vrot.slane %v117, 5
    %v304 = vrot.slane %v117, 6
    %v305 = vrot.slane %v117, 7
    %v306 = vrot.slane %v118, 1
    %v307 = vrot.slane %v118, 2
    %v308 = vrot.slane %v118, 3
    %v309 = vrot.slane %v118, 4
    %v310 = vrot.slane %v118, 5
    %v311 = vrot.slane %v118, 6
    %v312 = vrot.slane %v118, 7
    %v313 = vrot.slane %v119, 1
    %v314 = vrot.slane %v119, 2
    %v315 = vrot.slane %v119, 3
    %v316 = vrot.slane %v119, 4
    %v317 = vrot.slane %v119, 5
    %v318 = vrot.slane %v119, 6
    %v319 = vrot.slane %v119, 7
    %v320 = vrot.slane %v120, 1
    %v321 = vrot.slane %v120, 2
    %v322 = vrot.slane %v120, 3
    %v323 = vrot.slane %v120, 4
    %v324 = vrot.slane %v120, 5
    %v325 = vrot.slane %v120, 6
    %v326 = vrot.slane %v120, 7
    %v327 = vrot.slane %v121, 1
    %v328 = vrot.slane %v121, 2
    %v329 = vrot.slane %v121, 3
    %v330 = vrot.slane %v121, 4
    %v331 = vrot.slane %v121, 5
    %v332 = vrot.slane %v121, 6
    %v333 = vrot.slane %v121, 7
    %v334 = vrot.slane %v122, 1
    %v335 = vrot.slane %v122, 2
    %v336 = vrot.slane %v122, 3
    %v337 = vrot.slane %v122, 4
    %v338 = vrot.slane %v122, 5
    %v339 = vrot.slane %v122, 6
    %v340 = vrot.slane %v122, 7
    %v341 = vrot.slane %v124, 1
    %v342 = vrot.slane %v124, 2
    %v343 = vrot.slane %v124, 3
    %v344 = vrot.slane %v124, 4
    %v345 = vrot.slane %v124, 5
    %v346 = vrot.slane %v124, 6
    %v347 = vrot.slane %v124, 7
    %v348 = vrot.slane %v125, 1
    %v349 = vrot.slane %v125, 2
    %v350 = vrot.slane %v125, 3
    %v351 = vrot.slane %v125, 4
    %v352 = vrot.slane %v125, 5
    %v353 = vrot.slane %v125, 6
    %v354 = vrot.slane %v125, 7
    %v355 = vrot.slane %v126, 1
    %v356 = vrot.slane %v126, 2
    %v357 = vrot.slane %v126, 3
    %v358 = vrot.slane %v126, 4
    %v359 = vrot.slane %v126, 5
    %v360 = vrot.slane %v126, 6
    %v361 = vrot.slane %v126, 7
    %v362 = vrot.slane %v127, 1
    %v363 = vrot.slane %v127, 2
    %v364 = vrot.slane %v127, 3
    %v365 = vrot.slane %v127, 4
    %v366 = vrot.slane %v127, 5
    %v367 = vrot.slane %v127, 6
    %v368 = vrot.slane %v127, 7
    %v369 = vrot.slane %v128, 1
    %v370 = vrot.slane %v128, 2
    %v371 = vrot.slane %v128, 3
    %v372 = vrot.slane %v128, 4
    %v373 = vrot.slane %v128, 5
    %v374 = vrot.slane %v128, 6
    %v375 = vrot.slane %v128, 7
    %v376 = vrot.slane %v129, 1
    %v377 = vrot.slane %v129, 2
    %v378 = vrot.slane %v129, 3
    %v379 = vrot.slane %v129, 4
    %v380 = vrot.slane %v129, 5
    %v381 = vrot.slane %v129, 6
    %v382 = vrot.slane %v129, 7
    %v383 = vrot.slane %v131, 1
    %v384 = vrot.slane %v131, 2
    %v385 = vrot.slane %v131, 3
    %v386 = vrot.slane %v131, 4
    %v387 = vrot.slane %v131, 5
    %v388 = vrot.slane %v131, 6
    %v389 = vrot.slane %v131, 7
    %v390 = vrot.slane %v132, 1
    %v391 = vrot.slane %v132, 2
    %v392 = vrot.slane %v132, 3
    %v393 = vrot.slane %v132, 4
    %v394 = vrot.slane %v132, 5
    %v395 = vrot.slane %v132, 6
    %v396 = vrot.slane %v132, 7
    %v397 = vrot.slane %v133, 1
    %v398 = vrot.slane %v133, 2
    %v399 = vrot.slane %v133, 3
    %v400 = vrot.slane %v133, 4
    %v401 = vrot.slane %v133, 5
    %v402 = vrot.slane %v133, 6
    %v403 = vrot.slane %v133, 7
    %v404 = vrot.slane %v134, 1
    %v405 = vrot.slane %v134, 2
    %v406 = vrot.slane %v134, 3
    %v407 = vrot.slane %v134, 4
    %v408 = vrot.slane %v134, 5
    %v409 = vrot.slane %v134, 6
    %v410 = vrot.slane %v134, 7
    %v411 = vrot.slane %v135, 1
    %v412 = vrot.slane %v135, 2
    %v413 = vrot.slane %v135, 3
    %v414 = vrot.slane %v135, 4
    %v415 = vrot.slane %v135, 5
    %v416 = vrot.slane %v135, 6
    %v417 = vrot.slane %v135, 7
    %v418 = vrot.slane %v136, 1
    %v419 = vrot.slane %v136, 2
    %v420 = vrot.slane %v136, 3
    %v421 = vrot.slane %v136, 4
    %v422 = vrot.slane %v136, 5
    %v423 = vrot.slane %v136, 6
    %v424 = vrot.slane %v136, 7
    %v425 = vrot.slane %v138, 1
    %v426 = vrot.slane %v138, 2
    %v427 = vrot.slane %v138, 3
    %v428 = vrot.slane %v138, 4
    %v429 = vrot.slane %v138, 5
    %v430 = vrot.slane %v138, 6
    %v431 = vrot.slane %v138, 7
    %v432 = vrot.slane %v139, 1
    %v433 = vrot.slane %v139, 2
    %v434 = vrot.slane %v139, 3
    %v435 = vrot.slane %v139, 4
    %v436 = vrot.slane %v139, 5
    %v437 = vrot.slane %v139, 6
    %v438 = vrot.slane %v139, 7
    %v439 = vrot.slane %v140, 1
    %v440 = vrot.slane %v140, 2
    %v441 = vrot.slane %v140, 3
    %v442 = vrot.slane %v140, 4
    %v443 = vrot.slane %v140, 5
    %v444 = vrot.slane %v140, 6
    %v445 = vrot.slane %v140, 7
    %v446 = vrot.slane %v141, 1
    %v447 = vrot.slane %v141, 2
    %v448 = vrot.slane %v141, 3
    %v449 = vrot.slane %v141, 4
    %v450 = vrot.slane %v141, 5
    %v451 = vrot.slane %v141, 6
    %v452 = vrot.slane %v141, 7
    %v453 = vrot.slane %v142, 1
    %v454 = vrot.slane %v142, 2
    %v455 = vrot.slane %v142, 3
    %v456 = vrot.slane %v142, 4
    %v457 = vrot.slane %v142, 5
    %v458 = vrot.slane %v142, 6
    %v459 = vrot.slane %v142, 7
    %v460 = vrot.slane %v143, 1
    %v461 = vrot.slane %v143, 2
    %v462 = vrot.slane %v143, 3
    %v463 = vrot.slane %v143, 4
    %v464 = vrot.slane %v143, 5
    %v465 = vrot.slane %v143, 6
    %v466 = vrot.slane %v143, 7
    %v467 = vrot.slane %v145, 1
    %v468 = vrot.slane %v145, 2
    %v469 = vrot.slane %v145, 3
    %v470 = vrot.slane %v145, 4
    %v471 = vrot.slane %v145, 5
    %v472 = vrot.slane %v145, 6
    %v473 = vrot.slane %v145, 7
    %v474 = vrot.slane %v146, 1
    %v475 = vrot.slane %v146, 2
    %v476 = vrot.slane %v146, 3
    %v477 = vrot.slane %v146, 4
    %v478 = vrot.slane %v146, 5
    %v479 = vrot.slane %v146, 6
    %v480 = vrot.slane %v146, 7
    %v481 = vrot.slane %v147, 1
    %v482 = vrot.slane %v147, 2
    %v483 = vrot.slane %v147, 3
    %v484 = vrot.slane %v147, 4
    %v485 = vrot.slane %v147, 5
    %v486 = vrot.slane %v147, 6
    %v487 = vrot.slane %v147, 7
    %v488 = vrot.slane %v148, 1
    %v489 = vrot.slane %v148, 2
    %v490 = vrot.slane %v148, 3
    %v491 = vrot.slane %v148, 4
    %v492 = vrot.slane %v148, 5
    %v493 = vrot.slane %v148, 6
    %v494 = vrot.slane %v148, 7
    %v495 = vrot.slane %v149, 1
    %v496 = vrot.slane %v149, 2
    %v497 = vrot.slane %v149, 3
    %v498 = vrot.slane %v149, 4
    %v499 = vrot.slane %v149, 5
    %v500 = vrot.slane %v149, 6
    %v501 = vrot.slane %v149, 7
    %v502 = vrot.slane %v150, 1
    %v503 = vrot.slane %v150, 2
    %v504 = vrot.slane %v150, 3
    %v505 = vrot.slane %v150, 4
    %v506 = vrot.slane %v150, 5
    %v507 = vrot.slane %v150, 6
    %v508 = vrot.slane %v150, 7
    %v509 = vrot.slane %v152, 1
    %v510 = vrot.slane %v152, 2
    %v511 = vrot.slane %v152, 3
    %v512 = vrot.slane %v152, 4
    %v513 = vrot.slane %v152, 5
    %v514 = vrot.slane %v152, 6
    %v515 = vrot.slane %v152, 7
    %v516 = vrot.slane %v153, 1
    %v517 = vrot.slane %v153, 2
    %v518 = vrot.slane %v153, 3
    %v519 = vrot.slane %v153, 4
    %v520 = vrot.slane %v153, 5
    %v521 = vrot.slane %v153, 6
    %v522 = vrot.slane %v153, 7
    %v523 = vrot.slane %v154, 1
    %v524 = vrot.slane %v154, 2
    %v525 = vrot.slane %v154, 3
    %v526 = vrot.slane %v154, 4
    %v527 = vrot.slane %v154, 5
    %v528 = vrot.slane %v154, 6
    %v529 = vrot.slane %v154, 7
    %v530 = vrot.slane %v155, 1
    %v531 = vrot.slane %v155, 2
    %v532 = vrot.slane %v155, 3
    %v533 = vrot.slane %v155, 4
    %v534 = vrot.slane %v155, 5
    %v535 = vrot.slane %v155, 6
    %v536 = vrot.slane %v155, 7
    %v537 = vrot.slane %v156, 1
    %v538 = vrot.slane %v156, 2
    %v539 = vrot.slane %v156, 3
    %v540 = vrot.slane %v156, 4
    %v541 = vrot.slane %v156, 5
    %v542 = vrot.slane %v156, 6
    %v543 = vrot.slane %v156, 7
    %v544 = vrot.slane %v157, 1
    %v545 = vrot.slane %v157, 2
    %v546 = vrot.slane %v157, 3
    %v547 = vrot.slane %v157, 4
    %v548 = vrot.slane %v157, 5
    %v549 = vrot.slane %v157, 6
    %v550 = vrot.slane %v157, 7
    %551 = vst [vmem:[#allocation1] ss:$9 sm:$0xff] %v103
    %s552 = scalar_lea.vmem [#allocation1], 1
    %553 = vst [vmem:[%s552] ss:$9 sm:$0xff] %v215
    %s554 = scalar_lea.vmem [#allocation1], 2
    %555 = vst [vmem:[%s554] ss:$9 sm:$0xff] %v216
    %s556 = scalar_lea.vmem [#allocation1], 3
    %557 = vst [vmem:[%s556] ss:$9 sm:$0xff] %v217
    %s558 = scalar_lea.vmem [#allocation1], 4
    %559 = vst [vmem:[%s558] ss:$9 sm:$0xff] %v218
    %s560 = scalar_lea.vmem [#allocation1], 5
    %561 = vst [vmem:[%s560] ss:$9 sm:$0xff] %v219
    %s562 = scalar_lea.vmem [#allocation1], 6
    %563 = vst [vmem:[%s562] ss:$9 sm:$0xff] %v220
    %s564 = scalar_lea.vmem [#allocation1], 7
    %565 = vst [vmem:[%s564] ss:$9 sm:$0xff] %v221
    %v566 = vld [vmem:[#allocation1] sm:$0xff]
    %567 = vst [vmem:[#allocation1] ss:$9 sm:$0xff] %v104
    %568 = vst [vmem:[%s552] ss:$9 sm:$0xff] %v222
    %569 = vst [vmem:[%s554] ss:$9 sm:$0xff] %v223
    %570 = vst [vmem:[%s556] ss:$9 sm:$0xff] %v224
    %571 = vst [vmem:[%s558] ss:$9 sm:$0xff] %v225
    %572 = vst [vmem:[%s560] ss:$9 sm:$0xff] %v226
    %573 = vst [vmem:[%s562] ss:$9 sm:$0xff] %v227
    %574 = vst [vmem:[%s564] ss:$9 sm:$0xff] %v228
    %v575 = vld [vmem:[#allocation1] sm:$0xff]
    %576 = vst [vmem:[#allocation1] ss:$9 sm:$0xff] %v105
    %577 = vst [vmem:[%s552] ss:$9 sm:$0xff] %v229
    %578 = vst [vmem:[%s554] ss:$9 sm:$0xff] %v230
    %579 = vst [vmem:[%s556] ss:$9 sm:$0xff] %v231
    %580 = vst [vmem:[%s558] ss:$9 sm:$0xff] %v232
    %581 = vst [vmem:[%s560] ss:$9 sm:$0xff] %v233
    %582 = vst [vmem:[%s562] ss:$9 sm:$0xff] %v234
    %583 = vst [vmem:[%s564] ss:$9 sm:$0xff] %v235
    %v584 = vld [vmem:[#allocation1] sm:$0xff]
    %585 = vst [vmem:[#allocation1] ss:$9 sm:$0xff] %v106
    %586 = vst [vmem:[%s552] ss:$9 sm:$0xff] %v236
    %587 = vst [vmem:[%s554] ss:$9 sm:$0xff] %v237
    %588 = vst [vmem:[%s556] ss:$9 sm:$0xff] %v238
    %589 = vst [vmem:[%s558] ss:$9 sm:$0xff] %v239
    %590 = vst [vmem:[%s560] ss:$9 sm:$0xff] %v240
    %591 = vst [vmem:[%s562] ss:$9 sm:$0xff] %v241
    %592 = vst [vmem:[%s564] ss:$9 sm:$0xff] %v242
    %v593 = vld [vmem:[#allocation1] sm:$0xff]
    %594 = vst [vmem:[#allocation1] ss:$9 sm:$0xff] %v107
    %595 = vst [vmem:[%s552] ss:$9 sm:$0xff] %v243
    %596 = vst [vmem:[%s554] ss:$9 sm:$0xff] %v244
    %597 = vst [vmem:[%s556] ss:$9 sm:$0xff] %v245
    %598 = vst [vmem:[%s558] ss:$9 sm:$0xff] %v246
    %599 = vst [vmem:[%s560] ss:$9 sm:$0xff] %v247
    %600 = vst [vmem:[%s562] ss:$9 sm:$0xff] %v248
    %601 = vst [vmem:[%s564] ss:$9 sm:$0xff] %v249
    %v602 = vld [vmem:[#allocation1] sm:$0xff]
    %603 = vst [vmem:[#allocation1] ss:$9 sm:$0xff] %v108
    %604 = vst [vmem:[%s552] ss:$9 sm:$0xff] %v250
    %605 = vst [vmem:[%s554] ss:$9 sm:$0xff] %v251
    %606 = vst [vmem:[%s556] ss:$9 sm:$0xff] %v252
    %607 = vst [vmem:[%s558] ss:$9 sm:$0xff] %v253
    %608 = vst [vmem:[%s560] ss:$9 sm:$0xff] %v254
    %609 = vst [vmem:[%s562] ss:$9 sm:$0xff] %v255
    %610 = vst [vmem:[%s564] ss:$9 sm:$0xff] %v256
    %v611 = vld [vmem:[#allocation1] sm:$0xff]
    %612 = vst [vmem:[#allocation1] ss:$9 sm:$0xff] %v109
    %613 = vst [vmem:[%s552] ss:$9 sm:$0xff] %v110
    %614 = vst [vmem:[%s554] ss:$9 sm:$0xff] %v257
    %615 = vst [vmem:[%s556] ss:$9 sm:$0xff] %v258
    %616 = vst [vmem:[%s558] ss:$9 sm:$0xff] %v259
    %617 = vst [vmem:[%s560] ss:$9 sm:$0xff] %v260
    %618 = vst [vmem:[%s562] ss:$9 sm:$0xff] %v261
    %619 = vst [vmem:[%s564] ss:$9 sm:$0xff] %v262
    %v620 = vld [vmem:[#allocation1] sm:$0xff]
    %621 = vst [vmem:[#allocation1] ss:$9 sm:$0xff] %v263
    %622 = vst [vmem:[%s552] ss:$9 sm:$0xff] %v111
    %623 = vst [vmem:[%s554] ss:$9 sm:$0xff] %v264
    %624 = vst [vmem:[%s556] ss:$9 sm:$0xff] %v265
    %625 = vst [vmem:[%s558] ss:$9 sm:$0xff] %v266
    %626 = vst [vmem:[%s560] ss:$9 sm:$0xff] %v267
    %627 = vst [vmem:[%s562] ss:$9 sm:$0xff] %v268
    %628 = vst [vmem:[%s564] ss:$9 sm:$0xff] %v269
    %v629 = vld [vmem:[#allocation1] sm:$0xff]
    %630 = vst [vmem:[#allocation1] ss:$9 sm:$0xff] %v270
    %631 = vst [vmem:[%s552] ss:$9 sm:$0xff] %v112
    %632 = vst [vmem:[%s554] ss:$9 sm:$0xff] %v271
    %633 = vst [vmem:[%s556] ss:$9 sm:$0xff] %v272
    %634 = vst [vmem:[%s558] ss:$9 sm:$0xff] %v273
    %635 = vst [vmem:[%s560] ss:$9 sm:$0xff] %v274
    %636 = vst [vmem:[%s562] ss:$9 sm:$0xff] %v275
    %637 = vst [vmem:[%s564] ss:$9 sm:$0xff] %v276
    %v638 = vld [vmem:[#allocation1] sm:$0xff]
    %639 = vst [vmem:[#allocation1] ss:$9 sm:$0xff] %v277
    %640 = vst [vmem:[%s552] ss:$9 sm:$0xff] %v113
    %641 = vst [vmem:[%s554] ss:$9 sm:$0xff] %v278
    %642 = vst [vmem:[%s556] ss:$9 sm:$0xff] %v279
    %643 = vst [vmem:[%s558] ss:$9 sm:$0xff] %v280
    %644 = vst [vmem:[%s560] ss:$9 sm:$0xff] %v281
    %645 = vst [vmem:[%s562] ss:$9 sm:$0xff] %v282
    %646 = vst [vmem:[%s564] ss:$9 sm:$0xff] %v283
    %v647 = vld [vmem:[#allocation1] sm:$0xff]
    %648 = vst [vmem:[#allocation1] ss:$9 sm:$0xff] %v284
    %649 = vst [vmem:[%s552] ss:$9 sm:$0xff] %v114
    %650 = vst [vmem:[%s554] ss:$9 sm:$0xff] %v285
    %651 = vst [vmem:[%s556] ss:$9 sm:$0xff] %v286
    %652 = vst [vmem:[%s558] ss:$9 sm:$0xff] %v287
    %653 = vst [vmem:[%s560] ss:$9 sm:$0xff] %v288
    %654 = vst [vmem:[%s562] ss:$9 sm:$0xff] %v289
    %655 = vst [vmem:[%s564] ss:$9 sm:$0xff] %v290
    %v656 = vld [vmem:[#allocation1] sm:$0xff]
    %657 = vst [vmem:[#allocation1] ss:$9 sm:$0xff] %v291
    %658 = vst [vmem:[%s552] ss:$9 sm:$0xff] %v115
    %659 = vst [vmem:[%s554] ss:$9 sm:$0xff] %v292
    %660 = vst [vmem:[%s556] ss:$9 sm:$0xff] %v293
    %661 = vst [vmem:[%s558] ss:$9 sm:$0xff] %v294
    %662 = vst [vmem:[%s560] ss:$9 sm:$0xff] %v295
    %663 = vst [vmem:[%s562] ss:$9 sm:$0xff] %v296
    %664 = vst [vmem:[%s564] ss:$9 sm:$0xff] %v297
    %v665 = vld [vmem:[#allocation1] sm:$0xff]
    %666 = vst [vmem:[#allocation1] ss:$9 sm:$0xff] %v298
    %667 = vst [vmem:[%s552] ss:$9 sm:$0xff] %v116
    %668 = vst [vmem:[%s554] ss:$9 sm:$0xff] %v117
    %669 = vst [vmem:[%s556] ss:$9 sm:$0xff] %v299
    %670 = vst [vmem:[%s558] ss:$9 sm:$0xff] %v300
    %671 = vst [vmem:[%s560] ss:$9 sm:$0xff] %v301
    %672 = vst [vmem:[%s562] ss:$9 sm:$0xff] %v302
    %673 = vst [vmem:[%s564] ss:$9 sm:$0xff] %v303
    %v674 = vld [vmem:[#allocation1] sm:$0xff]
    %675 = vst [vmem:[#allocation1] ss:$9 sm:$0xff] %v304
    %676 = vst [vmem:[%s552] ss:$9 sm:$0xff] %v305
    %677 = vst [vmem:[%s554] ss:$9 sm:$0xff] %v118
    %678 = vst [vmem:[%s556] ss:$9 sm:$0xff] %v306
    %679 = vst [vmem:[%s558] ss:$9 sm:$0xff] %v307
    %680 = vst [vmem:[%s560] ss:$9 sm:$0xff] %v308
    %681 = vst [vmem:[%s562] ss:$9 sm:$0xff] %v309
    %682 = vst [vmem:[%s564] ss:$9 sm:$0xff] %v310
    %v683 = vld [vmem:[#allocation1] sm:$0xff]
    %684 = vst [vmem:[#allocation1] ss:$9 sm:$0xff] %v311
    %685 = vst [vmem:[%s552] ss:$9 sm:$0xff] %v312
    %686 = vst [vmem:[%s554] ss:$9 sm:$0xff] %v119
    %687 = vst [vmem:[%s556] ss:$9 sm:$0xff] %v313
    %688 = vst [vmem:[%s558] ss:$9 sm:$0xff] %v314
    %689 = vst [vmem:[%s560] ss:$9 sm:$0xff] %v315
    %690 = vst [vmem:[%s562] ss:$9 sm:$0xff] %v316
    %691 = vst [vmem:[%s564] ss:$9 sm:$0xff] %v317
    %v692 = vld [vmem:[#allocation1] sm:$0xff]
    %693 = vst [vmem:[#allocation1] ss:$9 sm:$0xff] %v318
    %694 = vst [vmem:[%s552] ss:$9 sm:$0xff] %v319
    %695 = vst [vmem:[%s554] ss:$9 sm:$0xff] %v120
    %696 = vst [vmem:[%s556] ss:$9 sm:$0xff] %v320
    %697 = vst [vmem:[%s558] ss:$9 sm:$0xff] %v321
    %698 = vst [vmem:[%s560] ss:$9 sm:$0xff] %v322
    %699 = vst [vmem:[%s562] ss:$9 sm:$0xff] %v323
    %700 = vst [vmem:[%s564] ss:$9 sm:$0xff] %v324
    %v701 = vld [vmem:[#allocation1] sm:$0xff]
    %702 = vst [vmem:[#allocation1] ss:$9 sm:$0xff] %v325
    %703 = vst [vmem:[%s552] ss:$9 sm:$0xff] %v326
    %704 = vst [vmem:[%s554] ss:$9 sm:$0xff] %v121
    %705 = vst [vmem:[%s556] ss:$9 sm:$0xff] %v327
    %706 = vst [vmem:[%s558] ss:$9 sm:$0xff] %v328
    %707 = vst [vmem:[%s560] ss:$9 sm:$0xff] %v329
    %708 = vst [vmem:[%s562] ss:$9 sm:$0xff] %v330
    %709 = vst [vmem:[%s564] ss:$9 sm:$0xff] %v331
    %v710 = vld [vmem:[#allocation1] sm:$0xff]
    %711 = vst [vmem:[#allocation1] ss:$9 sm:$0xff] %v332
    %712 = vst [vmem:[%s552] ss:$9 sm:$0xff] %v333
    %713 = vst [vmem:[%s554] ss:$9 sm:$0xff] %v122
    %714 = vst [vmem:[%s556] ss:$9 sm:$0xff] %v334
    %715 = vst [vmem:[%s558] ss:$9 sm:$0xff] %v335
    %716 = vst [vmem:[%s560] ss:$9 sm:$0xff] %v336
    %717 = vst [vmem:[%s562] ss:$9 sm:$0xff] %v337
    %718 = vst [vmem:[%s564] ss:$9 sm:$0xff] %v338
    %v719 = vld [vmem:[#allocation1] sm:$0xff]
    %720 = vst [vmem:[#allocation1] ss:$9 sm:$0xff] %v339
    %721 = vst [vmem:[%s552] ss:$9 sm:$0xff] %v340
    %722 = vst [vmem:[%s554] ss:$9 sm:$0xff] %v123
    %723 = vst [vmem:[%s556] ss:$9 sm:$0xff] %v124
    %724 = vst [vmem:[%s558] ss:$9 sm:$0xff] %v341
    %725 = vst [vmem:[%s560] ss:$9 sm:$0xff] %v342
    %726 = vst [vmem:[%s562] ss:$9 sm:$0xff] %v343
    %727 = vst [vmem:[%s564] ss:$9 sm:$0xff] %v344
    %v728 = vld [vmem:[#allocation1] sm:$0xff]
    %729 = vst [vmem:[#allocation1] ss:$9 sm:$0xff] %v345
    %730 = vst [vmem:[%s552] ss:$9 sm:$0xff] %v346
    %731 = vst [vmem:[%s554] ss:$9 sm:$0xff] %v347
    %732 = vst [vmem:[%s556] ss:$9 sm:$0xff] %v125
    %733 = vst [vmem:[%s558] ss:$9 sm:$0xff] %v348
    %734 = vst [vmem:[%s560] ss:$9 sm:$0xff] %v349
    %735 = vst [vmem:[%s562] ss:$9 sm:$0xff] %v350
    %736 = vst [vmem:[%s564] ss:$9 sm:$0xff] %v351
    %v737 = vld [vmem:[#allocation1] sm:$0xff]
    %738 = vst [vmem:[#allocation1] ss:$9 sm:$0xff] %v352
    %739 = vst [vmem:[%s552] ss:$9 sm:$0xff] %v353
    %740 = vst [vmem:[%s554] ss:$9 sm:$0xff] %v354
    %741 = vst [vmem:[%s556] ss:$9 sm:$0xff] %v126
    %742 = vst [vmem:[%s558] ss:$9 sm:$0xff] %v355
    %743 = vst [vmem:[%s560] ss:$9 sm:$0xff] %v356
    %744 = vst [vmem:[%s562] ss:$9 sm:$0xff] %v357
    %745 = vst [vmem:[%s564] ss:$9 sm:$0xff] %v358
    %v746 = vld [vmem:[#allocation1] sm:$0xff]
    %747 = vst [vmem:[#allocation1] ss:$9 sm:$0xff] %v359
    %748 = vst [vmem:[%s552] ss:$9 sm:$0xff] %v360
    %749 = vst [vmem:[%s554] ss:$9 sm:$0xff] %v361
    %750 = vst [vmem:[%s556] ss:$9 sm:$0xff] %v127
    %751 = vst [vmem:[%s558] ss:$9 sm:$0xff] %v362
    %752 = vst [vmem:[%s560] ss:$9 sm:$0xff] %v363
    %753 = vst [vmem:[%s562] ss:$9 sm:$0xff] %v364
    %754 = vst [vmem:[%s564] ss:$9 sm:$0xff] %v365
    %v755 = vld [vmem:[#allocation1] sm:$0xff]
    %756 = vst [vmem:[#allocation1] ss:$9 sm:$0xff] %v366
    %757 = vst [vmem:[%s552] ss:$9 sm:$0xff] %v367
    %758 = vst [vmem:[%s554] ss:$9 sm:$0xff] %v368
    %759 = vst [vmem:[%s556] ss:$9 sm:$0xff] %v128
    %760 = vst [vmem:[%s558] ss:$9 sm:$0xff] %v369
    %761 = vst [vmem:[%s560] ss:$9 sm:$0xff] %v370
    %762 = vst [vmem:[%s562] ss:$9 sm:$0xff] %v371
    %763 = vst [vmem:[%s564] ss:$9 sm:$0xff] %v372
    %v764 = vld [vmem:[#allocation1] sm:$0xff]
    %765 = vst [vmem:[#allocation1] ss:$9 sm:$0xff] %v373
    %766 = vst [vmem:[%s552] ss:$9 sm:$0xff] %v374
    %767 = vst [vmem:[%s554] ss:$9 sm:$0xff] %v375
    %768 = vst [vmem:[%s556] ss:$9 sm:$0xff] %v129
    %769 = vst [vmem:[%s558] ss:$9 sm:$0xff] %v376
    %770 = vst [vmem:[%s560] ss:$9 sm:$0xff] %v377
    %771 = vst [vmem:[%s562] ss:$9 sm:$0xff] %v378
    %772 = vst [vmem:[%s564] ss:$9 sm:$0xff] %v379
    %v773 = vld [vmem:[#allocation1] sm:$0xff]
    %774 = vst [vmem:[#allocation1] ss:$9 sm:$0xff] %v380
    %775 = vst [vmem:[%s552] ss:$9 sm:$0xff] %v381
    %776 = vst [vmem:[%s554] ss:$9 sm:$0xff] %v382
    %777 = vst [vmem:[%s556] ss:$9 sm:$0xff] %v130
    %778 = vst [vmem:[%s558] ss:$9 sm:$0xff] %v131
    %779 = vst [vmem:[%s560] ss:$9 sm:$0xff] %v383
    %780 = vst [vmem:[%s562] ss:$9 sm:$0xff] %v384
    %781 = vst [vmem:[%s564] ss:$9 sm:$0xff] %v385
    %v782 = vld [vmem:[#allocation1] sm:$0xff]
    %783 = vst [vmem:[#allocation1] ss:$9 sm:$0xff] %v386
    %784 = vst [vmem:[%s552] ss:$9 sm:$0xff] %v387
    %785 = vst [vmem:[%s554] ss:$9 sm:$0xff] %v388
    %786 = vst [vmem:[%s556] ss:$9 sm:$0xff] %v389
    %787 = vst [vmem:[%s558] ss:$9 sm:$0xff] %v132
    %788 = vst [vmem:[%s560] ss:$9 sm:$0xff] %v390
    %789 = vst [vmem:[%s562] ss:$9 sm:$0xff] %v391
    %790 = vst [vmem:[%s564] ss:$9 sm:$0xff] %v392
    %v791 = vld [vmem:[#allocation1] sm:$0xff]
    %792 = vst [vmem:[#allocation1] ss:$9 sm:$0xff] %v393
    %793 = vst [vmem:[%s552] ss:$9 sm:$0xff] %v394
    %794 = vst [vmem:[%s554] ss:$9 sm:$0xff] %v395
    %795 = vst [vmem:[%s556] ss:$9 sm:$0xff] %v396
    %796 = vst [vmem:[%s558] ss:$9 sm:$0xff] %v133
    %797 = vst [vmem:[%s560] ss:$9 sm:$0xff] %v397
    %798 = vst [vmem:[%s562] ss:$9 sm:$0xff] %v398
    %799 = vst [vmem:[%s564] ss:$9 sm:$0xff] %v399
    %v800 = vld [vmem:[#allocation1] sm:$0xff]
    %801 = vst [vmem:[#allocation1] ss:$9 sm:$0xff] %v400
    %802 = vst [vmem:[%s552] ss:$9 sm:$0xff] %v401
    %803 = vst [vmem:[%s554] ss:$9 sm:$0xff] %v402
    %804 = vst [vmem:[%s556] ss:$9 sm:$0xff] %v403
    %805 = vst [vmem:[%s558] ss:$9 sm:$0xff] %v134
    %806 = vst [vmem:[%s560] ss:$9 sm:$0xff] %v404
    %807 = vst [vmem:[%s562] ss:$9 sm:$0xff] %v405
    %808 = vst [vmem:[%s564] ss:$9 sm:$0xff] %v406
    %v809 = vld [vmem:[#allocation1] sm:$0xff]
    %810 = vst [vmem:[#allocation1] ss:$9 sm:$0xff] %v407
    %811 = vst [vmem:[%s552] ss:$9 sm:$0xff] %v408
    %812 = vst [vmem:[%s554] ss:$9 sm:$0xff] %v409
    %813 = vst [vmem:[%s556] ss:$9 sm:$0xff] %v410
    %814 = vst [vmem:[%s558] ss:$9 sm:$0xff] %v135
    %815 = vst [vmem:[%s560] ss:$9 sm:$0xff] %v411
    %816 = vst [vmem:[%s562] ss:$9 sm:$0xff] %v412
    %817 = vst [vmem:[%s564] ss:$9 sm:$0xff] %v413
    %v818 = vld [vmem:[#allocation1] sm:$0xff]
    %819 = vst [vmem:[#allocation1] ss:$9 sm:$0xff] %v414
    %820 = vst [vmem:[%s552] ss:$9 sm:$0xff] %v415
    %821 = vst [vmem:[%s554] ss:$9 sm:$0xff] %v416
    %822 = vst [vmem:[%s556] ss:$9 sm:$0xff] %v417
    %823 = vst [vmem:[%s558] ss:$9 sm:$0xff] %v136
    %824 = vst [vmem:[%s560] ss:$9 sm:$0xff] %v418
    %825 = vst [vmem:[%s562] ss:$9 sm:$0xff] %v419
    %826 = vst [vmem:[%s564] ss:$9 sm:$0xff] %v420
    %v827 = vld [vmem:[#allocation1] sm:$0xff]
    %828 = vst [vmem:[#allocation1] ss:$9 sm:$0xff] %v421
    %829 = vst [vmem:[%s552] ss:$9 sm:$0xff] %v422
    %830 = vst [vmem:[%s554] ss:$9 sm:$0xff] %v423
    %831 = vst [vmem:[%s556] ss:$9 sm:$0xff] %v424
    %832 = vst [vmem:[%s558] ss:$9 sm:$0xff] %v137
    %833 = vst [vmem:[%s560] ss:$9 sm:$0xff] %v138
    %834 = vst [vmem:[%s562] ss:$9 sm:$0xff] %v425
    %835 = vst [vmem:[%s564] ss:$9 sm:$0xff] %v426
    %v836 = vld [vmem:[#allocation1] sm:$0xff]
    %837 = vst [vmem:[#allocation1] ss:$9 sm:$0xff] %v427
    %838 = vst [vmem:[%s552] ss:$9 sm:$0xff] %v428
    %839 = vst [vmem:[%s554] ss:$9 sm:$0xff] %v429
    %840 = vst [vmem:[%s556] ss:$9 sm:$0xff] %v430
    %841 = vst [vmem:[%s558] ss:$9 sm:$0xff] %v431
    %842 = vst [vmem:[%s560] ss:$9 sm:$0xff] %v139
    %843 = vst [vmem:[%s562] ss:$9 sm:$0xff] %v432
    %844 = vst [vmem:[%s564] ss:$9 sm:$0xff] %v433
    %v845 = vld [vmem:[#allocation1] sm:$0xff]
    %846 = vst [vmem:[#allocation1] ss:$9 sm:$0xff] %v434
    %847 = vst [vmem:[%s552] ss:$9 sm:$0xff] %v435
    %848 = vst [vmem:[%s554] ss:$9 sm:$0xff] %v436
    %849 = vst [vmem:[%s556] ss:$9 sm:$0xff] %v437
    %850 = vst [vmem:[%s558] ss:$9 sm:$0xff] %v438
    %851 = vst [vmem:[%s560] ss:$9 sm:$0xff] %v140
    %852 = vst [vmem:[%s562] ss:$9 sm:$0xff] %v439
    %853 = vst [vmem:[%s564] ss:$9 sm:$0xff] %v440
    %v854 = vld [vmem:[#allocation1] sm:$0xff]
    %855 = vst [vmem:[#allocation1] ss:$9 sm:$0xff] %v441
    %856 = vst [vmem:[%s552] ss:$9 sm:$0xff] %v442
    %857 = vst [vmem:[%s554] ss:$9 sm:$0xff] %v443
    %858 = vst [vmem:[%s556] ss:$9 sm:$0xff] %v444
    %859 = vst [vmem:[%s558] ss:$9 sm:$0xff] %v445
    %860 = vst [vmem:[%s560] ss:$9 sm:$0xff] %v141
    %861 = vst [vmem:[%s562] ss:$9 sm:$0xff] %v446
    %862 = vst [vmem:[%s564] ss:$9 sm:$0xff] %v447
    %v863 = vld [vmem:[#allocation1] sm:$0xff]
    %864 = vst [vmem:[#allocation1] ss:$9 sm:$0xff] %v448
    %865 = vst [vmem:[%s552] ss:$9 sm:$0xff] %v449
    %866 = vst [vmem:[%s554] ss:$9 sm:$0xff] %v450
    %867 = vst [vmem:[%s556] ss:$9 sm:$0xff] %v451
    %868 = vst [vmem:[%s558] ss:$9 sm:$0xff] %v452
    %869 = vst [vmem:[%s560] ss:$9 sm:$0xff] %v142
    %870 = vst [vmem:[%s562] ss:$9 sm:$0xff] %v453
    %871 = vst [vmem:[%s564] ss:$9 sm:$0xff] %v454
    %v872 = vld [vmem:[#allocation1] sm:$0xff]
    %873 = vst [vmem:[#allocation1] ss:$9 sm:$0xff] %v455
    %874 = vst [vmem:[%s552] ss:$9 sm:$0xff] %v456
    %875 = vst [vmem:[%s554] ss:$9 sm:$0xff] %v457
    %876 = vst [vmem:[%s556] ss:$9 sm:$0xff] %v458
    %877 = vst [vmem:[%s558] ss:$9 sm:$0xff] %v459
    %878 = vst [vmem:[%s560] ss:$9 sm:$0xff] %v143
    %879 = vst [vmem:[%s562] ss:$9 sm:$0xff] %v460
    %880 = vst [vmem:[%s564] ss:$9 sm:$0xff] %v461
    %v881 = vld [vmem:[#allocation1] sm:$0xff]
    %882 = vst [vmem:[#allocation1] ss:$9 sm:$0xff] %v462
    %883 = vst [vmem:[%s552] ss:$9 sm:$0xff] %v463
    %884 = vst [vmem:[%s554] ss:$9 sm:$0xff] %v464
    %885 = vst [vmem:[%s556] ss:$9 sm:$0xff] %v465
    %886 = vst [vmem:[%s558] ss:$9 sm:$0xff] %v466
    %887 = vst [vmem:[%s560] ss:$9 sm:$0xff] %v144
    %888 = vst [vmem:[%s562] ss:$9 sm:$0xff] %v145
    %889 = vst [vmem:[%s564] ss:$9 sm:$0xff] %v467
    %v890 = vld [vmem:[#allocation1] sm:$0xff]
    %891 = vst [vmem:[#allocation1] ss:$9 sm:$0xff] %v468
    %892 = vst [vmem:[%s552] ss:$9 sm:$0xff] %v469
    %893 = vst [vmem:[%s554] ss:$9 sm:$0xff] %v470
    %894 = vst [vmem:[%s556] ss:$9 sm:$0xff] %v471
    %895 = vst [vmem:[%s558] ss:$9 sm:$0xff] %v472
    %896 = vst [vmem:[%s560] ss:$9 sm:$0xff] %v473
    %897 = vst [vmem:[%s562] ss:$9 sm:$0xff] %v146
    %898 = vst [vmem:[%s564] ss:$9 sm:$0xff] %v474
    %v899 = vld [vmem:[#allocation1] sm:$0xff]
    %900 = vst [vmem:[#allocation1] ss:$9 sm:$0xff] %v475
    %901 = vst [vmem:[%s552] ss:$9 sm:$0xff] %v476
    %902 = vst [vmem:[%s554] ss:$9 sm:$0xff] %v477
    %903 = vst [vmem:[%s556] ss:$9 sm:$0xff] %v478
    %904 = vst [vmem:[%s558] ss:$9 sm:$0xff] %v479
    %905 = vst [vmem:[%s560] ss:$9 sm:$0xff] %v480
    %906 = vst [vmem:[%s562] ss:$9 sm:$0xff] %v147
    %907 = vst [vmem:[%s564] ss:$9 sm:$0xff] %v481
    %v908 = vld [vmem:[#allocation1] sm:$0xff]
    %909 = vst [vmem:[#allocation1] ss:$9 sm:$0xff] %v482
    %910 = vst [vmem:[%s552] ss:$9 sm:$0xff] %v483
    %911 = vst [vmem:[%s554] ss:$9 sm:$0xff] %v484
    %912 = vst [vmem:[%s556] ss:$9 sm:$0xff] %v485
    %913 = vst [vmem:[%s558] ss:$9 sm:$0xff] %v486
    %914 = vst [vmem:[%s560] ss:$9 sm:$0xff] %v487
    %915 = vst [vmem:[%s562] ss:$9 sm:$0xff] %v148
    %916 = vst [vmem:[%s564] ss:$9 sm:$0xff] %v488
    %v917 = vld [vmem:[#allocation1] sm:$0xff]
    %918 = vst [vmem:[#allocation1] ss:$9 sm:$0xff] %v489
    %919 = vst [vmem:[%s552] ss:$9 sm:$0xff] %v490
    %920 = vst [vmem:[%s554] ss:$9 sm:$0xff] %v491
    %921 = vst [vmem:[%s556] ss:$9 sm:$0xff] %v492
    %922 = vst [vmem:[%s558] ss:$9 sm:$0xff] %v493
    %923 = vst [vmem:[%s560] ss:$9 sm:$0xff] %v494
    %924 = vst [vmem:[%s562] ss:$9 sm:$0xff] %v149
    %925 = vst [vmem:[%s564] ss:$9 sm:$0xff] %v495
    %v926 = vld [vmem:[#allocation1] sm:$0xff]
    %927 = vst [vmem:[#allocation1] ss:$9 sm:$0xff] %v496
    %928 = vst [vmem:[%s552] ss:$9 sm:$0xff] %v497
    %929 = vst [vmem:[%s554] ss:$9 sm:$0xff] %v498
    %930 = vst [vmem:[%s556] ss:$9 sm:$0xff] %v499
    %931 = vst [vmem:[%s558] ss:$9 sm:$0xff] %v500
    %932 = vst [vmem:[%s560] ss:$9 sm:$0xff] %v501
    %933 = vst [vmem:[%s562] ss:$9 sm:$0xff] %v150
    %934 = vst [vmem:[%s564] ss:$9 sm:$0xff] %v502
    %v935 = vld [vmem:[#allocation1] sm:$0xff]
    %936 = vst [vmem:[#allocation1] ss:$9 sm:$0xff] %v503
    %937 = vst [vmem:[%s552] ss:$9 sm:$0xff] %v504
    %938 = vst [vmem:[%s554] ss:$9 sm:$0xff] %v505
    %939 = vst [vmem:[%s556] ss:$9 sm:$0xff] %v506
    %940 = vst [vmem:[%s558] ss:$9 sm:$0xff] %v507
    %941 = vst [vmem:[%s560] ss:$9 sm:$0xff] %v508
    %942 = vst [vmem:[%s562] ss:$9 sm:$0xff] %v151
    %943 = vst [vmem:[%s564] ss:$9 sm:$0xff] %v152
    %v944 = vld [vmem:[#allocation1] sm:$0xff]
    %945 = vst [vmem:[#allocation1] ss:$9 sm:$0xff] %v509
    %946 = vst [vmem:[%s552] ss:$9 sm:$0xff] %v510
    %947 = vst [vmem:[%s554] ss:$9 sm:$0xff] %v511
    %948 = vst [vmem:[%s556] ss:$9 sm:$0xff] %v512
    %949 = vst [vmem:[%s558] ss:$9 sm:$0xff] %v513
    %950 = vst [vmem:[%s560] ss:$9 sm:$0xff] %v514
    %951 = vst [vmem:[%s562] ss:$9 sm:$0xff] %v515
    %952 = vst [vmem:[%s564] ss:$9 sm:$0xff] %v153
    %v953 = vld [vmem:[#allocation1] sm:$0xff]
    %954 = vst [vmem:[#allocation1] ss:$9 sm:$0xff] %v516
    %955 = vst [vmem:[%s552] ss:$9 sm:$0xff] %v517
    %956 = vst [vmem:[%s554] ss:$9 sm:$0xff] %v518
    %957 = vst [vmem:[%s556] ss:$9 sm:$0xff] %v519
    %958 = vst [vmem:[%s558] ss:$9 sm:$0xff] %v520
    %959 = vst [vmem:[%s560] ss:$9 sm:$0xff] %v521
    %960 = vst [vmem:[%s562] ss:$9 sm:$0xff] %v522
    %961 = vst [vmem:[%s564] ss:$9 sm:$0xff] %v154
    %v962 = vld [vmem:[#allocation1] sm:$0xff]
    %963 = vst [vmem:[#allocation1] ss:$9 sm:$0xff] %v523
    %964 = vst [vmem:[%s552] ss:$9 sm:$0xff] %v524
    %965 = vst [vmem:[%s554] ss:$9 sm:$0xff] %v525
    %966 = vst [vmem:[%s556] ss:$9 sm:$0xff] %v526
    %967 = vst [vmem:[%s558] ss:$9 sm:$0xff] %v527
    %968 = vst [vmem:[%s560] ss:$9 sm:$0xff] %v528
    %969 = vst [vmem:[%s562] ss:$9 sm:$0xff] %v529
    %970 = vst [vmem:[%s564] ss:$9 sm:$0xff] %v155
    %v971 = vld [vmem:[#allocation1] sm:$0xff]
    %972 = vst [vmem:[#allocation1] ss:$9 sm:$0xff] %v530
    %973 = vst [vmem:[%s552] ss:$9 sm:$0xff] %v531
    %974 = vst [vmem:[%s554] ss:$9 sm:$0xff] %v532
    %975 = vst [vmem:[%s556] ss:$9 sm:$0xff] %v533
    %976 = vst [vmem:[%s558] ss:$9 sm:$0xff] %v534
    %977 = vst [vmem:[%s560] ss:$9 sm:$0xff] %v535
    %978 = vst [vmem:[%s562] ss:$9 sm:$0xff] %v536
    %979 = vst [vmem:[%s564] ss:$9 sm:$0xff] %v156
    %v980 = vld [vmem:[#allocation1] sm:$0xff]
    %981 = vst [vmem:[#allocation1] ss:$9 sm:$0xff] %v537
    %982 = vst [vmem:[%s552] ss:$9 sm:$0xff] %v538
    %983 = vst [vmem:[%s554] ss:$9 sm:$0xff] %v539
    %984 = vst [vmem:[%s556] ss:$9 sm:$0xff] %v540
    %985 = vst [vmem:[%s558] ss:$9 sm:$0xff] %v541
    %986 = vst [vmem:[%s560] ss:$9 sm:$0xff] %v542
    %987 = vst [vmem:[%s562] ss:$9 sm:$0xff] %v543
    %988 = vst [vmem:[%s564] ss:$9 sm:$0xff] %v157
    %v989 = vld [vmem:[#allocation1] sm:$0xff]
    %990 = vst [vmem:[#allocation1] ss:$9 sm:$0xff] %v544
    %991 = vst [vmem:[%s552] ss:$9 sm:$0xff] %v545
    %992 = vst [vmem:[%s554] ss:$9 sm:$0xff] %v546
    %993 = vst [vmem:[%s556] ss:$9 sm:$0xff] %v547
    %994 = vst [vmem:[%s558] ss:$9 sm:$0xff] %v548
    %995 = vst [vmem:[%s560] ss:$9 sm:$0xff] %v549
    %996 = vst [vmem:[%s562] ss:$9 sm:$0xff] %v550
    %997 = vst [vmem:[%s564] ss:$9 sm:$0xff] %v158
    %v998 = vld [vmem:[#allocation1] sm:$0xff]
    %v1048 = vpack.c.bf16 %v575, %v566
    %v1049 = vpack.c.bf16 %v593, %v584
    %v1050 = vpack.c.bf16 %v611, %v602
    %v1051 = vpack.c.bf16 %v629, %v620
    %v1052 = vpack.c.bf16 %v647, %v638
    %v1053 = vpack.c.bf16 %v665, %v656
    %v1054 = vpack.c.bf16 %v683, %v674
    %v1055 = vpack.c.bf16 %v701, %v692
    %v1056 = vpack.c.bf16 %v719, %v710
    %v1057 = vpack.c.bf16 %v737, %v728
    %v1058 = vpack.c.bf16 %v755, %v746
    %v1059 = vpack.c.bf16 %v773, %v764
    %v1060 = vpack.c.bf16 %v791, %v782
    %v1061 = vpack.c.bf16 %v809, %v800
    %v1062 = vpack.c.bf16 %v827, %v818
    %v1063 = vpack.c.bf16 %v845, %v836
    %v1064 = vpack.c.bf16 %v863, %v854
    %v1065 = vpack.c.bf16 %v881, %v872
    %v1066 = vpack.c.bf16 %v899, %v890
    %v1067 = vpack.c.bf16 %v917, %v908
    %v1068 = vpack.c.bf16 %v935, %v926
    %v1069 = vpack.c.bf16 %v953, %v944
    %v1070 = vpack.c.bf16 %v971, %v962
    %v1071 = vpack.c.bf16 %v989, %v980
    %v1072 = vpack.c.bf16 %v998, %v998
    %v1073 = vld [vmem:[%s2] sm:$0x3]
    %vm1074 = vcmask 31744
    %v1076 = vsel %vm1074, %v1048, 0
    %v1079 = vsel %vm1074, %v1049, 0
    %v1082 = vsel %vm1074, %v1050, 0
    %v1085 = vsel %vm1074, %v1051, 0
    %v1088 = vsel %vm1074, %v1052, 0
    %v1091 = vsel %vm1074, %v1053, 0
    %v1094 = vsel %vm1074, %v1054, 0
    %v1097 = vsel %vm1074, %v1055, 0
    %v1100 = vsel %vm1074, %v1056, 0
    %v1103 = vsel %vm1074, %v1057, 0
    %v1106 = vsel %vm1074, %v1058, 0
    %v1109 = vsel %vm1074, %v1059, 0
    %v1112 = vsel %vm1074, %v1060, 0
    %v1115 = vsel %vm1074, %v1061, 0
    %v1118 = vsel %vm1074, %v1062, 0
    %v1121 = vsel %vm1074, %v1063, 0
    %v1124 = vsel %vm1074, %v1064, 0
    %v1127 = vsel %vm1074, %v1065, 0
    %v1130 = vsel %vm1074, %v1066, 0
    %v1133 = vsel %vm1074, %v1067, 0
    %v1136 = vsel %vm1074, %v1068, 0
    %v1139 = vsel %vm1074, %v1069, 0
    %v1142 = vsel %vm1074, %v1070, 0
    %v1145 = vsel %vm1074, %v1071, 0
    %v1148 = vsel %vm1074, %v1072, 0
    %vm1150 = vcmask 1041408
    %v1152 = vsel %vm1150, %v1073, 0
    %1154 = vmatpush.bf16.msra.mxu0 0
    %1155 = vmatpush.bf16.msra.mxu0 0
    %1156 = vmatpush.bf16.msra.mxu0 0
    %1157 = vmatpush.bf16.msra.mxu0 0
    %1158 = vmatpush.bf16.msra.mxu0 0
    %1159 = vmatpush.bf16.msra.mxu0 0
    %1160 = vmatpush.bf16.msra.mxu0 0
    %1161 = vmatpush.bf16.msra.mxu0 %v1152
    %1162 = vmatmul.bf16.gmra.mxu0 %v1076
    %v1163 = vpop.f32.mrf.mxu0
    %v1164 = vadd.f32 0.0, %v1163
    %v1165 = vpop.f32.mrf.mxu0
    %v1166 = vadd.f32 0.0, %v1165
    %1167 = vmatmul.bf16.gmra.mxu0 %v1079
    %v1168 = vpop.f32.mrf.mxu0
    %v1169 = vadd.f32 0.0, %v1168
    %v1170 = vpop.f32.mrf.mxu0
    %v1171 = vadd.f32 0.0, %v1170
    %1172 = vmatmul.bf16.gmra.mxu0 %v1082
    %v1173 = vpop.f32.mrf.mxu0
    %v1174 = vadd.f32 0.0, %v1173
    %v1175 = vpop.f32.mrf.mxu0
    %v1176 = vadd.f32 0.0, %v1175
    %1177 = vmatmul.bf16.gmra.mxu0 %v1085
    %v1178 = vpop.f32.mrf.mxu0
    %v1179 = vadd.f32 0.0, %v1178
    %v1180 = vpop.f32.mrf.mxu0
    %v1181 = vadd.f32 0.0, %v1180
    %1182 = vmatmul.bf16.gmra.mxu0 %v1088
    %v1183 = vpop.f32.mrf.mxu0
    %v1184 = vadd.f32 0.0, %v1183
    %v1185 = vpop.f32.mrf.mxu0
    %v1186 = vadd.f32 0.0, %v1185
    %1187 = vmatmul.bf16.gmra.mxu0 %v1091
    %v1188 = vpop.f32.mrf.mxu0
    %v1189 = vadd.f32 0.0, %v1188
    %v1190 = vpop.f32.mrf.mxu0
    %v1191 = vadd.f32 0.0, %v1190
    %1192 = vmatmul.bf16.gmra.mxu0 %v1094
    %v1193 = vpop.f32.mrf.mxu0
    %v1194 = vadd.f32 0.0, %v1193
    %v1195 = vpop.f32.mrf.mxu0
    %v1196 = vadd.f32 0.0, %v1195
    %1197 = vmatmul.bf16.gmra.mxu0 %v1097
    %v1198 = vpop.f32.mrf.mxu0
    %v1199 = vadd.f32 0.0, %v1198
    %v1200 = vpop.f32.mrf.mxu0
    %v1201 = vadd.f32 0.0, %v1200
    %1202 = vmatmul.bf16.gmra.mxu0 %v1100
    %v1203 = vpop.f32.mrf.mxu0
    %v1204 = vadd.f32 0.0, %v1203
    %v1205 = vpop.f32.mrf.mxu0
    %v1206 = vadd.f32 0.0, %v1205
    %1207 = vmatmul.bf16.gmra.mxu0 %v1103
    %v1208 = vpop.f32.mrf.mxu0
    %v1209 = vadd.f32 0.0, %v1208
    %v1210 = vpop.f32.mrf.mxu0
    %v1211 = vadd.f32 0.0, %v1210
    %1212 = vmatmul.bf16.gmra.mxu0 %v1106
    %v1213 = vpop.f32.mrf.mxu0
    %v1214 = vadd.f32 0.0, %v1213
    %v1215 = vpop.f32.mrf.mxu0
    %v1216 = vadd.f32 0.0, %v1215
    %1217 = vmatmul.bf16.gmra.mxu0 %v1109
    %v1218 = vpop.f32.mrf.mxu0
    %v1219 = vadd.f32 0.0, %v1218
    %v1220 = vpop.f32.mrf.mxu0
    %v1221 = vadd.f32 0.0, %v1220
    %1222 = vmatmul.bf16.gmra.mxu0 %v1112
    %v1223 = vpop.f32.mrf.mxu0
    %v1224 = vadd.f32 0.0, %v1223
    %v1225 = vpop.f32.mrf.mxu0
    %v1226 = vadd.f32 0.0, %v1225
    %1227 = vmatmul.bf16.gmra.mxu0 %v1115
    %v1228 = vpop.f32.mrf.mxu0
    %v1229 = vadd.f32 0.0, %v1228
    %v1230 = vpop.f32.mrf.mxu0
    %v1231 = vadd.f32 0.0, %v1230
    %1232 = vmatmul.bf16.gmra.mxu0 %v1118
    %v1233 = vpop.f32.mrf.mxu0
    %v1234 = vadd.f32 0.0, %v1233
    %v1235 = vpop.f32.mrf.mxu0
    %v1236 = vadd.f32 0.0, %v1235
    %1237 = vmatmul.bf16.gmra.mxu0 %v1121
    %v1238 = vpop.f32.mrf.mxu0
    %v1239 = vadd.f32 0.0, %v1238
    %v1240 = vpop.f32.mrf.mxu0
    %v1241 = vadd.f32 0.0, %v1240
    %1242 = vmatmul.bf16.gmra.mxu0 %v1124
    %v1243 = vpop.f32.mrf.mxu0
    %v1244 = vadd.f32 0.0, %v1243
    %v1245 = vpop.f32.mrf.mxu0
    %v1246 = vadd.f32 0.0, %v1245
    %1247 = vmatmul.bf16.gmra.mxu0 %v1127
    %v1248 = vpop.f32.mrf.mxu0
    %v1249 = vadd.f32 0.0, %v1248
    %v1250 = vpop.f32.mrf.mxu0
    %v1251 = vadd.f32 0.0, %v1250
    %1252 = vmatmul.bf16.gmra.mxu0 %v1130
    %v1253 = vpop.f32.mrf.mxu0
    %v1254 = vadd.f32 0.0, %v1253
    %v1255 = vpop.f32.mrf.mxu0
    %v1256 = vadd.f32 0.0, %v1255
    %1257 = vmatmul.bf16.gmra.mxu0 %v1133
    %v1258 = vpop.f32.mrf.mxu0
    %v1259 = vadd.f32 0.0, %v1258
    %v1260 = vpop.f32.mrf.mxu0
    %v1261 = vadd.f32 0.0, %v1260
    %1262 = vmatmul.bf16.gmra.mxu0 %v1136
    %v1263 = vpop.f32.mrf.mxu0
    %v1264 = vadd.f32 0.0, %v1263
    %v1265 = vpop.f32.mrf.mxu0
    %v1266 = vadd.f32 0.0, %v1265
    %1267 = vmatmul.bf16.gmra.mxu0 %v1139
    %v1268 = vpop.f32.mrf.mxu0
    %v1269 = vadd.f32 0.0, %v1268
    %v1270 = vpop.f32.mrf.mxu0
    %v1271 = vadd.f32 0.0, %v1270
    %1272 = vmatmul.bf16.gmra.mxu0 %v1142
    %v1273 = vpop.f32.mrf.mxu0
    %v1274 = vadd.f32 0.0, %v1273
    %v1275 = vpop.f32.mrf.mxu0
    %v1276 = vadd.f32 0.0, %v1275
    %1277 = vmatmul.bf16.gmra.mxu0 %v1145
    %v1278 = vpop.f32.mrf.mxu0
    %v1279 = vadd.f32 0.0, %v1278
    %v1280 = vpop.f32.mrf.mxu0
    %v1281 = vadd.f32 0.0, %v1280
    %1282 = vmatmul.bf16.gmra.mxu0 %v1148
    %v1283 = vpop.f32.mrf.mxu0
    %v1284 = vadd.f32 0.0, %v1283
    %v1285 = vpop.f32.mrf.mxu0
    %1286 = vdwg.mxu0
    %v1336 = vrot.slane %v1164, 1
    %v1337 = vrot.slane %v1164, 2
    %v1338 = vrot.slane %v1164, 3
    %v1339 = vrot.slane %v1164, 4
    %v1340 = vrot.slane %v1164, 5
    %v1341 = vrot.slane %v1164, 6
    %v1342 = vrot.slane %v1164, 7
    %v1343 = vrot.slane %v1166, 1
    %v1344 = vrot.slane %v1166, 2
    %v1345 = vrot.slane %v1166, 3
    %v1346 = vrot.slane %v1166, 4
    %v1347 = vrot.slane %v1166, 5
    %v1348 = vrot.slane %v1166, 6
    %v1349 = vrot.slane %v1166, 7
    %v1350 = vrot.slane %v1169, 1
    %v1351 = vrot.slane %v1169, 2
    %v1352 = vrot.slane %v1169, 3
    %v1353 = vrot.slane %v1169, 4
    %v1354 = vrot.slane %v1169, 5
    %v1355 = vrot.slane %v1169, 6
    %v1356 = vrot.slane %v1169, 7
    %v1357 = vrot.slane %v1171, 1
    %v1358 = vrot.slane %v1171, 2
    %v1359 = vrot.slane %v1171, 3
    %v1360 = vrot.slane %v1171, 4
    %v1361 = vrot.slane %v1171, 5
    %v1362 = vrot.slane %v1171, 6
    %v1363 = vrot.slane %v1171, 7
    %v1364 = vrot.slane %v1174, 1
    %v1365 = vrot.slane %v1174, 2
    %v1366 = vrot.slane %v1174, 3
    %v1367 = vrot.slane %v1174, 4
    %v1368 = vrot.slane %v1174, 5
    %v1369 = vrot.slane %v1174, 6
    %v1370 = vrot.slane %v1174, 7
    %v1371 = vrot.slane %v1176, 1
    %v1372 = vrot.slane %v1176, 2
    %v1373 = vrot.slane %v1176, 3
    %v1374 = vrot.slane %v1176, 4
    %v1375 = vrot.slane %v1176, 5
    %v1376 = vrot.slane %v1176, 6
    %v1377 = vrot.slane %v1176, 7
    %v1378 = vrot.slane %v1179, 1
    %v1379 = vrot.slane %v1179, 2
    %v1380 = vrot.slane %v1179, 3
    %v1381 = vrot.slane %v1179, 4
    %v1382 = vrot.slane %v1179, 5
    %v1383 = vrot.slane %v1179, 6
    %v1384 = vrot.slane %v1179, 7
    %v1385 = vrot.slane %v1181, 1
    %v1386 = vrot.slane %v1181, 2
    %v1387 = vrot.slane %v1181, 3
    %v1388 = vrot.slane %v1181, 4
    %v1389 = vrot.slane %v1181, 5
    %v1390 = vrot.slane %v1181, 6
    %v1391 = vrot.slane %v1181, 7
    %v1392 = vrot.slane %v1184, 1
    %v1393 = vrot.slane %v1184, 2
    %v1394 = vrot.slane %v1184, 3
    %v1395 = vrot.slane %v1184, 4
    %v1396 = vrot.slane %v1184, 5
    %v1397 = vrot.slane %v1184, 6
    %v1398 = vrot.slane %v1184, 7
    %v1399 = vrot.slane %v1186, 1
    %v1400 = vrot.slane %v1186, 2
    %v1401 = vrot.slane %v1186, 3
    %v1402 = vrot.slane %v1186, 4
    %v1403 = vrot.slane %v1186, 5
    %v1404 = vrot.slane %v1186, 6
    %v1405 = vrot.slane %v1186, 7
    %v1406 = vrot.slane %v1189, 1
    %v1407 = vrot.slane %v1189, 2
    %v1408 = vrot.slane %v1189, 3
    %v1409 = vrot.slane %v1189, 4
    %v1410 = vrot.slane %v1189, 5
    %v1411 = vrot.slane %v1189, 6
    %v1412 = vrot.slane %v1189, 7
    %v1413 = vrot.slane %v1191, 1
    %v1414 = vrot.slane %v1191, 2
    %v1415 = vrot.slane %v1191, 3
    %v1416 = vrot.slane %v1191, 4
    %v1417 = vrot.slane %v1191, 5
    %v1418 = vrot.slane %v1191, 6
    %v1419 = vrot.slane %v1191, 7
    %v1420 = vrot.slane %v1194, 1
    %v1421 = vrot.slane %v1194, 2
    %v1422 = vrot.slane %v1194, 3
    %v1423 = vrot.slane %v1194, 4
    %v1424 = vrot.slane %v1194, 5
    %v1425 = vrot.slane %v1194, 6
    %v1426 = vrot.slane %v1194, 7
    %v1427 = vrot.slane %v1196, 1
    %v1428 = vrot.slane %v1196, 2
    %v1429 = vrot.slane %v1196, 3
    %v1430 = vrot.slane %v1196, 4
    %v1431 = vrot.slane %v1196, 5
    %v1432 = vrot.slane %v1196, 6
    %v1433 = vrot.slane %v1196, 7
    %v1434 = vrot.slane %v1199, 1
    %v1435 = vrot.slane %v1199, 2
    %v1436 = vrot.slane %v1199, 3
    %v1437 = vrot.slane %v1199, 4
    %v1438 = vrot.slane %v1199, 5
    %v1439 = vrot.slane %v1199, 6
    %v1440 = vrot.slane %v1199, 7
    %v1441 = vrot.slane %v1201, 1
    %v1442 = vrot.slane %v1201, 2
    %v1443 = vrot.slane %v1201, 3
    %v1444 = vrot.slane %v1201, 4
    %v1445 = vrot.slane %v1201, 5
    %v1446 = vrot.slane %v1201, 6
    %v1447 = vrot.slane %v1201, 7
    %v1448 = vrot.slane %v1204, 1
    %v1449 = vrot.slane %v1204, 2
    %v1450 = vrot.slane %v1204, 3
    %v1451 = vrot.slane %v1204, 4
    %v1452 = vrot.slane %v1204, 5
    %v1453 = vrot.slane %v1204, 6
    %v1454 = vrot.slane %v1204, 7
    %v1455 = vrot.slane %v1206, 1
    %v1456 = vrot.slane %v1206, 2
    %v1457 = vrot.slane %v1206, 3
    %v1458 = vrot.slane %v1206, 4
    %v1459 = vrot.slane %v1206, 5
    %v1460 = vrot.slane %v1206, 6
    %v1461 = vrot.slane %v1206, 7
    %v1462 = vrot.slane %v1209, 1
    %v1463 = vrot.slane %v1209, 2
    %v1464 = vrot.slane %v1209, 3
    %v1465 = vrot.slane %v1209, 4
    %v1466 = vrot.slane %v1209, 5
    %v1467 = vrot.slane %v1209, 6
    %v1468 = vrot.slane %v1209, 7
    %v1469 = vrot.slane %v1211, 1
    %v1470 = vrot.slane %v1211, 2
    %v1471 = vrot.slane %v1211, 3
    %v1472 = vrot.slane %v1211, 4
    %v1473 = vrot.slane %v1211, 5
    %v1474 = vrot.slane %v1211, 6
    %v1475 = vrot.slane %v1211, 7
    %v1476 = vrot.slane %v1214, 1
    %v1477 = vrot.slane %v1214, 2
    %v1478 = vrot.slane %v1214, 3
    %v1479 = vrot.slane %v1214, 4
    %v1480 = vrot.slane %v1214, 5
    %v1481 = vrot.slane %v1214, 6
    %v1482 = vrot.slane %v1214, 7
    %v1483 = vrot.slane %v1216, 1
    %v1484 = vrot.slane %v1216, 2
    %v1485 = vrot.slane %v1216, 3
    %v1486 = vrot.slane %v1216, 4
    %v1487 = vrot.slane %v1216, 5
    %v1488 = vrot.slane %v1216, 6
    %v1489 = vrot.slane %v1216, 7
    %v1490 = vrot.slane %v1219, 1
    %v1491 = vrot.slane %v1219, 2
    %v1492 = vrot.slane %v1219, 3
    %v1493 = vrot.slane %v1219, 4
    %v1494 = vrot.slane %v1219, 5
    %v1495 = vrot.slane %v1219, 6
    %v1496 = vrot.slane %v1219, 7
    %v1497 = vrot.slane %v1221, 1
    %v1498 = vrot.slane %v1221, 2
    %v1499 = vrot.slane %v1221, 3
    %v1500 = vrot.slane %v1221, 4
    %v1501 = vrot.slane %v1221, 5
    %v1502 = vrot.slane %v1221, 6
    %v1503 = vrot.slane %v1221, 7
    %v1504 = vrot.slane %v1224, 1
    %v1505 = vrot.slane %v1224, 2
    %v1506 = vrot.slane %v1224, 3
    %v1507 = vrot.slane %v1224, 4
    %v1508 = vrot.slane %v1224, 5
    %v1509 = vrot.slane %v1224, 6
    %v1510 = vrot.slane %v1224, 7
    %v1511 = vrot.slane %v1226, 1
    %v1512 = vrot.slane %v1226, 2
    %v1513 = vrot.slane %v1226, 3
    %v1514 = vrot.slane %v1226, 4
    %v1515 = vrot.slane %v1226, 5
    %v1516 = vrot.slane %v1226, 6
    %v1517 = vrot.slane %v1226, 7
    %v1518 = vrot.slane %v1229, 1
    %v1519 = vrot.slane %v1229, 2
    %v1520 = vrot.slane %v1229, 3
    %v1521 = vrot.slane %v1229, 4
    %v1522 = vrot.slane %v1229, 5
    %v1523 = vrot.slane %v1229, 6
    %v1524 = vrot.slane %v1229, 7
    %v1525 = vrot.slane %v1231, 1
    %v1526 = vrot.slane %v1231, 2
    %v1527 = vrot.slane %v1231, 3
    %v1528 = vrot.slane %v1231, 4
    %v1529 = vrot.slane %v1231, 5
    %v1530 = vrot.slane %v1231, 6
    %v1531 = vrot.slane %v1231, 7
    %v1532 = vrot.slane %v1234, 1
    %v1533 = vrot.slane %v1234, 2
    %v1534 = vrot.slane %v1234, 3
    %v1535 = vrot.slane %v1234, 4
    %v1536 = vrot.slane %v1234, 5
    %v1537 = vrot.slane %v1234, 6
    %v1538 = vrot.slane %v1234, 7
    %v1539 = vrot.slane %v1236, 1
    %v1540 = vrot.slane %v1236, 2
    %v1541 = vrot.slane %v1236, 3
    %v1542 = vrot.slane %v1236, 4
    %v1543 = vrot.slane %v1236, 5
    %v1544 = vrot.slane %v1236, 6
    %v1545 = vrot.slane %v1236, 7
    %v1546 = vrot.slane %v1239, 1
    %v1547 = vrot.slane %v1239, 2
    %v1548 = vrot.slane %v1239, 3
    %v1549 = vrot.slane %v1239, 4
    %v1550 = vrot.slane %v1239, 5
    %v1551 = vrot.slane %v1239, 6
    %v1552 = vrot.slane %v1239, 7
    %v1553 = vrot.slane %v1241, 1
    %v1554 = vrot.slane %v1241, 2
    %v1555 = vrot.slane %v1241, 3
    %v1556 = vrot.slane %v1241, 4
    %v1557 = vrot.slane %v1241, 5
    %v1558 = vrot.slane %v1241, 6
    %v1559 = vrot.slane %v1241, 7
    %v1560 = vrot.slane %v1244, 1
    %v1561 = vrot.slane %v1244, 2
    %v1562 = vrot.slane %v1244, 3
    %v1563 = vrot.slane %v1244, 4
    %v1564 = vrot.slane %v1244, 5
    %v1565 = vrot.slane %v1244, 6
    %v1566 = vrot.slane %v1244, 7
    %v1567 = vrot.slane %v1246, 1
    %v1568 = vrot.slane %v1246, 2
    %v1569 = vrot.slane %v1246, 3
    %v1570 = vrot.slane %v1246, 4
    %v1571 = vrot.slane %v1246, 5
    %v1572 = vrot.slane %v1246, 6
    %v1573 = vrot.slane %v1246, 7
    %v1574 = vrot.slane %v1249, 1
    %v1575 = vrot.slane %v1249, 2
    %v1576 = vrot.slane %v1249, 3
    %v1577 = vrot.slane %v1249, 4
    %v1578 = vrot.slane %v1249, 5
    %v1579 = vrot.slane %v1249, 6
    %v1580 = vrot.slane %v1249, 7
    %v1581 = vrot.slane %v1251, 1
    %v1582 = vrot.slane %v1251, 2
    %v1583 = vrot.slane %v1251, 3
    %v1584 = vrot.slane %v1251, 4
    %v1585 = vrot.slane %v1251, 5
    %v1586 = vrot.slane %v1251, 6
    %v1587 = vrot.slane %v1251, 7
    %v1588 = vrot.slane %v1254, 1
    %v1589 = vrot.slane %v1254, 2
    %v1590 = vrot.slane %v1254, 3
    %v1591 = vrot.slane %v1254, 4
    %v1592 = vrot.slane %v1254, 5
    %v1593 = vrot.slane %v1254, 6
    %v1594 = vrot.slane %v1254, 7
    %v1595 = vrot.slane %v1256, 1
    %v1596 = vrot.slane %v1256, 2
    %v1597 = vrot.slane %v1256, 3
    %v1598 = vrot.slane %v1256, 4
    %v1599 = vrot.slane %v1256, 5
    %v1600 = vrot.slane %v1256, 6
    %v1601 = vrot.slane %v1256, 7
    %v1602 = vrot.slane %v1259, 1
    %v1603 = vrot.slane %v1259, 2
    %v1604 = vrot.slane %v1259, 3
    %v1605 = vrot.slane %v1259, 4
    %v1606 = vrot.slane %v1259, 5
    %v1607 = vrot.slane %v1259, 6
    %v1608 = vrot.slane %v1259, 7
    %v1609 = vrot.slane %v1261, 1
    %v1610 = vrot.slane %v1261, 2
    %v1611 = vrot.slane %v1261, 3
    %v1612 = vrot.slane %v1261, 4
    %v1613 = vrot.slane %v1261, 5
    %v1614 = vrot.slane %v1261, 6
    %v1615 = vrot.slane %v1261, 7
    %v1616 = vrot.slane %v1264, 1
    %v1617 = vrot.slane %v1264, 2
    %v1618 = vrot.slane %v1264, 3
    %v1619 = vrot.slane %v1264, 4
    %v1620 = vrot.slane %v1264, 5
    %v1621 = vrot.slane %v1264, 6
    %v1622 = vrot.slane %v1264, 7
    %v1623 = vrot.slane %v1266, 1
    %v1624 = vrot.slane %v1266, 2
    %v1625 = vrot.slane %v1266, 3
    %v1626 = vrot.slane %v1266, 4
    %v1627 = vrot.slane %v1266, 5
    %v1628 = vrot.slane %v1266, 6
    %v1629 = vrot.slane %v1266, 7
    %v1630 = vrot.slane %v1269, 1
    %v1631 = vrot.slane %v1269, 2
    %v1632 = vrot.slane %v1269, 3
    %v1633 = vrot.slane %v1269, 4
    %v1634 = vrot.slane %v1269, 5
    %v1635 = vrot.slane %v1269, 6
    %v1636 = vrot.slane %v1269, 7
    %v1637 = vrot.slane %v1271, 1
    %v1638 = vrot.slane %v1271, 2
    %v1639 = vrot.slane %v1271, 3
    %v1640 = vrot.slane %v1271, 4
    %v1641 = vrot.slane %v1271, 5
    %v1642 = vrot.slane %v1271, 6
    %v1643 = vrot.slane %v1271, 7
    %v1644 = vrot.slane %v1274, 1
    %v1645 = vrot.slane %v1274, 2
    %v1646 = vrot.slane %v1274, 3
    %v1647 = vrot.slane %v1274, 4
    %v1648 = vrot.slane %v1274, 5
    %v1649 = vrot.slane %v1274, 6
    %v1650 = vrot.slane %v1274, 7
    %v1651 = vrot.slane %v1276, 1
    %v1652 = vrot.slane %v1276, 2
    %v1653 = vrot.slane %v1276, 3
    %v1654 = vrot.slane %v1276, 4
    %v1655 = vrot.slane %v1276, 5
    %v1656 = vrot.slane %v1276, 6
    %v1657 = vrot.slane %v1276, 7
    %v1658 = vrot.slane %v1279, 1
    %v1659 = vrot.slane %v1279, 2
    %v1660 = vrot.slane %v1279, 3
    %v1661 = vrot.slane %v1279, 4
    %v1662 = vrot.slane %v1279, 5
    %v1663 = vrot.slane %v1279, 6
    %v1664 = vrot.slane %v1279, 7
    %v1665 = vrot.slane %v1281, 1
    %v1666 = vrot.slane %v1281, 2
    %v1667 = vrot.slane %v1281, 3
    %v1668 = vrot.slane %v1281, 4
    %v1669 = vrot.slane %v1281, 5
    %v1670 = vrot.slane %v1281, 6
    %v1671 = vrot.slane %v1281, 7
    %v1672 = vrot.slane %v1284, 1
    %v1673 = vrot.slane %v1284, 2
    %v1674 = vrot.slane %v1284, 3
    %v1675 = vrot.slane %v1284, 4
    %v1676 = vrot.slane %v1284, 5
    %v1677 = vrot.slane %v1284, 6
    %v1678 = vrot.slane %v1284, 7
    %v1679 = vld [vmem:[%s1] sm:$0xf]
    %1680 = vst [vmem:[#allocation1] ss:$9 sm:$0xff] %v1164
    %s1681 = scalar_lea.vmem [#allocation1], 1
    %1682 = vst [vmem:[%s1681] ss:$9 sm:$0xff] %v1336
    %s1683 = scalar_lea.vmem [#allocation1], 2
    %1684 = vst [vmem:[%s1683] ss:$9 sm:$0xff] %v1337
    %s1685 = scalar_lea.vmem [#allocation1], 3
    %1686 = vst [vmem:[%s1685] ss:$9 sm:$0xff] %v1338
    %s1687 = scalar_lea.vmem [#allocation1], 4
    %1688 = vst [vmem:[%s1687] ss:$9 sm:$0xff] %v1339
    %s1689 = scalar_lea.vmem [#allocation1], 5
    %1690 = vst [vmem:[%s1689] ss:$9 sm:$0xff] %v1340
    %s1691 = scalar_lea.vmem [#allocation1], 6
    %1692 = vst [vmem:[%s1691] ss:$9 sm:$0xff] %v1341
    %s1693 = scalar_lea.vmem [#allocation1], 7
    %1694 = vst [vmem:[%s1693] ss:$9 sm:$0xff] %v1342
    %v1695 = vld [vmem:[#allocation1] sm:$0xff]
    %1696 = vst [vmem:[#allocation1] ss:$9 sm:$0xff] %v1166
    %1697 = vst [vmem:[%s1681] ss:$9 sm:$0xff] %v1343
    %1698 = vst [vmem:[%s1683] ss:$9 sm:$0xff] %v1344
    %1699 = vst [vmem:[%s1685] ss:$9 sm:$0xff] %v1345
    %1700 = vst [vmem:[%s1687] ss:$9 sm:$0xff] %v1346
    %1701 = vst [vmem:[%s1689] ss:$9 sm:$0xff] %v1347
    %1702 = vst [vmem:[%s1691] ss:$9 sm:$0xff] %v1348
    %1703 = vst [vmem:[%s1693] ss:$9 sm:$0xff] %v1349
    %v1704 = vld [vmem:[#allocation1] sm:$0xff]
    %1705 = vst [vmem:[#allocation1] ss:$9 sm:$0xff] %v1169
    %1706 = vst [vmem:[%s1681] ss:$9 sm:$0xff] %v1350
    %1707 = vst [vmem:[%s1683] ss:$9 sm:$0xff] %v1351
    %1708 = vst [vmem:[%s1685] ss:$9 sm:$0xff] %v1352
    %1709 = vst [vmem:[%s1687] ss:$9 sm:$0xff] %v1353
    %1710 = vst [vmem:[%s1689] ss:$9 sm:$0xff] %v1354
    %1711 = vst [vmem:[%s1691] ss:$9 sm:$0xff] %v1355
    %1712 = vst [vmem:[%s1693] ss:$9 sm:$0xff] %v1356
    %v1713 = vld [vmem:[#allocation1] sm:$0xff]
    %1714 = vst [vmem:[#allocation1] ss:$9 sm:$0xff] %v1171
    %1715 = vst [vmem:[%s1681] ss:$9 sm:$0xff] %v1357
    %1716 = vst [vmem:[%s1683] ss:$9 sm:$0xff] %v1358
    %1717 = vst [vmem:[%s1685] ss:$9 sm:$0xff] %v1359
    %1718 = vst [vmem:[%s1687] ss:$9 sm:$0xff] %v1360
    %1719 = vst [vmem:[%s1689] ss:$9 sm:$0xff] %v1361
    %1720 = vst [vmem:[%s1691] ss:$9 sm:$0xff] %v1362
    %1721 = vst [vmem:[%s1693] ss:$9 sm:$0xff] %v1363
    %v1722 = vld [vmem:[#allocation1] sm:$0xff]
    %1723 = vst [vmem:[#allocation1] ss:$9 sm:$0xff] %v1174
    %1724 = vst [vmem:[%s1681] ss:$9 sm:$0xff] %v1364
    %1725 = vst [vmem:[%s1683] ss:$9 sm:$0xff] %v1365
    %1726 = vst [vmem:[%s1685] ss:$9 sm:$0xff] %v1366
    %1727 = vst [vmem:[%s1687] ss:$9 sm:$0xff] %v1367
    %1728 = vst [vmem:[%s1689] ss:$9 sm:$0xff] %v1368
    %1729 = vst [vmem:[%s1691] ss:$9 sm:$0xff] %v1369
    %1730 = vst [vmem:[%s1693] ss:$9 sm:$0xff] %v1370
    %v1731 = vld [vmem:[#allocation1] sm:$0xff]
    %1732 = vst [vmem:[#allocation1] ss:$9 sm:$0xff] %v1176
    %1733 = vst [vmem:[%s1681] ss:$9 sm:$0xff] %v1371
    %1734 = vst [vmem:[%s1683] ss:$9 sm:$0xff] %v1372
    %1735 = vst [vmem:[%s1685] ss:$9 sm:$0xff] %v1373
    %1736 = vst [vmem:[%s1687] ss:$9 sm:$0xff] %v1374
    %1737 = vst [vmem:[%s1689] ss:$9 sm:$0xff] %v1375
    %1738 = vst [vmem:[%s1691] ss:$9 sm:$0xff] %v1376
    %1739 = vst [vmem:[%s1693] ss:$9 sm:$0xff] %v1377
    %v1740 = vld [vmem:[#allocation1] sm:$0xff]
    %1741 = vst [vmem:[#allocation1] ss:$9 sm:$0xff] %v1179
    %v1742 = vld [vmem:[#allocation1] sm:$0xff]
    %vm1749 = vcmask 400384
    %v1751 = vsel %vm1749, %v1679, 0
    %vm1753 = vcmask 1040384
    %v1754 = vsel %vm1753, %v1742, 0
    %1756 = vmatpush.msra.mxu0 0.0
    %1757 = vmatpush.msra.mxu0 0.0
    %1758 = vmatpush.msra.mxu0 0.0
    %1759 = vmatpush.msra.mxu0 0.0
    %1760 = vmatpush.msra.mxu0 0.0
    %1761 = vmatpush.msra.mxu0 0.0
    %1762 = vmatpush.msra.mxu0 0.0
    %1763 = vmatpush.msra.mxu0 0.0
    %1764 = vmatpush.msra.mxu0 0.0
    %1765 = vmatpush.msra.mxu0 %v1754
    %1766 = vmatpush.msra.mxu0 %v1740
    %1767 = vmatpush.msra.mxu0 %v1731
    %1768 = vmatpush.msra.mxu0 %v1722
    %1769 = vmatpush.msra.mxu0 %v1713
    %1770 = vmatpush.msra.mxu0 %v1704
    %1771 = vmatpush.msra.mxu0 %v1695
    %1772 = vmatmul.f32.gmra.mxu0 %v1751
    %v1773 = vpop.f32.mrf.mxu0
    %v1774 = vadd.f32 0.0, %v1773
    %1775 = vdwg.mxu0
    %1776 = vst [vmem:[#allocation1] ss:$9 sm:$0xff] %v1378
    %s1777 = scalar_lea.vmem [#allocation1], 1
    %1778 = vst [vmem:[%s1777] ss:$9 sm:$0xff] %v1379
    %s1779 = scalar_lea.vmem [#allocation1], 2
    %1780 = vst [vmem:[%s1779] ss:$9 sm:$0xff] %v1380
    %s1781 = scalar_lea.vmem [#allocation1], 3
    %1782 = vst [vmem:[%s1781] ss:$9 sm:$0xff] %v1381
    %s1783 = scalar_lea.vmem [#allocation1], 4
    %1784 = vst [vmem:[%s1783] ss:$9 sm:$0xff] %v1382
    %s1785 = scalar_lea.vmem [#allocation1], 5
    %1786 = vst [vmem:[%s1785] ss:$9 sm:$0xff] %v1383
    %s1787 = scalar_lea.vmem [#allocation1], 6
    %1788 = vst [vmem:[%s1787] ss:$9 sm:$0xff] %v1384
    %s1789 = scalar_lea.vmem [#allocation1], 7
    %1790 = vst [vmem:[%s1789] ss:$9 sm:$0xff] %v1181
    %v1791 = vld [vmem:[#allocation1] sm:$0xff]
    %1792 = vst [vmem:[#allocation1] ss:$9 sm:$0xff] %v1385
    %1793 = vst [vmem:[%s1777] ss:$9 sm:$0xff] %v1386
    %1794 = vst [vmem:[%s1779] ss:$9 sm:$0xff] %v1387
    %1795 = vst [vmem:[%s1781] ss:$9 sm:$0xff] %v1388
    %1796 = vst [vmem:[%s1783] ss:$9 sm:$0xff] %v1389
    %1797 = vst [vmem:[%s1785] ss:$9 sm:$0xff] %v1390
    %1798 = vst [vmem:[%s1787] ss:$9 sm:$0xff] %v1391
    %1799 = vst [vmem:[%s1789] ss:$9 sm:$0xff] %v1184
    %v1800 = vld [vmem:[#allocation1] sm:$0xff]
    %1801 = vst [vmem:[#allocation1] ss:$9 sm:$0xff] %v1392
    %1802 = vst [vmem:[%s1777] ss:$9 sm:$0xff] %v1393
    %1803 = vst [vmem:[%s1779] ss:$9 sm:$0xff] %v1394
    %1804 = vst [vmem:[%s1781] ss:$9 sm:$0xff] %v1395
    %1805 = vst [vmem:[%s1783] ss:$9 sm:$0xff] %v1396
    %1806 = vst [vmem:[%s1785] ss:$9 sm:$0xff] %v1397
    %1807 = vst [vmem:[%s1787] ss:$9 sm:$0xff] %v1398
    %1808 = vst [vmem:[%s1789] ss:$9 sm:$0xff] %v1186
    %v1809 = vld [vmem:[#allocation1] sm:$0xff]
    %1810 = vst [vmem:[#allocation1] ss:$9 sm:$0xff] %v1399
    %1811 = vst [vmem:[%s1777] ss:$9 sm:$0xff] %v1400
    %1812 = vst [vmem:[%s1779] ss:$9 sm:$0xff] %v1401
    %1813 = vst [vmem:[%s1781] ss:$9 sm:$0xff] %v1402
    %1814 = vst [vmem:[%s1783] ss:$9 sm:$0xff] %v1403
    %1815 = vst [vmem:[%s1785] ss:$9 sm:$0xff] %v1404
    %1816 = vst [vmem:[%s1787] ss:$9 sm:$0xff] %v1405
    %1817 = vst [vmem:[%s1789] ss:$9 sm:$0xff] %v1189
    %v1818 = vld [vmem:[#allocation1] sm:$0xff]
    %1819 = vst [vmem:[#allocation1] ss:$9 sm:$0xff] %v1406
    %1820 = vst [vmem:[%s1777] ss:$9 sm:$0xff] %v1407
    %1821 = vst [vmem:[%s1779] ss:$9 sm:$0xff] %v1408
    %1822 = vst [vmem:[%s1781] ss:$9 sm:$0xff] %v1409
    %1823 = vst [vmem:[%s1783] ss:$9 sm:$0xff] %v1410
    %1824 = vst [vmem:[%s1785] ss:$9 sm:$0xff] %v1411
    %1825 = vst [vmem:[%s1787] ss:$9 sm:$0xff] %v1412
    %1826 = vst [vmem:[%s1789] ss:$9 sm:$0xff] %v1191
    %v1827 = vld [vmem:[#allocation1] sm:$0xff]
    %1828 = vst [vmem:[#allocation1] ss:$9 sm:$0xff] %v1413
    %1829 = vst [vmem:[%s1777] ss:$9 sm:$0xff] %v1414
    %1830 = vst [vmem:[%s1779] ss:$9 sm:$0xff] %v1415
    %1831 = vst [vmem:[%s1781] ss:$9 sm:$0xff] %v1416
    %1832 = vst [vmem:[%s1783] ss:$9 sm:$0xff] %v1417
    %1833 = vst [vmem:[%s1785] ss:$9 sm:$0xff] %v1418
    %1834 = vst [vmem:[%s1787] ss:$9 sm:$0xff] %v1419
    %1835 = vst [vmem:[%s1789] ss:$9 sm:$0xff] %v1194
    %v1836 = vld [vmem:[#allocation1] sm:$0xff]
    %1837 = vst [vmem:[#allocation1] ss:$9 sm:$0xff] %v1420
    %v1838 = vld [vmem:[#allocation1] sm:$0xff]
    %v1845 = vsel %vm1753, %v1838, 0
    %1847 = vmatpush.msra.mxu0 0.0
    %1848 = vmatpush.msra.mxu0 0.0
    %1849 = vmatpush.msra.mxu0 0.0
    %1850 = vmatpush.msra.mxu0 0.0
    %1851 = vmatpush.msra.mxu0 0.0
    %1852 = vmatpush.msra.mxu0 0.0
    %1853 = vmatpush.msra.mxu0 0.0
    %1854 = vmatpush.msra.mxu0 0.0
    %1855 = vmatpush.msra.mxu0 0.0
    %1856 = vmatpush.msra.mxu0 %v1845
    %1857 = vmatpush.msra.mxu0 %v1836
    %1858 = vmatpush.msra.mxu0 %v1827
    %1859 = vmatpush.msra.mxu0 %v1818
    %1860 = vmatpush.msra.mxu0 %v1809
    %1861 = vmatpush.msra.mxu0 %v1800
    %1862 = vmatpush.msra.mxu0 %v1791
    %1863 = vmatmul.f32.gmra.mxu0 %v1751
    %v1864 = vpop.f32.mrf.mxu0
    %v1865 = vadd.f32 0.0, %v1864
    %1866 = vdwg.mxu0
    %1867 = vst [vmem:[#allocation1] ss:$9 sm:$0xff] %v1421
    %s1868 = scalar_lea.vmem [#allocation1], 1
    %1869 = vst [vmem:[%s1868] ss:$9 sm:$0xff] %v1422
    %s1870 = scalar_lea.vmem [#allocation1], 2
    %1871 = vst [vmem:[%s1870] ss:$9 sm:$0xff] %v1423
    %s1872 = scalar_lea.vmem [#allocation1], 3
    %1873 = vst [vmem:[%s1872] ss:$9 sm:$0xff] %v1424
    %s1874 = scalar_lea.vmem [#allocation1], 4
    %1875 = vst [vmem:[%s1874] ss:$9 sm:$0xff] %v1425
    %s1876 = scalar_lea.vmem [#allocation1], 5
    %1877 = vst [vmem:[%s1876] ss:$9 sm:$0xff] %v1426
    %s1878 = scalar_lea.vmem [#allocation1], 6
    %1879 = vst [vmem:[%s1878] ss:$9 sm:$0xff] %v1196
    %s1880 = scalar_lea.vmem [#allocation1], 7
    %1881 = vst [vmem:[%s1880] ss:$9 sm:$0xff] %v1427
    %v1882 = vld [vmem:[#allocation1] sm:$0xff]
    %1883 = vst [vmem:[#allocation1] ss:$9 sm:$0xff] %v1428
    %1884 = vst [vmem:[%s1868] ss:$9 sm:$0xff] %v1429
    %1885 = vst [vmem:[%s1870] ss:$9 sm:$0xff] %v1430
    %1886 = vst [vmem:[%s1872] ss:$9 sm:$0xff] %v1431
    %1887 = vst [vmem:[%s1874] ss:$9 sm:$0xff] %v1432
    %1888 = vst [vmem:[%s1876] ss:$9 sm:$0xff] %v1433
    %1889 = vst [vmem:[%s1878] ss:$9 sm:$0xff] %v1199
    %1890 = vst [vmem:[%s1880] ss:$9 sm:$0xff] %v1434
    %v1891 = vld [vmem:[#allocation1] sm:$0xff]
    %1892 = vst [vmem:[#allocation1] ss:$9 sm:$0xff] %v1435
    %1893 = vst [vmem:[%s1868] ss:$9 sm:$0xff] %v1436
    %1894 = vst [vmem:[%s1870] ss:$9 sm:$0xff] %v1437
    %1895 = vst [vmem:[%s1872] ss:$9 sm:$0xff] %v1438
    %1896 = vst [vmem:[%s1874] ss:$9 sm:$0xff] %v1439
    %1897 = vst [vmem:[%s1876] ss:$9 sm:$0xff] %v1440
    %1898 = vst [vmem:[%s1878] ss:$9 sm:$0xff] %v1201
    %1899 = vst [vmem:[%s1880] ss:$9 sm:$0xff] %v1441
    %v1900 = vld [vmem:[#allocation1] sm:$0xff]
    %1901 = vst [vmem:[#allocation1] ss:$9 sm:$0xff] %v1442
    %1902 = vst [vmem:[%s1868] ss:$9 sm:$0xff] %v1443
    %1903 = vst [vmem:[%s1870] ss:$9 sm:$0xff] %v1444
    %1904 = vst [vmem:[%s1872] ss:$9 sm:$0xff] %v1445
    %1905 = vst [vmem:[%s1874] ss:$9 sm:$0xff] %v1446
    %1906 = vst [vmem:[%s1876] ss:$9 sm:$0xff] %v1447
    %1907 = vst [vmem:[%s1878] ss:$9 sm:$0xff] %v1204
    %1908 = vst [vmem:[%s1880] ss:$9 sm:$0xff] %v1448
    %v1909 = vld [vmem:[#allocation1] sm:$0xff]
    %1910 = vst [vmem:[#allocation1] ss:$9 sm:$0xff] %v1449
    %1911 = vst [vmem:[%s1868] ss:$9 sm:$0xff] %v1450
    %1912 = vst [vmem:[%s1870] ss:$9 sm:$0xff] %v1451
    %1913 = vst [vmem:[%s1872] ss:$9 sm:$0xff] %v1452
    %1914 = vst [vmem:[%s1874] ss:$9 sm:$0xff] %v1453
    %1915 = vst [vmem:[%s1876] ss:$9 sm:$0xff] %v1454
    %1916 = vst [vmem:[%s1878] ss:$9 sm:$0xff] %v1206
    %1917 = vst [vmem:[%s1880] ss:$9 sm:$0xff] %v1455
    %v1918 = vld [vmem:[#allocation1] sm:$0xff]
    %1919 = vst [vmem:[#allocation1] ss:$9 sm:$0xff] %v1456
    %1920 = vst [vmem:[%s1868] ss:$9 sm:$0xff] %v1457
    %1921 = vst [vmem:[%s1870] ss:$9 sm:$0xff] %v1458
    %1922 = vst [vmem:[%s1872] ss:$9 sm:$0xff] %v1459
    %1923 = vst [vmem:[%s1874] ss:$9 sm:$0xff] %v1460
    %1924 = vst [vmem:[%s1876] ss:$9 sm:$0xff] %v1461
    %1925 = vst [vmem:[%s1878] ss:$9 sm:$0xff] %v1209
    %1926 = vst [vmem:[%s1880] ss:$9 sm:$0xff] %v1462
    %v1927 = vld [vmem:[#allocation1] sm:$0xff]
    %1928 = vst [vmem:[#allocation1] ss:$9 sm:$0xff] %v1463
    %v1929 = vld [vmem:[#allocation1] sm:$0xff]
    %v1936 = vsel %vm1753, %v1929, 0
    %1938 = vmatpush.msra.mxu0 0.0
    %1939 = vmatpush.msra.mxu0 0.0
    %1940 = vmatpush.msra.mxu0 0.0
    %1941 = vmatpush.msra.mxu0 0.0
    %1942 = vmatpush.msra.mxu0 0.0
    %1943 = vmatpush.msra.mxu0 0.0
    %1944 = vmatpush.msra.mxu0 0.0
    %1945 = vmatpush.msra.mxu0 0.0
    %1946 = vmatpush.msra.mxu0 0.0
    %1947 = vmatpush.msra.mxu0 %v1936
    %1948 = vmatpush.msra.mxu0 %v1927
    %1949 = vmatpush.msra.mxu0 %v1918
    %1950 = vmatpush.msra.mxu0 %v1909
    %1951 = vmatpush.msra.mxu0 %v1900
    %1952 = vmatpush.msra.mxu0 %v1891
    %1953 = vmatpush.msra.mxu0 %v1882
    %1954 = vmatmul.f32.gmra.mxu0 %v1751
    %v1955 = vpop.f32.mrf.mxu0
    %v1956 = vadd.f32 0.0, %v1955
    %1957 = vdwg.mxu0
    %1958 = vst [vmem:[#allocation1] ss:$9 sm:$0xff] %v1464
    %s1959 = scalar_lea.vmem [#allocation1], 1
    %1960 = vst [vmem:[%s1959] ss:$9 sm:$0xff] %v1465
    %s1961 = scalar_lea.vmem [#allocation1], 2
    %1962 = vst [vmem:[%s1961] ss:$9 sm:$0xff] %v1466
    %s1963 = scalar_lea.vmem [#allocation1], 3
    %1964 = vst [vmem:[%s1963] ss:$9 sm:$0xff] %v1467
    %s1965 = scalar_lea.vmem [#allocation1], 4
    %1966 = vst [vmem:[%s1965] ss:$9 sm:$0xff] %v1468
    %s1967 = scalar_lea.vmem [#allocation1], 5
    %1968 = vst [vmem:[%s1967] ss:$9 sm:$0xff] %v1211
    %s1969 = scalar_lea.vmem [#allocation1], 6
    %1970 = vst [vmem:[%s1969] ss:$9 sm:$0xff] %v1469
    %s1971 = scalar_lea.vmem [#allocation1], 7
    %1972 = vst [vmem:[%s1971] ss:$9 sm:$0xff] %v1470
    %v1973 = vld [vmem:[#allocation1] sm:$0xff]
    %1974 = vst [vmem:[#allocation1] ss:$9 sm:$0xff] %v1471
    %1975 = vst [vmem:[%s1959] ss:$9 sm:$0xff] %v1472
    %1976 = vst [vmem:[%s1961] ss:$9 sm:$0xff] %v1473
    %1977 = vst [vmem:[%s1963] ss:$9 sm:$0xff] %v1474
    %1978 = vst [vmem:[%s1965] ss:$9 sm:$0xff] %v1475
    %1979 = vst [vmem:[%s1967] ss:$9 sm:$0xff] %v1214
    %1980 = vst [vmem:[%s1969] ss:$9 sm:$0xff] %v1476
    %1981 = vst [vmem:[%s1971] ss:$9 sm:$0xff] %v1477
    %v1982 = vld [vmem:[#allocation1] sm:$0xff]
    %1983 = vst [vmem:[#allocation1] ss:$9 sm:$0xff] %v1478
    %1984 = vst [vmem:[%s1959] ss:$9 sm:$0xff] %v1479
    %1985 = vst [vmem:[%s1961] ss:$9 sm:$0xff] %v1480
    %1986 = vst [vmem:[%s1963] ss:$9 sm:$0xff] %v1481
    %1987 = vst [vmem:[%s1965] ss:$9 sm:$0xff] %v1482
    %1988 = vst [vmem:[%s1967] ss:$9 sm:$0xff] %v1216
    %1989 = vst [vmem:[%s1969] ss:$9 sm:$0xff] %v1483
    %1990 = vst [vmem:[%s1971] ss:$9 sm:$0xff] %v1484
    %v1991 = vld [vmem:[#allocation1] sm:$0xff]
    %1992 = vst [vmem:[#allocation1] ss:$9 sm:$0xff] %v1485
    %1993 = vst [vmem:[%s1959] ss:$9 sm:$0xff] %v1486
    %1994 = vst [vmem:[%s1961] ss:$9 sm:$0xff] %v1487
    %1995 = vst [vmem:[%s1963] ss:$9 sm:$0xff] %v1488
    %1996 = vst [vmem:[%s1965] ss:$9 sm:$0xff] %v1489
    %1997 = vst [vmem:[%s1967] ss:$9 sm:$0xff] %v1219
    %1998 = vst [vmem:[%s1969] ss:$9 sm:$0xff] %v1490
    %1999 = vst [vmem:[%s1971] ss:$9 sm:$0xff] %v1491
    %v2000 = vld [vmem:[#allocation1] sm:$0xff]
    %2001 = vst [vmem:[#allocation1] ss:$9 sm:$0xff] %v1492
    %2002 = vst [vmem:[%s1959] ss:$9 sm:$0xff] %v1493
    %2003 = vst [vmem:[%s1961] ss:$9 sm:$0xff] %v1494
    %2004 = vst [vmem:[%s1963] ss:$9 sm:$0xff] %v1495
    %2005 = vst [vmem:[%s1965] ss:$9 sm:$0xff] %v1496
    %2006 = vst [vmem:[%s1967] ss:$9 sm:$0xff] %v1221
    %2007 = vst [vmem:[%s1969] ss:$9 sm:$0xff] %v1497
    %2008 = vst [vmem:[%s1971] ss:$9 sm:$0xff] %v1498
    %v2009 = vld [vmem:[#allocation1] sm:$0xff]
    %2010 = vst [vmem:[#allocation1] ss:$9 sm:$0xff] %v1499
    %2011 = vst [vmem:[%s1959] ss:$9 sm:$0xff] %v1500
    %2012 = vst [vmem:[%s1961] ss:$9 sm:$0xff] %v1501
    %2013 = vst [vmem:[%s1963] ss:$9 sm:$0xff] %v1502
    %2014 = vst [vmem:[%s1965] ss:$9 sm:$0xff] %v1503
    %2015 = vst [vmem:[%s1967] ss:$9 sm:$0xff] %v1224
    %2016 = vst [vmem:[%s1969] ss:$9 sm:$0xff] %v1504
    %2017 = vst [vmem:[%s1971] ss:$9 sm:$0xff] %v1505
    %v2018 = vld [vmem:[#allocation1] sm:$0xff]
    %2019 = vst [vmem:[#allocation1] ss:$9 sm:$0xff] %v1506
    %v2020 = vld [vmem:[#allocation1] sm:$0xff]
    %v2027 = vsel %vm1753, %v2020, 0
    %2029 = vmatpush.msra.mxu0 0.0
    %2030 = vmatpush.msra.mxu0 0.0
    %2031 = vmatpush.msra.mxu0 0.0
    %2032 = vmatpush.msra.mxu0 0.0
    %2033 = vmatpush.msra.mxu0 0.0
    %2034 = vmatpush.msra.mxu0 0.0
    %2035 = vmatpush.msra.mxu0 0.0
    %2036 = vmatpush.msra.mxu0 0.0
    %2037 = vmatpush.msra.mxu0 0.0
    %2038 = vmatpush.msra.mxu0 %v2027
    %2039 = vmatpush.msra.mxu0 %v2018
    %2040 = vmatpush.msra.mxu0 %v2009
    %2041 = vmatpush.msra.mxu0 %v2000
    %2042 = vmatpush.msra.mxu0 %v1991
    %2043 = vmatpush.msra.mxu0 %v1982
    %2044 = vmatpush.msra.mxu0 %v1973
    %2045 = vmatmul.f32.gmra.mxu0 %v1751
    %v2046 = vpop.f32.mrf.mxu0
    %v2047 = vadd.f32 0.0, %v2046
    %2048 = vdwg.mxu0
    %2049 = vst [vmem:[#allocation1] ss:$9 sm:$0xff] %v1507
    %s2050 = scalar_lea.vmem [#allocation1], 1
    %2051 = vst [vmem:[%s2050] ss:$9 sm:$0xff] %v1508
    %s2052 = scalar_lea.vmem [#allocation1], 2
    %2053 = vst [vmem:[%s2052] ss:$9 sm:$0xff] %v1509
    %s2054 = scalar_lea.vmem [#allocation1], 3
    %2055 = vst [vmem:[%s2054] ss:$9 sm:$0xff] %v1510
    %s2056 = scalar_lea.vmem [#allocation1], 4
    %2057 = vst [vmem:[%s2056] ss:$9 sm:$0xff] %v1226
    %s2058 = scalar_lea.vmem [#allocation1], 5
    %2059 = vst [vmem:[%s2058] ss:$9 sm:$0xff] %v1511
    %s2060 = scalar_lea.vmem [#allocation1], 6
    %2061 = vst [vmem:[%s2060] ss:$9 sm:$0xff] %v1512
    %s2062 = scalar_lea.vmem [#allocation1], 7
    %2063 = vst [vmem:[%s2062] ss:$9 sm:$0xff] %v1513
    %v2064 = vld [vmem:[#allocation1] sm:$0xff]
    %2065 = vst [vmem:[#allocation1] ss:$9 sm:$0xff] %v1514
    %2066 = vst [vmem:[%s2050] ss:$9 sm:$0xff] %v1515
    %2067 = vst [vmem:[%s2052] ss:$9 sm:$0xff] %v1516
    %2068 = vst [vmem:[%s2054] ss:$9 sm:$0xff] %v1517
    %2069 = vst [vmem:[%s2056] ss:$9 sm:$0xff] %v1229
    %2070 = vst [vmem:[%s2058] ss:$9 sm:$0xff] %v1518
    %2071 = vst [vmem:[%s2060] ss:$9 sm:$0xff] %v1519
    %2072 = vst [vmem:[%s2062] ss:$9 sm:$0xff] %v1520
    %v2073 = vld [vmem:[#allocation1] sm:$0xff]
    %2074 = vst [vmem:[#allocation1] ss:$9 sm:$0xff] %v1521
    %2075 = vst [vmem:[%s2050] ss:$9 sm:$0xff] %v1522
    %2076 = vst [vmem:[%s2052] ss:$9 sm:$0xff] %v1523
    %2077 = vst [vmem:[%s2054] ss:$9 sm:$0xff] %v1524
    %2078 = vst [vmem:[%s2056] ss:$9 sm:$0xff] %v1231
    %2079 = vst [vmem:[%s2058] ss:$9 sm:$0xff] %v1525
    %2080 = vst [vmem:[%s2060] ss:$9 sm:$0xff] %v1526
    %2081 = vst [vmem:[%s2062] ss:$9 sm:$0xff] %v1527
    %v2082 = vld [vmem:[#allocation1] sm:$0xff]
    %2083 = vst [vmem:[#allocation1] ss:$9 sm:$0xff] %v1528
    %2084 = vst [vmem:[%s2050] ss:$9 sm:$0xff] %v1529
    %2085 = vst [vmem:[%s2052] ss:$9 sm:$0xff] %v1530
    %2086 = vst [vmem:[%s2054] ss:$9 sm:$0xff] %v1531
    %2087 = vst [vmem:[%s2056] ss:$9 sm:$0xff] %v1234
    %2088 = vst [vmem:[%s2058] ss:$9 sm:$0xff] %v1532
    %2089 = vst [vmem:[%s2060] ss:$9 sm:$0xff] %v1533
    %2090 = vst [vmem:[%s2062] ss:$9 sm:$0xff] %v1534
    %v2091 = vld [vmem:[#allocation1] sm:$0xff]
    %2092 = vst [vmem:[#allocation1] ss:$9 sm:$0xff] %v1535
    %2093 = vst [vmem:[%s2050] ss:$9 sm:$0xff] %v1536
    %2094 = vst [vmem:[%s2052] ss:$9 sm:$0xff] %v1537
    %2095 = vst [vmem:[%s2054] ss:$9 sm:$0xff] %v1538
    %2096 = vst [vmem:[%s2056] ss:$9 sm:$0xff] %v1236
    %2097 = vst [vmem:[%s2058] ss:$9 sm:$0xff] %v1539
    %2098 = vst [vmem:[%s2060] ss:$9 sm:$0xff] %v1540
    %2099 = vst [vmem:[%s2062] ss:$9 sm:$0xff] %v1541
    %v2100 = vld [vmem:[#allocation1] sm:$0xff]
    %2101 = vst [vmem:[#allocation1] ss:$9 sm:$0xff] %v1542
    %2102 = vst [vmem:[%s2050] ss:$9 sm:$0xff] %v1543
    %2103 = vst [vmem:[%s2052] ss:$9 sm:$0xff] %v1544
    %2104 = vst [vmem:[%s2054] ss:$9 sm:$0xff] %v1545
    %2105 = vst [vmem:[%s2056] ss:$9 sm:$0xff] %v1239
    %2106 = vst [vmem:[%s2058] ss:$9 sm:$0xff] %v1546
    %2107 = vst [vmem:[%s2060] ss:$9 sm:$0xff] %v1547
    %2108 = vst [vmem:[%s2062] ss:$9 sm:$0xff] %v1548
    %v2109 = vld [vmem:[#allocation1] sm:$0xff]
    %2110 = vst [vmem:[#allocation1] ss:$9 sm:$0xff] %v1549
    %v2111 = vld [vmem:[#allocation1] sm:$0xff]
    %v2118 = vsel %vm1753, %v2111, 0
    %2120 = vmatpush.msra.mxu0 0.0
    %2121 = vmatpush.msra.mxu0 0.0
    %2122 = vmatpush.msra.mxu0 0.0
    %2123 = vmatpush.msra.mxu0 0.0
    %2124 = vmatpush.msra.mxu0 0.0
    %2125 = vmatpush.msra.mxu0 0.0
    %2126 = vmatpush.msra.mxu0 0.0
    %2127 = vmatpush.msra.mxu0 0.0
    %2128 = vmatpush.msra.mxu0 0.0
    %2129 = vmatpush.msra.mxu0 %v2118
    %2130 = vmatpush.msra.mxu0 %v2109
    %2131 = vmatpush.msra.mxu0 %v2100
    %2132 = vmatpush.msra.mxu0 %v2091
    %2133 = vmatpush.msra.mxu0 %v2082
    %2134 = vmatpush.msra.mxu0 %v2073
    %2135 = vmatpush.msra.mxu0 %v2064
    %2136 = vmatmul.f32.gmra.mxu0 %v1751
    %v2137 = vpop.f32.mrf.mxu0
    %v2138 = vadd.f32 0.0, %v2137
    %2139 = vdwg.mxu0
    %2140 = vst [vmem:[#allocation1] ss:$9 sm:$0xff] %v1550
    %s2141 = scalar_lea.vmem [#allocation1], 1
    %2142 = vst [vmem:[%s2141] ss:$9 sm:$0xff] %v1551
    %s2143 = scalar_lea.vmem [#allocation1], 2
    %2144 = vst [vmem:[%s2143] ss:$9 sm:$0xff] %v1552
    %s2145 = scalar_lea.vmem [#allocation1], 3
    %2146 = vst [vmem:[%s2145] ss:$9 sm:$0xff] %v1241
    %s2147 = scalar_lea.vmem [#allocation1], 4
    %2148 = vst [vmem:[%s2147] ss:$9 sm:$0xff] %v1553
    %s2149 = scalar_lea.vmem [#allocation1], 5
    %2150 = vst [vmem:[%s2149] ss:$9 sm:$0xff] %v1554
    %s2151 = scalar_lea.vmem [#allocation1], 6
    %2152 = vst [vmem:[%s2151] ss:$9 sm:$0xff] %v1555
    %s2153 = scalar_lea.vmem [#allocation1], 7
    %2154 = vst [vmem:[%s2153] ss:$9 sm:$0xff] %v1556
    %v2155 = vld [vmem:[#allocation1] sm:$0xff]
    %2156 = vst [vmem:[#allocation1] ss:$9 sm:$0xff] %v1557
    %2157 = vst [vmem:[%s2141] ss:$9 sm:$0xff] %v1558
    %2158 = vst [vmem:[%s2143] ss:$9 sm:$0xff] %v1559
    %2159 = vst [vmem:[%s2145] ss:$9 sm:$0xff] %v1244
    %2160 = vst [vmem:[%s2147] ss:$9 sm:$0xff] %v1560
    %2161 = vst [vmem:[%s2149] ss:$9 sm:$0xff] %v1561
    %2162 = vst [vmem:[%s2151] ss:$9 sm:$0xff] %v1562
    %2163 = vst [vmem:[%s2153] ss:$9 sm:$0xff] %v1563
    %v2164 = vld [vmem:[#allocation1] sm:$0xff]
    %2165 = vst [vmem:[#allocation1] ss:$9 sm:$0xff] %v1564
    %2166 = vst [vmem:[%s2141] ss:$9 sm:$0xff] %v1565
    %2167 = vst [vmem:[%s2143] ss:$9 sm:$0xff] %v1566
    %2168 = vst [vmem:[%s2145] ss:$9 sm:$0xff] %v1246
    %2169 = vst [vmem:[%s2147] ss:$9 sm:$0xff] %v1567
    %2170 = vst [vmem:[%s2149] ss:$9 sm:$0xff] %v1568
    %2171 = vst [vmem:[%s2151] ss:$9 sm:$0xff] %v1569
    %2172 = vst [vmem:[%s2153] ss:$9 sm:$0xff] %v1570
    %v2173 = vld [vmem:[#allocation1] sm:$0xff]
    %2174 = vst [vmem:[#allocation1] ss:$9 sm:$0xff] %v1571
    %2175 = vst [vmem:[%s2141] ss:$9 sm:$0xff] %v1572
    %2176 = vst [vmem:[%s2143] ss:$9 sm:$0xff] %v1573
    %2177 = vst [vmem:[%s2145] ss:$9 sm:$0xff] %v1249
    %2178 = vst [vmem:[%s2147] ss:$9 sm:$0xff] %v1574
    %2179 = vst [vmem:[%s2149] ss:$9 sm:$0xff] %v1575
    %2180 = vst [vmem:[%s2151] ss:$9 sm:$0xff] %v1576
    %2181 = vst [vmem:[%s2153] ss:$9 sm:$0xff] %v1577
    %v2182 = vld [vmem:[#allocation1] sm:$0xff]
    %2183 = vst [vmem:[#allocation1] ss:$9 sm:$0xff] %v1578
    %2184 = vst [vmem:[%s2141] ss:$9 sm:$0xff] %v1579
    %2185 = vst [vmem:[%s2143] ss:$9 sm:$0xff] %v1580
    %2186 = vst [vmem:[%s2145] ss:$9 sm:$0xff] %v1251
    %2187 = vst [vmem:[%s2147] ss:$9 sm:$0xff] %v1581
    %2188 = vst [vmem:[%s2149] ss:$9 sm:$0xff] %v1582
    %2189 = vst [vmem:[%s2151] ss:$9 sm:$0xff] %v1583
    %2190 = vst [vmem:[%s2153] ss:$9 sm:$0xff] %v1584
    %v2191 = vld [vmem:[#allocation1] sm:$0xff]
    %2192 = vst [vmem:[#allocation1] ss:$9 sm:$0xff] %v1585
    %2193 = vst [vmem:[%s2141] ss:$9 sm:$0xff] %v1586
    %2194 = vst [vmem:[%s2143] ss:$9 sm:$0xff] %v1587
    %2195 = vst [vmem:[%s2145] ss:$9 sm:$0xff] %v1254
    %2196 = vst [vmem:[%s2147] ss:$9 sm:$0xff] %v1588
    %2197 = vst [vmem:[%s2149] ss:$9 sm:$0xff] %v1589
    %2198 = vst [vmem:[%s2151] ss:$9 sm:$0xff] %v1590
    %2199 = vst [vmem:[%s2153] ss:$9 sm:$0xff] %v1591
    %v2200 = vld [vmem:[#allocation1] sm:$0xff]
    %2201 = vst [vmem:[#allocation1] ss:$9 sm:$0xff] %v1592
    %v2202 = vld [vmem:[#allocation1] sm:$0xff]
    %v2209 = vsel %vm1753, %v2202, 0
    %2211 = vmatpush.msra.mxu0 0.0
    %2212 = vmatpush.msra.mxu0 0.0
    %2213 = vmatpush.msra.mxu0 0.0
    %2214 = vmatpush.msra.mxu0 0.0
    %2215 = vmatpush.msra.mxu0 0.0
    %2216 = vmatpush.msra.mxu0 0.0
    %2217 = vmatpush.msra.mxu0 0.0
    %2218 = vmatpush.msra.mxu0 0.0
    %2219 = vmatpush.msra.mxu0 0.0
    %2220 = vmatpush.msra.mxu0 %v2209
    %2221 = vmatpush.msra.mxu0 %v2200
    %2222 = vmatpush.msra.mxu0 %v2191
    %2223 = vmatpush.msra.mxu0 %v2182
    %2224 = vmatpush.msra.mxu0 %v2173
    %2225 = vmatpush.msra.mxu0 %v2164
    %2226 = vmatpush.msra.mxu0 %v2155
    %2227 = vmatmul.f32.gmra.mxu0 %v1751
    %v2228 = vpop.f32.mrf.mxu0
    %v2229 = vadd.f32 0.0, %v2228
    %2230 = vdwg.mxu0
    %2231 = vst [vmem:[#allocation1] ss:$9 sm:$0xff] %v1593
    %s2232 = scalar_lea.vmem [#allocation1], 1
    %2233 = vst [vmem:[%s2232] ss:$9 sm:$0xff] %v1594
    %s2234 = scalar_lea.vmem [#allocation1], 2
    %2235 = vst [vmem:[%s2234] ss:$9 sm:$0xff] %v1256
    %s2236 = scalar_lea.vmem [#allocation1], 3
    %2237 = vst [vmem:[%s2236] ss:$9 sm:$0xff] %v1595
    %s2238 = scalar_lea.vmem [#allocation1], 4
    %2239 = vst [vmem:[%s2238] ss:$9 sm:$0xff] %v1596
    %s2240 = scalar_lea.vmem [#allocation1], 5
    %2241 = vst [vmem:[%s2240] ss:$9 sm:$0xff] %v1597
    %s2242 = scalar_lea.vmem [#allocation1], 6
    %2243 = vst [vmem:[%s2242] ss:$9 sm:$0xff] %v1598
    %s2244 = scalar_lea.vmem [#allocation1], 7
    %2245 = vst [vmem:[%s2244] ss:$9 sm:$0xff] %v1599
    %v2246 = vld [vmem:[#allocation1] sm:$0xff]
    %2247 = vst [vmem:[#allocation1] ss:$9 sm:$0xff] %v1600
    %2248 = vst [vmem:[%s2232] ss:$9 sm:$0xff] %v1601
    %2249 = vst [vmem:[%s2234] ss:$9 sm:$0xff] %v1259
    %2250 = vst [vmem:[%s2236] ss:$9 sm:$0xff] %v1602
    %2251 = vst [vmem:[%s2238] ss:$9 sm:$0xff] %v1603
    %2252 = vst [vmem:[%s2240] ss:$9 sm:$0xff] %v1604
    %2253 = vst [vmem:[%s2242] ss:$9 sm:$0xff] %v1605
    %2254 = vst [vmem:[%s2244] ss:$9 sm:$0xff] %v1606
    %v2255 = vld [vmem:[#allocation1] sm:$0xff]
    %2256 = vst [vmem:[#allocation1] ss:$9 sm:$0xff] %v1607
    %2257 = vst [vmem:[%s2232] ss:$9 sm:$0xff] %v1608
    %2258 = vst [vmem:[%s2234] ss:$9 sm:$0xff] %v1261
    %2259 = vst [vmem:[%s2236] ss:$9 sm:$0xff] %v1609
    %2260 = vst [vmem:[%s2238] ss:$9 sm:$0xff] %v1610
    %2261 = vst [vmem:[%s2240] ss:$9 sm:$0xff] %v1611
    %2262 = vst [vmem:[%s2242] ss:$9 sm:$0xff] %v1612
    %2263 = vst [vmem:[%s2244] ss:$9 sm:$0xff] %v1613
    %v2264 = vld [vmem:[#allocation1] sm:$0xff]
    %2265 = vst [vmem:[#allocation1] ss:$9 sm:$0xff] %v1614
    %2266 = vst [vmem:[%s2232] ss:$9 sm:$0xff] %v1615
    %2267 = vst [vmem:[%s2234] ss:$9 sm:$0xff] %v1264
    %2268 = vst [vmem:[%s2236] ss:$9 sm:$0xff] %v1616
    %2269 = vst [vmem:[%s2238] ss:$9 sm:$0xff] %v1617
    %2270 = vst [vmem:[%s2240] ss:$9 sm:$0xff] %v1618
    %2271 = vst [vmem:[%s2242] ss:$9 sm:$0xff] %v1619
    %2272 = vst [vmem:[%s2244] ss:$9 sm:$0xff] %v1620
    %v2273 = vld [vmem:[#allocation1] sm:$0xff]
    %2274 = vst [vmem:[#allocation1] ss:$9 sm:$0xff] %v1621
    %2275 = vst [vmem:[%s2232] ss:$9 sm:$0xff] %v1622
    %2276 = vst [vmem:[%s2234] ss:$9 sm:$0xff] %v1266
    %2277 = vst [vmem:[%s2236] ss:$9 sm:$0xff] %v1623
    %2278 = vst [vmem:[%s2238] ss:$9 sm:$0xff] %v1624
    %2279 = vst [vmem:[%s2240] ss:$9 sm:$0xff] %v1625
    %2280 = vst [vmem:[%s2242] ss:$9 sm:$0xff] %v1626
    %2281 = vst [vmem:[%s2244] ss:$9 sm:$0xff] %v1627
    %v2282 = vld [vmem:[#allocation1] sm:$0xff]
    %2283 = vst [vmem:[#allocation1] ss:$9 sm:$0xff] %v1628
    %2284 = vst [vmem:[%s2232] ss:$9 sm:$0xff] %v1629
    %2285 = vst [vmem:[%s2234] ss:$9 sm:$0xff] %v1269
    %2286 = vst [vmem:[%s2236] ss:$9 sm:$0xff] %v1630
    %2287 = vst [vmem:[%s2238] ss:$9 sm:$0xff] %v1631
    %2288 = vst [vmem:[%s2240] ss:$9 sm:$0xff] %v1632
    %2289 = vst [vmem:[%s2242] ss:$9 sm:$0xff] %v1633
    %2290 = vst [vmem:[%s2244] ss:$9 sm:$0xff] %v1634
    %v2291 = vld [vmem:[#allocation1] sm:$0xff]
    %2292 = vst [vmem:[#allocation1] ss:$9 sm:$0xff] %v1635
    %v2293 = vld [vmem:[#allocation1] sm:$0xff]
    %v2300 = vsel %vm1753, %v2293, 0
    %2302 = vmatpush.msra.mxu0 0.0
    %2303 = vmatpush.msra.mxu0 0.0
    %2304 = vmatpush.msra.mxu0 0.0
    %2305 = vmatpush.msra.mxu0 0.0
    %2306 = vmatpush.msra.mxu0 0.0
    %2307 = vmatpush.msra.mxu0 0.0
    %2308 = vmatpush.msra.mxu0 0.0
    %2309 = vmatpush.msra.mxu0 0.0
    %2310 = vmatpush.msra.mxu0 0.0
    %2311 = vmatpush.msra.mxu0 %v2300
    %2312 = vmatpush.msra.mxu0 %v2291
    %2313 = vmatpush.msra.mxu0 %v2282
    %2314 = vmatpush.msra.mxu0 %v2273
    %2315 = vmatpush.msra.mxu0 %v2264
    %2316 = vmatpush.msra.mxu0 %v2255
    %2317 = vmatpush.msra.mxu0 %v2246
    %2318 = vmatmul.f32.gmra.mxu0 %v1751
    %v2319 = vpop.f32.mrf.mxu0
    %v2320 = vadd.f32 0.0, %v2319
    %2321 = vdwg.mxu0
    %2322 = vst [vmem:[#allocation1] ss:$9 sm:$0xff] %v1636
    %s2323 = scalar_lea.vmem [#allocation1], 1
    %2324 = vst [vmem:[%s2323] ss:$9 sm:$0xff] %v1271
    %s2325 = scalar_lea.vmem [#allocation1], 2
    %2326 = vst [vmem:[%s2325] ss:$9 sm:$0xff] %v1637
    %s2327 = scalar_lea.vmem [#allocation1], 3
    %2328 = vst [vmem:[%s2327] ss:$9 sm:$0xff] %v1638
    %s2329 = scalar_lea.vmem [#allocation1], 4
    %2330 = vst [vmem:[%s2329] ss:$9 sm:$0xff] %v1639
    %s2331 = scalar_lea.vmem [#allocation1], 5
    %2332 = vst [vmem:[%s2331] ss:$9 sm:$0xff] %v1640
    %s2333 = scalar_lea.vmem [#allocation1], 6
    %2334 = vst [vmem:[%s2333] ss:$9 sm:$0xff] %v1641
    %s2335 = scalar_lea.vmem [#allocation1], 7
    %2336 = vst [vmem:[%s2335] ss:$9 sm:$0xff] %v1642
    %v2337 = vld [vmem:[#allocation1] sm:$0xff]
    %2338 = vst [vmem:[#allocation1] ss:$9 sm:$0xff] %v1643
    %2339 = vst [vmem:[%s2323] ss:$9 sm:$0xff] %v1274
    %2340 = vst [vmem:[%s2325] ss:$9 sm:$0xff] %v1644
    %2341 = vst [vmem:[%s2327] ss:$9 sm:$0xff] %v1645
    %2342 = vst [vmem:[%s2329] ss:$9 sm:$0xff] %v1646
    %2343 = vst [vmem:[%s2331] ss:$9 sm:$0xff] %v1647
    %2344 = vst [vmem:[%s2333] ss:$9 sm:$0xff] %v1648
    %2345 = vst [vmem:[%s2335] ss:$9 sm:$0xff] %v1649
    %v2346 = vld [vmem:[#allocation1] sm:$0xff]
    %2347 = vst [vmem:[#allocation1] ss:$9 sm:$0xff] %v1650
    %2348 = vst [vmem:[%s2323] ss:$9 sm:$0xff] %v1276
    %2349 = vst [vmem:[%s2325] ss:$9 sm:$0xff] %v1651
    %2350 = vst [vmem:[%s2327] ss:$9 sm:$0xff] %v1652
    %2351 = vst [vmem:[%s2329] ss:$9 sm:$0xff] %v1653
    %2352 = vst [vmem:[%s2331] ss:$9 sm:$0xff] %v1654
    %2353 = vst [vmem:[%s2333] ss:$9 sm:$0xff] %v1655
    %2354 = vst [vmem:[%s2335] ss:$9 sm:$0xff] %v1656
    %v2355 = vld [vmem:[#allocation1] sm:$0xff]
    %2356 = vst [vmem:[#allocation1] ss:$9 sm:$0xff] %v1657
    %2357 = vst [vmem:[%s2323] ss:$9 sm:$0xff] %v1279
    %2358 = vst [vmem:[%s2325] ss:$9 sm:$0xff] %v1658
    %2359 = vst [vmem:[%s2327] ss:$9 sm:$0xff] %v1659
    %2360 = vst [vmem:[%s2329] ss:$9 sm:$0xff] %v1660
    %2361 = vst [vmem:[%s2331] ss:$9 sm:$0xff] %v1661
    %2362 = vst [vmem:[%s2333] ss:$9 sm:$0xff] %v1662
    %2363 = vst [vmem:[%s2335] ss:$9 sm:$0xff] %v1663
    %v2364 = vld [vmem:[#allocation1] sm:$0xff]
    %2365 = vst [vmem:[#allocation1] ss:$9 sm:$0xff] %v1664
    %2366 = vst [vmem:[%s2323] ss:$9 sm:$0xff] %v1281
    %2367 = vst [vmem:[%s2325] ss:$9 sm:$0xff] %v1665
    %2368 = vst [vmem:[%s2327] ss:$9 sm:$0xff] %v1666
    %2369 = vst [vmem:[%s2329] ss:$9 sm:$0xff] %v1667
    %2370 = vst [vmem:[%s2331] ss:$9 sm:$0xff] %v1668
    %2371 = vst [vmem:[%s2333] ss:$9 sm:$0xff] %v1669
    %2372 = vst [vmem:[%s2335] ss:$9 sm:$0xff] %v1670
    %v2373 = vld [vmem:[#allocation1] sm:$0xff]
    %2374 = vst [vmem:[#allocation1] ss:$9 sm:$0xff] %v1671
    %2375 = vst [vmem:[%s2323] ss:$9 sm:$0xff] %v1284
    %2376 = vst [vmem:[%s2325] ss:$9 sm:$0xff] %v1672
    %2377 = vst [vmem:[%s2327] ss:$9 sm:$0xff] %v1673
    %2378 = vst [vmem:[%s2329] ss:$9 sm:$0xff] %v1674
    %2379 = vst [vmem:[%s2331] ss:$9 sm:$0xff] %v1675
    %2380 = vst [vmem:[%s2333] ss:$9 sm:$0xff] %v1676
    %2381 = vst [vmem:[%s2335] ss:$9 sm:$0xff] %v1677
    %v2382 = vld [vmem:[#allocation1] sm:$0xff]
    %2383 = vst [vmem:[#allocation1] ss:$9 sm:$0xff] %v1678
    %v2384 = vld [vmem:[#allocation1] sm:$0xff]
    %v2391 = vsel %vm1753, %v2384, 0
    %2393 = vmatpush.msra.mxu0 0.0
    %2394 = vmatpush.msra.mxu0 0.0
    %2395 = vmatpush.msra.mxu0 0.0
    %2396 = vmatpush.msra.mxu0 0.0
    %2397 = vmatpush.msra.mxu0 0.0
    %2398 = vmatpush.msra.mxu0 0.0
    %2399 = vmatpush.msra.mxu0 0.0
    %2400 = vmatpush.msra.mxu0 0.0
    %2401 = vmatpush.msra.mxu0 0.0
    %2402 = vmatpush.msra.mxu0 %v2391
    %2403 = vmatpush.msra.mxu0 %v2382
    %2404 = vmatpush.msra.mxu0 %v2373
    %2405 = vmatpush.msra.mxu0 %v2364
    %2406 = vmatpush.msra.mxu0 %v2355
    %2407 = vmatpush.msra.mxu0 %v2346
    %2408 = vmatpush.msra.mxu0 %v2337
    %2409 = vmatmul.f32.gmra.mxu0 %v1751
    %v2410 = vpop.f32.mrf.mxu0
    %v2411 = vadd.f32 0.0, %v2410
    %2412 = vdwg.mxu0
    %v2413 = vld [vmem:[%s3] sm:$0x1]
    %v2415 = vperm.slane %v2413, 0
    %v2417 = vmul.f32 %v1774, %v2415
    %v2418 = vmul.f32 %v1865, %v2415
    %v2419 = vmul.f32 %v1956, %v2415
    %v2420 = vmul.f32 %v2047, %v2415
    %v2421 = vmul.f32 %v2138, %v2415
    %v2422 = vmul.f32 %v2229, %v2415
    %v2423 = vmul.f32 %v2320, %v2415
    %v2424 = vmul.f32 %v2411, %v2415
    %v2425 = vld [vmem:[%s4] sm:$0x1]
    %v2427 = vperm.slane %v2425, 0
    %v2429 = vadd.f32 %v2417, %v2427
    %v2430 = vadd.f32 %v2418, %v2427
    %v2431 = vadd.f32 %v2419, %v2427
    %v2432 = vadd.f32 %v2420, %v2427
    %v2433 = vadd.f32 %v2421, %v2427
    %v2434 = vadd.f32 %v2422, %v2427
    %v2435 = vadd.f32 %v2423, %v2427
    %v2436 = vadd.f32 %v2424, %v2427
    %v2437 = vmax.f32 %v2429, 0.0
    %v2438 = vmax.f32 %v2430, 0.0
    %v2439 = vmax.f32 %v2431, 0.0
    %v2440 = vmax.f32 %v2432, 0.0
    %v2441 = vmax.f32 %v2433, 0.0
    %v2442 = vmax.f32 %v2434, 0.0
    %v2443 = vmax.f32 %v2435, 0.0
    %v2444 = vmax.f32 %v2436, 0.0
    %v2445 = vrot.slane %v2439, 4
    %vm2446 = vcmask 1047556
    %v2447 = vsel %vm2446, %v2445, %v2437
    %v2449 = vunpack.c.l.s4 1983009808
    %v2450 = vunpack.c.0.s8 %v2449
    %v2451 = vperm.slane %v2447, %v2450
    %v2452 = vrot.slane %v2440, 4
    %v2453 = vsel %vm2446, %v2452, %v2438
    %v2455 = vunpack.c.l.s4 1983009808
    %v2456 = vunpack.c.0.s8 %v2455
    %v2457 = vperm.slane %v2453, %v2456
    %v2458 = vrot.slane %v2443, 4
    %v2459 = vsel %vm2446, %v2458, %v2441
    %v2461 = vunpack.c.l.s4 1983009808
    %v2462 = vunpack.c.0.s8 %v2461
    %v2463 = vperm.slane %v2459, %v2462
    %v2464 = vrot.slane %v2444, 4
    %v2465 = vsel %vm2446, %v2464, %v2442
    %v2467 = vunpack.c.l.s4 1983009808
    %v2468 = vunpack.c.0.s8 %v2467
    %v2469 = vperm.slane %v2465, %v2468
    %v2470 = vrot.slane %v2457, 4
    %v2471 = vsel %vm2446, %v2470, %v2451
    %v2472 = vrot.slane %v2451, 4
    %v2473 = vsel %vm2446, %v2457, %v2472
    %v2475 = vunpack.c.l.s4 1934713408
    %v2476 = vunpack.c.0.s8 %v2475
    %v2477 = vperm.slane %v2471, %v2476
    %v2479 = vunpack.c.l.s4 1934713408
    %v2480 = vunpack.c.0.s8 %v2479
    %v2481 = vperm.slane %v2473, %v2480
    %v2482 = vrot.slane %v2469, 4
    %v2483 = vsel %vm2446, %v2482, %v2463
    %v2484 = vrot.slane %v2463, 4
    %v2485 = vsel %vm2446, %v2469, %v2484
    %v2487 = vunpack.c.l.s4 1934713408
    %v2488 = vunpack.c.0.s8 %v2487
    %v2489 = vperm.slane %v2483, %v2488
    %v2491 = vunpack.c.l.s4 1934713408
    %v2492 = vunpack.c.0.s8 %v2491
    %v2493 = vperm.slane %v2485, %v2492
    %v2494 = vrot.slane %v2489, 4
    %v2495 = vsel %vm2446, %v2494, %v2477
    %v2496 = vrot.slane %v2477, 4
    %v2497 = vsel %vm2446, %v2489, %v2496
    %v2498 = vrot.slane %v2493, 4
    %v2499 = vsel %vm2446, %v2498, %v2481
    %v2500 = vrot.slane %v2481, 4
    %v2501 = vsel %vm2446, %v2493, %v2500
    %v2502 = vpack.c.bf16 %v2495, %v2495
    %v2503 = vpack.c.bf16 %v2497, %v2497
    %v2504 = vpack.c.bf16 %v2499, %v2499
    %v2505 = vpack.c.bf16 %v2501, %v2501
    %v2506 = vld [vmem:[#allocation2] sm:$0xff]
    %v2507 = vld [vmem:[#allocation2 + $0x8] sm:$0xff]
    %v2508 = vld [vmem:[#allocation2 + $0x10] sm:$0xff]
    %v2509 = vld [vmem:[#allocation2 + $0x18] sm:$0xff]
    %v2510 = vld [vmem:[#allocation2 + $0x20] sm:$0xff]
    %v2511 = vld [vmem:[#allocation2 + $0x28] sm:$0xff]
    %v2512 = vld [vmem:[#allocation2 + $0x30] sm:$0xff]
    %v2513 = vld [vmem:[#allocation2 + $0x38] sm:$0xff]
    %v2514 = vld [vmem:[#allocation2 + $0x40] sm:$0xff]
    %v2515 = vld [vmem:[#allocation2 + $0x48] sm:$0xff]
    %v2516 = vld [vmem:[#allocation2 + $0x50] sm:$0xff]
    %v2517 = vld [vmem:[#allocation2 + $0x58] sm:$0xff]
    %v2518 = vld [vmem:[#allocation2 + $0x60] sm:$0xff]
    %v2519 = vld [vmem:[#allocation2 + $0x68] sm:$0xff]
    %v2520 = vld [vmem:[#allocation2 + $0x70] sm:$0xff]
    %v2521 = vld [vmem:[#allocation2 + $0x78] sm:$0xff]
    %v2522 = vld [vmem:[#allocation2 + $0x80] sm:$0xff]
    %v2523 = vld [vmem:[#allocation2 + $0x88] sm:$0xff]
    %v2524 = vld [vmem:[#allocation2 + $0x90] sm:$0xff]
    %v2525 = vld [vmem:[#allocation2 + $0x98] sm:$0xff]
    %v2526 = vld [vmem:[#allocation2 + $0xa0] sm:$0xff]
    %v2527 = vld [vmem:[#allocation2 + $0xa8] sm:$0xff]
    %v2528 = vld [vmem:[#allocation2 + $0xb0] sm:$0xff]
    %v2529 = vld [vmem:[#allocation2 + $0xb8] sm:$0xff]
    %v2530 = vld [vmem:[#allocation2 + $0xc0] sm:$0xff]
    %v2531 = vld [vmem:[#allocation2 + $0xc8] sm:$0xff]
    %v2532 = vld [vmem:[#allocation2 + $0xd0] sm:$0xff]
    %v2533 = vld [vmem:[#allocation2 + $0xd8] sm:$0xff]
    %v2534 = vld [vmem:[#allocation2 + $0xe0] sm:$0xff]
    %v2535 = vld [vmem:[#allocation2 + $0xe8] sm:$0xff]
    %v2536 = vld [vmem:[#allocation2 + $0xf0] sm:$0xff]
    %v2537 = vld [vmem:[#allocation2 + $0xf8] sm:$0xff]
    %v2538 = vld [vmem:[#allocation2 + $0x100] sm:$0xff]
    %v2539 = vld [vmem:[#allocation2 + $0x108] sm:$0xff]
    %v2540 = vld [vmem:[#allocation2 + $0x110] sm:$0xff]
    %v2541 = vld [vmem:[#allocation2 + $0x118] sm:$0xff]
    %v2542 = vld [vmem:[#allocation2 + $0x120] sm:$0xff]
    %v2543 = vld [vmem:[#allocation2 + $0x128] sm:$0xff]
    %v2544 = vld [vmem:[#allocation2 + $0x130] sm:$0xff]
    %v2545 = vld [vmem:[#allocation2 + $0x138] sm:$0xff]
    %v2546 = vld [vmem:[#allocation2 + $0x140] sm:$0xff]
    %v2547 = vld [vmem:[#allocation2 + $0x148] sm:$0xff]
    %v2548 = vld [vmem:[#allocation2 + $0x150] sm:$0xff]
    %v2549 = vld [vmem:[#allocation2 + $0x158] sm:$0xff]
    %v2550 = vld [vmem:[#allocation2 + $0x160] sm:$0xff]
    %v2551 = vld [vmem:[#allocation2 + $0x168] sm:$0xff]
    %v2552 = vld [vmem:[#allocation2 + $0x170] sm:$0xff]
    %v2553 = vld [vmem:[#allocation2 + $0x178] sm:$0xff]
    %v2554 = vld [vmem:[#allocation2 + $0x180] sm:$0xff]
    %v2555 = vld [vmem:[#allocation2 + $0x188] sm:$0xff]
    %v2556 = vld [vmem:[#allocation2 + $0x190] sm:$0xff]
    %v2557 = vld [vmem:[#allocation2 + $0x198] sm:$0xff]
    %v2558 = vld [vmem:[#allocation2 + $0x1a0] sm:$0xff]
    %v2559 = vld [vmem:[#allocation2 + $0x1a8] sm:$0xff]
    %v2560 = vld [vmem:[#allocation2 + $0x1b0] sm:$0xff]
    %v2561 = vld [vmem:[#allocation2 + $0x1b8] sm:$0xff]
    %v2562 = vld [vmem:[#allocation2 + $0x1c0] sm:$0xff]
    %v2563 = vld [vmem:[#allocation2 + $0x1c8] sm:$0xff]
    %v2564 = vld [vmem:[#allocation2 + $0x1d0] sm:$0xff]
    %v2565 = vld [vmem:[#allocation2 + $0x1d8] sm:$0xff]
    %v2566 = vld [vmem:[#allocation2 + $0x1e0] sm:$0xff]
    %v2567 = vld [vmem:[#allocation2 + $0x1e8] sm:$0xff]
    %v2568 = vld [vmem:[#allocation2 + $0x1f0] sm:$0xff]
    %v2569 = vld [vmem:[#allocation2 + $0x1f8] sm:$0xff]
    %v2570 = vld [vmem:[#allocation2 + $0x200] sm:$0xff]
    %v2571 = vld [vmem:[#allocation2 + $0x208] sm:$0xff]
    %v2572 = vld [vmem:[#allocation2 + $0x210] sm:$0xff]
    %v2573 = vld [vmem:[#allocation2 + $0x218] sm:$0xff]
    %v2574 = vld [vmem:[#allocation2 + $0x220] sm:$0xff]
    %v2575 = vld [vmem:[#allocation2 + $0x228] sm:$0xff]
    %v2576 = vld [vmem:[#allocation2 + $0x230] sm:$0xff]
    %v2577 = vld [vmem:[#allocation2 + $0x238] sm:$0xff]
    %v2578 = vld [vmem:[#allocation2 + $0x240] sm:$0xff]
    %v2579 = vld [vmem:[#allocation2 + $0x248] sm:$0xff]
    %v2580 = vld [vmem:[#allocation2 + $0x250] sm:$0xff]
    %v2581 = vld [vmem:[#allocation2 + $0x258] sm:$0xff]
    %v2582 = vld [vmem:[#allocation2 + $0x260] sm:$0xff]
    %v2583 = vld [vmem:[#allocation2 + $0x268] sm:$0xff]
    %v2584 = vld [vmem:[#allocation2 + $0x270] sm:$0xff]
    %v2585 = vld [vmem:[#allocation2 + $0x278] sm:$0xff]
    %v2586 = vld [vmem:[#allocation2 + $0x280] sm:$0xff]
    %v2587 = vld [vmem:[#allocation2 + $0x288] sm:$0xff]
    %v2588 = vld [vmem:[#allocation2 + $0x290] sm:$0xff]
    %v2589 = vld [vmem:[#allocation2 + $0x298] sm:$0xff]
    %v2590 = vld [vmem:[#allocation2 + $0x2a0] sm:$0xff]
    %v2591 = vld [vmem:[#allocation2 + $0x2a8] sm:$0xff]
    %v2592 = vld [vmem:[#allocation2 + $0x2b0] sm:$0xff]
    %v2593 = vld [vmem:[#allocation2 + $0x2b8] sm:$0xff]
    %v2594 = vld [vmem:[#allocation2 + $0x2c0] sm:$0xff]
    %v2595 = vld [vmem:[#allocation2 + $0x2c8] sm:$0xff]
    %v2596 = vld [vmem:[#allocation2 + $0x2d0] sm:$0xff]
    %v2597 = vld [vmem:[#allocation2 + $0x2d8] sm:$0xff]
    %v2598 = vld [vmem:[#allocation2 + $0x2e0] sm:$0xff]
    %v2599 = vld [vmem:[#allocation2 + $0x2e8] sm:$0xff]
    %v2600 = vld [vmem:[#allocation2 + $0x2f0] sm:$0xff]
    %v2601 = vld [vmem:[#allocation2 + $0x2f8] sm:$0xff]
    %v2602 = vld [vmem:[#allocation2 + $0x300] sm:$0xff]
    %v2603 = vld [vmem:[#allocation2 + $0x308] sm:$0xff]
    %v2604 = vld [vmem:[#allocation2 + $0x310] sm:$0xff]
    %v2605 = vld [vmem:[#allocation2 + $0x318] sm:$0xff]
    %v2606 = vld [vmem:[#allocation2 + $0x320] sm:$0xff]
    %v2607 = vld [vmem:[#allocation2 + $0x328] sm:$0xff]
    %v2608 = vld [vmem:[#allocation2 + $0x330] sm:$0xff]
    %v2609 = vld [vmem:[#allocation2 + $0x338] sm:$0xff]
    %v2610 = vld [vmem:[#allocation2 + $0x340] sm:$0xff]
    %v2611 = vld [vmem:[#allocation2 + $0x348] sm:$0xff]
    %v2612 = vld [vmem:[#allocation2 + $0x350] sm:$0xff]
    %v2613 = vld [vmem:[#allocation2 + $0x358] sm:$0xff]
    %v2614 = vld [vmem:[#allocation2 + $0x360] sm:$0xff]
    %v2615 = vld [vmem:[#allocation2 + $0x368] sm:$0xff]
    %v2616 = vld [vmem:[#allocation2 + $0x370] sm:$0xff]
    %v2617 = vld [vmem:[#allocation2 + $0x378] sm:$0xff]
    %v2618 = vld [vmem:[#allocation2 + $0x380] sm:$0xff]
    %v2619 = vld [vmem:[#allocation2 + $0x388] sm:$0xff]
    %v2620 = vld [vmem:[#allocation2 + $0x390] sm:$0xff]
    %v2621 = vld [vmem:[#allocation2 + $0x398] sm:$0xff]
    %v2622 = vld [vmem:[#allocation2 + $0x3a0] sm:$0xff]
    %v2623 = vld [vmem:[#allocation2 + $0x3a8] sm:$0xff]
    %v2624 = vld [vmem:[#allocation2 + $0x3b0] sm:$0xff]
    %v2625 = vld [vmem:[#allocation2 + $0x3b8] sm:$0xff]
    %v2626 = vld [vmem:[#allocation2 + $0x3c0] sm:$0xff]
    %v2627 = vld [vmem:[#allocation2 + $0x3c8] sm:$0xff]
    %v2628 = vld [vmem:[#allocation2 + $0x3d0] sm:$0xff]
    %v2629 = vld [vmem:[#allocation2 + $0x3d8] sm:$0xff]
    %v2630 = vld [vmem:[#allocation2 + $0x3e0] sm:$0xff]
    %v2631 = vld [vmem:[#allocation2 + $0x3e8] sm:$0xff]
    %v2632 = vld [vmem:[#allocation2 + $0x3f0] sm:$0xff]
    %v2633 = vld [vmem:[#allocation2 + $0x3f8] sm:$0xff]
    %v2634 = vld [vmem:[#allocation2 + $0x400] sm:$0xff]
    %v2635 = vld [vmem:[#allocation2 + $0x408] sm:$0xff]
    %v2636 = vld [vmem:[#allocation2 + $0x410] sm:$0xff]
    %v2637 = vld [vmem:[#allocation2 + $0x418] sm:$0xff]
    %v2638 = vld [vmem:[#allocation2 + $0x420] sm:$0xff]
    %v2639 = vld [vmem:[#allocation2 + $0x428] sm:$0xff]
    %v2640 = vld [vmem:[#allocation2 + $0x430] sm:$0xff]
    %v2641 = vld [vmem:[#allocation2 + $0x438] sm:$0xff]
    %v2642 = vld [vmem:[#allocation2 + $0x440] sm:$0xff]
    %v2643 = vld [vmem:[#allocation2 + $0x448] sm:$0xff]
    %v2644 = vld [vmem:[#allocation2 + $0x450] sm:$0xff]
    %v2645 = vld [vmem:[#allocation2 + $0x458] sm:$0xff]
    %v2646 = vld [vmem:[#allocation2 + $0x460] sm:$0xff]
    %v2647 = vld [vmem:[#allocation2 + $0x468] sm:$0xff]
    %v2648 = vld [vmem:[#allocation2 + $0x470] sm:$0xff]
    %v2649 = vld [vmem:[#allocation2 + $0x478] sm:$0xff]
    %v2650 = vld [vmem:[#allocation2 + $0x480] sm:$0xff]
    %v2651 = vld [vmem:[#allocation2 + $0x488] sm:$0xff]
    %v2652 = vld [vmem:[#allocation2 + $0x490] sm:$0xff]
    %v2653 = vld [vmem:[#allocation2 + $0x498] sm:$0xff]
    %v2654 = vld [vmem:[#allocation2 + $0x4a0] sm:$0xff]
    %v2655 = vld [vmem:[#allocation2 + $0x4a8] sm:$0xff]
    %v2656 = vld [vmem:[#allocation2 + $0x4b0] sm:$0xff]
    %v2657 = vld [vmem:[#allocation2 + $0x4b8] sm:$0xff]
    %v2658 = vld [vmem:[#allocation2 + $0x4c0] sm:$0xff]
    %v2659 = vld [vmem:[#allocation2 + $0x4c8] sm:$0xff]
    %v2660 = vld [vmem:[#allocation2 + $0x4d0] sm:$0xff]
    %v2661 = vld [vmem:[#allocation2 + $0x4d8] sm:$0xff]
    %v2662 = vld [vmem:[#allocation2 + $0x4e0] sm:$0xff]
    %v2663 = vld [vmem:[#allocation2 + $0x4e8] sm:$0xff]
    %v2664 = vld [vmem:[#allocation2 + $0x4f0] sm:$0xff]
    %v2665 = vld [vmem:[#allocation2 + $0x4f8] sm:$0xff]
    %v2666 = vld [vmem:[#allocation2 + $0x500] sm:$0xff]
    %v2667 = vld [vmem:[#allocation2 + $0x508] sm:$0xff]
    %v2668 = vld [vmem:[#allocation2 + $0x510] sm:$0xff]
    %v2669 = vld [vmem:[#allocation2 + $0x518] sm:$0xff]
    %v2670 = vld [vmem:[#allocation2 + $0x520] sm:$0xff]
    %v2671 = vld [vmem:[#allocation2 + $0x528] sm:$0xff]
    %v2672 = vld [vmem:[#allocation2 + $0x530] sm:$0xff]
    %v2673 = vld [vmem:[#allocation2 + $0x538] sm:$0xff]
    %v2674 = vld [vmem:[#allocation2 + $0x540] sm:$0xff]
    %v2675 = vld [vmem:[#allocation2 + $0x548] sm:$0xff]
    %v2676 = vld [vmem:[#allocation2 + $0x550] sm:$0xff]
    %v2677 = vld [vmem:[#allocation2 + $0x558] sm:$0xff]
    %v2678 = vld [vmem:[#allocation2 + $0x560] sm:$0xff]
    %v2679 = vld [vmem:[#allocation2 + $0x568] sm:$0xff]
    %v2680 = vld [vmem:[#allocation2 + $0x570] sm:$0xff]
    %v2681 = vld [vmem:[#allocation2 + $0x578] sm:$0xff]
    %v2682 = vld [vmem:[#allocation2 + $0x580] sm:$0xff]
    %v2683 = vld [vmem:[#allocation2 + $0x588] sm:$0xff]
    %v2684 = vld [vmem:[#allocation2 + $0x590] sm:$0xff]
    %v2685 = vld [vmem:[#allocation2 + $0x598] sm:$0xff]
    %v2686 = vld [vmem:[#allocation2 + $0x5a0] sm:$0xff]
    %v2687 = vld [vmem:[#allocation2 + $0x5a8] sm:$0xff]
    %v2688 = vld [vmem:[#allocation2 + $0x5b0] sm:$0xff]
    %v2689 = vld [vmem:[#allocation2 + $0x5b8] sm:$0xff]
    %v2690 = vld [vmem:[#allocation2 + $0x5c0] sm:$0xff]
    %v2691 = vld [vmem:[#allocation2 + $0x5c8] sm:$0xff]
    %v2692 = vld [vmem:[#allocation2 + $0x5d0] sm:$0xff]
    %v2693 = vld [vmem:[#allocation2 + $0x5d8] sm:$0xff]
    %v2694 = vld [vmem:[#allocation2 + $0x5e0] sm:$0xff]
    %v2695 = vld [vmem:[#allocation2 + $0x5e8] sm:$0xff]
    %v2696 = vld [vmem:[#allocation2 + $0x5f0] sm:$0xff]
    %v2697 = vld [vmem:[#allocation2 + $0x5f8] sm:$0xff]
    %v2890 = vunpack.c.l.b16 %v2506
    %v2891 = vunpack.c.h.b16 %v2506
    %v2892 = vunpack.c.l.b16 %v2507
    %v2893 = vunpack.c.h.b16 %v2507
    %v2894 = vunpack.c.l.b16 %v2508
    %v2895 = vunpack.c.h.b16 %v2508
    %v2896 = vunpack.c.l.b16 %v2509
    %v2897 = vunpack.c.h.b16 %v2509
    %v2898 = vunpack.c.l.b16 %v2510
    %v2899 = vunpack.c.h.b16 %v2510
    %v2900 = vunpack.c.l.b16 %v2511
    %v2901 = vunpack.c.h.b16 %v2511
    %v2902 = vunpack.c.l.b16 %v2512
    %v2903 = vunpack.c.h.b16 %v2512
    %v2904 = vunpack.c.l.b16 %v2513
    %v2905 = vunpack.c.h.b16 %v2513
    %v2906 = vunpack.c.l.b16 %v2514
    %v2907 = vunpack.c.h.b16 %v2514
    %v2908 = vunpack.c.l.b16 %v2515
    %v2909 = vunpack.c.h.b16 %v2515
    %v2910 = vunpack.c.l.b16 %v2516
    %v2911 = vunpack.c.h.b16 %v2516
    %v2912 = vunpack.c.l.b16 %v2517
    %v2913 = vunpack.c.h.b16 %v2517
    %v2914 = vunpack.c.l.b16 %v2518
    %v2915 = vunpack.c.h.b16 %v2518
    %v2916 = vunpack.c.l.b16 %v2519
    %v2917 = vunpack.c.h.b16 %v2519
    %v2918 = vunpack.c.l.b16 %v2520
    %v2919 = vunpack.c.h.b16 %v2520
    %v2920 = vunpack.c.l.b16 %v2521
    %v2921 = vunpack.c.h.b16 %v2521
    %v2922 = vunpack.c.l.b16 %v2522
    %v2923 = vunpack.c.h.b16 %v2522
    %v2924 = vunpack.c.l.b16 %v2523
    %v2925 = vunpack.c.h.b16 %v2523
    %v2926 = vunpack.c.l.b16 %v2524
    %v2927 = vunpack.c.h.b16 %v2524
    %v2928 = vunpack.c.l.b16 %v2525
    %v2929 = vunpack.c.h.b16 %v2525
    %v2930 = vunpack.c.l.b16 %v2526
    %v2931 = vunpack.c.h.b16 %v2526
    %v2932 = vunpack.c.l.b16 %v2527
    %v2933 = vunpack.c.h.b16 %v2527
    %v2934 = vunpack.c.l.b16 %v2528
    %v2935 = vunpack.c.h.b16 %v2528
    %v2936 = vunpack.c.l.b16 %v2529
    %v2937 = vunpack.c.h.b16 %v2529
    %v2938 = vunpack.c.l.b16 %v2530
    %v2939 = vunpack.c.h.b16 %v2530
    %v2940 = vunpack.c.l.b16 %v2531
    %v2941 = vunpack.c.h.b16 %v2531
    %v2942 = vunpack.c.l.b16 %v2532
    %v2943 = vunpack.c.h.b16 %v2532
    %v2944 = vunpack.c.l.b16 %v2533
    %v2945 = vunpack.c.h.b16 %v2533
    %v2946 = vunpack.c.l.b16 %v2534
    %v2947 = vunpack.c.h.b16 %v2534
    %v2948 = vunpack.c.l.b16 %v2535
    %v2949 = vunpack.c.h.b16 %v2535
    %v2950 = vunpack.c.l.b16 %v2536
    %v2951 = vunpack.c.h.b16 %v2536
    %v2952 = vunpack.c.l.b16 %v2537
    %v2953 = vunpack.c.h.b16 %v2537
    %v2954 = vunpack.c.l.b16 %v2538
    %v2955 = vunpack.c.h.b16 %v2538
    %v2956 = vunpack.c.l.b16 %v2539
    %v2957 = vunpack.c.h.b16 %v2539
    %v2958 = vunpack.c.l.b16 %v2540
    %v2959 = vunpack.c.h.b16 %v2540
    %v2960 = vunpack.c.l.b16 %v2541
    %v2961 = vunpack.c.h.b16 %v2541
    %v2962 = vunpack.c.l.b16 %v2542
    %v2963 = vunpack.c.h.b16 %v2542
    %v2964 = vunpack.c.l.b16 %v2543
    %v2965 = vunpack.c.h.b16 %v2543
    %v2966 = vunpack.c.l.b16 %v2544
    %v2967 = vunpack.c.h.b16 %v2544
    %v2968 = vunpack.c.l.b16 %v2545
    %v2969 = vunpack.c.h.b16 %v2545
    %v2970 = vunpack.c.l.b16 %v2546
    %v2971 = vunpack.c.h.b16 %v2546
    %v2972 = vunpack.c.l.b16 %v2547
    %v2973 = vunpack.c.h.b16 %v2547
    %v2974 = vunpack.c.l.b16 %v2548
    %v2975 = vunpack.c.h.b16 %v2548
    %v2976 = vunpack.c.l.b16 %v2549
    %v2977 = vunpack.c.h.b16 %v2549
    %v2978 = vunpack.c.l.b16 %v2550
    %v2979 = vunpack.c.h.b16 %v2550
    %v2980 = vunpack.c.l.b16 %v2551
    %v2981 = vunpack.c.h.b16 %v2551
    %v2982 = vunpack.c.l.b16 %v2552
    %v2983 = vunpack.c.h.b16 %v2552
    %v2984 = vunpack.c.l.b16 %v2553
    %v2985 = vunpack.c.h.b16 %v2553
    %v2986 = vunpack.c.l.b16 %v2554
    %v2987 = vunpack.c.h.b16 %v2554
    %v2988 = vunpack.c.l.b16 %v2555
    %v2989 = vunpack.c.h.b16 %v2555
    %v2990 = vunpack.c.l.b16 %v2556
    %v2991 = vunpack.c.h.b16 %v2556
    %v2992 = vunpack.c.l.b16 %v2557
    %v2993 = vunpack.c.h.b16 %v2557
    %v2994 = vunpack.c.l.b16 %v2558
    %v2995 = vunpack.c.h.b16 %v2558
    %v2996 = vunpack.c.l.b16 %v2559
    %v2997 = vunpack.c.h.b16 %v2559
    %v2998 = vunpack.c.l.b16 %v2560
    %v2999 = vunpack.c.h.b16 %v2560
    %v3000 = vunpack.c.l.b16 %v2561
    %v3001 = vunpack.c.h.b16 %v2561
    %v3002 = vunpack.c.l.b16 %v2562
    %v3003 = vunpack.c.h.b16 %v2562
    %v3004 = vunpack.c.l.b16 %v2563
    %v3005 = vunpack.c.h.b16 %v2563
    %v3006 = vunpack.c.l.b16 %v2564
    %v3007 = vunpack.c.h.b16 %v2564
    %v3008 = vunpack.c.l.b16 %v2565
    %v3009 = vunpack.c.h.b16 %v2565
    %v3010 = vunpack.c.l.b16 %v2566
    %v3011 = vunpack.c.h.b16 %v2566
    %v3012 = vunpack.c.l.b16 %v2567
    %v3013 = vunpack.c.h.b16 %v2567
    %v3014 = vunpack.c.l.b16 %v2568
    %v3015 = vunpack.c.h.b16 %v2568
    %v3016 = vunpack.c.l.b16 %v2569
    %v3017 = vunpack.c.h.b16 %v2569
    %v3018 = vunpack.c.l.b16 %v2570
    %v3019 = vunpack.c.h.b16 %v2570
    %v3020 = vunpack.c.l.b16 %v2571
    %v3021 = vunpack.c.h.b16 %v2571
    %v3022 = vunpack.c.l.b16 %v2572
    %v3023 = vunpack.c.h.b16 %v2572
    %v3024 = vunpack.c.l.b16 %v2573
    %v3025 = vunpack.c.h.b16 %v2573
    %v3026 = vunpack.c.l.b16 %v2574
    %v3027 = vunpack.c.h.b16 %v2574
    %v3028 = vunpack.c.l.b16 %v2575
    %v3029 = vunpack.c.h.b16 %v2575
    %v3030 = vunpack.c.l.b16 %v2576
    %v3031 = vunpack.c.h.b16 %v2576
    %v3032 = vunpack.c.l.b16 %v2577
    %v3033 = vunpack.c.h.b16 %v2577
    %v3034 = vunpack.c.l.b16 %v2578
    %v3035 = vunpack.c.h.b16 %v2578
    %v3036 = vunpack.c.l.b16 %v2579
    %v3037 = vunpack.c.h.b16 %v2579
    %v3038 = vunpack.c.l.b16 %v2580
    %v3039 = vunpack.c.h.b16 %v2580
    %v3040 = vunpack.c.l.b16 %v2581
    %v3041 = vunpack.c.h.b16 %v2581
    %v3042 = vunpack.c.l.b16 %v2582
    %v3043 = vunpack.c.h.b16 %v2582
    %v3044 = vunpack.c.l.b16 %v2583
    %v3045 = vunpack.c.h.b16 %v2583
    %v3046 = vunpack.c.l.b16 %v2584
    %v3047 = vunpack.c.h.b16 %v2584
    %v3048 = vunpack.c.l.b16 %v2585
    %v3049 = vunpack.c.h.b16 %v2585
    %v3050 = vunpack.c.l.b16 %v2586
    %v3051 = vunpack.c.h.b16 %v2586
    %v3052 = vunpack.c.l.b16 %v2587
    %v3053 = vunpack.c.h.b16 %v2587
    %v3054 = vunpack.c.l.b16 %v2588
    %v3055 = vunpack.c.h.b16 %v2588
    %v3056 = vunpack.c.l.b16 %v2589
    %v3057 = vunpack.c.h.b16 %v2589
    %v3058 = vunpack.c.l.b16 %v2590
    %v3059 = vunpack.c.h.b16 %v2590
    %v3060 = vunpack.c.l.b16 %v2591
    %v3061 = vunpack.c.h.b16 %v2591
    %v3062 = vunpack.c.l.b16 %v2592
    %v3063 = vunpack.c.h.b16 %v2592
    %v3064 = vunpack.c.l.b16 %v2593
    %v3065 = vunpack.c.h.b16 %v2593
    %v3066 = vunpack.c.l.b16 %v2594
    %v3067 = vunpack.c.h.b16 %v2594
    %v3068 = vunpack.c.l.b16 %v2595
    %v3069 = vunpack.c.h.b16 %v2595
    %v3070 = vunpack.c.l.b16 %v2596
    %v3071 = vunpack.c.h.b16 %v2596
    %v3072 = vunpack.c.l.b16 %v2597
    %v3073 = vunpack.c.h.b16 %v2597
    %v3074 = vunpack.c.l.b16 %v2598
    %v3075 = vunpack.c.h.b16 %v2598
    %v3076 = vunpack.c.l.b16 %v2599
    %v3077 = vunpack.c.h.b16 %v2599
    %v3078 = vunpack.c.l.b16 %v2600
    %v3079 = vunpack.c.h.b16 %v2600
    %v3080 = vunpack.c.l.b16 %v2601
    %v3081 = vunpack.c.h.b16 %v2601
    %v3082 = vunpack.c.l.b16 %v2602
    %v3083 = vunpack.c.h.b16 %v2602
    %v3084 = vunpack.c.l.b16 %v2603
    %v3085 = vunpack.c.h.b16 %v2603
    %v3086 = vunpack.c.l.b16 %v2604
    %v3087 = vunpack.c.h.b16 %v2604
    %v3088 = vunpack.c.l.b16 %v2605
    %v3089 = vunpack.c.h.b16 %v2605
    %v3090 = vunpack.c.l.b16 %v2606
    %v3091 = vunpack.c.h.b16 %v2606
    %v3092 = vunpack.c.l.b16 %v2607
    %v3093 = vunpack.c.h.b16 %v2607
    %v3094 = vunpack.c.l.b16 %v2608
    %v3095 = vunpack.c.h.b16 %v2608
    %v3096 = vunpack.c.l.b16 %v2609
    %v3097 = vunpack.c.h.b16 %v2609
    %v3098 = vunpack.c.l.b16 %v2610
    %v3099 = vunpack.c.h.b16 %v2610
    %v3100 = vunpack.c.l.b16 %v2611
    %v3101 = vunpack.c.h.b16 %v2611
    %v3102 = vunpack.c.l.b16 %v2612
    %v3103 = vunpack.c.h.b16 %v2612
    %v3104 = vunpack.c.l.b16 %v2613
    %v3105 = vunpack.c.h.b16 %v2613
    %v3106 = vunpack.c.l.b16 %v2614
    %v3107 = vunpack.c.h.b16 %v2614
    %v3108 = vunpack.c.l.b16 %v2615
    %v3109 = vunpack.c.h.b16 %v2615
    %v3110 = vunpack.c.l.b16 %v2616
    %v3111 = vunpack.c.h.b16 %v2616
    %v3112 = vunpack.c.l.b16 %v2617
    %v3113 = vunpack.c.h.b16 %v2617
    %v3114 = vunpack.c.l.b16 %v2618
    %v3115 = vunpack.c.h.b16 %v2618
    %v3116 = vunpack.c.l.b16 %v2619
    %v3117 = vunpack.c.h.b16 %v2619
    %v3118 = vunpack.c.l.b16 %v2620
    %v3119 = vunpack.c.h.b16 %v2620
    %v3120 = vunpack.c.l.b16 %v2621
    %v3121 = vunpack.c.h.b16 %v2621
    %v3122 = vunpack.c.l.b16 %v2622
    %v3123 = vunpack.c.h.b16 %v2622
    %v3124 = vunpack.c.l.b16 %v2623
    %v3125 = vunpack.c.h.b16 %v2623
    %v3126 = vunpack.c.l.b16 %v2624
    %v3127 = vunpack.c.h.b16 %v2624
    %v3128 = vunpack.c.l.b16 %v2625
    %v3129 = vunpack.c.h.b16 %v2625
    %v3130 = vunpack.c.l.b16 %v2626
    %v3131 = vunpack.c.h.b16 %v2626
    %v3132 = vunpack.c.l.b16 %v2627
    %v3133 = vunpack.c.h.b16 %v2627
    %v3134 = vunpack.c.l.b16 %v2628
    %v3135 = vunpack.c.h.b16 %v2628
    %v3136 = vunpack.c.l.b16 %v2629
    %v3137 = vunpack.c.h.b16 %v2629
    %v3138 = vunpack.c.l.b16 %v2630
    %v3139 = vunpack.c.h.b16 %v2630
    %v3140 = vunpack.c.l.b16 %v2631
    %v3141 = vunpack.c.h.b16 %v2631
    %v3142 = vunpack.c.l.b16 %v2632
    %v3143 = vunpack.c.h.b16 %v2632
    %v3144 = vunpack.c.l.b16 %v2633
    %v3145 = vunpack.c.h.b16 %v2633
    %v3146 = vunpack.c.l.b16 %v2634
    %v3147 = vunpack.c.h.b16 %v2634
    %v3148 = vunpack.c.l.b16 %v2635
    %v3149 = vunpack.c.h.b16 %v2635
    %v3150 = vunpack.c.l.b16 %v2636
    %v3151 = vunpack.c.h.b16 %v2636
    %v3152 = vunpack.c.l.b16 %v2637
    %v3153 = vunpack.c.h.b16 %v2637
    %v3154 = vunpack.c.l.b16 %v2638
    %v3155 = vunpack.c.h.b16 %v2638
    %v3156 = vunpack.c.l.b16 %v2639
    %v3157 = vunpack.c.h.b16 %v2639
    %v3158 = vunpack.c.l.b16 %v2640
    %v3159 = vunpack.c.h.b16 %v2640
    %v3160 = vunpack.c.l.b16 %v2641
    %v3161 = vunpack.c.h.b16 %v2641
    %v3162 = vunpack.c.l.b16 %v2642
    %v3163 = vunpack.c.h.b16 %v2642
    %v3164 = vunpack.c.l.b16 %v2643
    %v3165 = vunpack.c.h.b16 %v2643
    %v3166 = vunpack.c.l.b16 %v2644
    %v3167 = vunpack.c.h.b16 %v2644
    %v3168 = vunpack.c.l.b16 %v2645
    %v3169 = vunpack.c.h.b16 %v2645
    %v3170 = vunpack.c.l.b16 %v2646
    %v3171 = vunpack.c.h.b16 %v2646
    %v3172 = vunpack.c.l.b16 %v2647
    %v3173 = vunpack.c.h.b16 %v2647
    %v3174 = vunpack.c.l.b16 %v2648
    %v3175 = vunpack.c.h.b16 %v2648
    %v3176 = vunpack.c.l.b16 %v2649
    %v3177 = vunpack.c.h.b16 %v2649
    %v3178 = vunpack.c.l.b16 %v2650
    %v3179 = vunpack.c.h.b16 %v2650
    %v3180 = vunpack.c.l.b16 %v2651
    %v3181 = vunpack.c.h.b16 %v2651
    %v3182 = vunpack.c.l.b16 %v2652
    %v3183 = vunpack.c.h.b16 %v2652
    %v3184 = vunpack.c.l.b16 %v2653
    %v3185 = vunpack.c.h.b16 %v2653
    %v3186 = vunpack.c.l.b16 %v2654
    %v3187 = vunpack.c.h.b16 %v2654
    %v3188 = vunpack.c.l.b16 %v2655
    %v3189 = vunpack.c.h.b16 %v2655
    %v3190 = vunpack.c.l.b16 %v2656
    %v3191 = vunpack.c.h.b16 %v2656
    %v3192 = vunpack.c.l.b16 %v2657
    %v3193 = vunpack.c.h.b16 %v2657
    %v3194 = vunpack.c.l.b16 %v2658
    %v3195 = vunpack.c.h.b16 %v2658
    %v3196 = vunpack.c.l.b16 %v2659
    %v3197 = vunpack.c.h.b16 %v2659
    %v3198 = vunpack.c.l.b16 %v2660
    %v3199 = vunpack.c.h.b16 %v2660
    %v3200 = vunpack.c.l.b16 %v2661
    %v3201 = vunpack.c.h.b16 %v2661
    %v3202 = vunpack.c.l.b16 %v2662
    %v3203 = vunpack.c.h.b16 %v2662
    %v3204 = vunpack.c.l.b16 %v2663
    %v3205 = vunpack.c.h.b16 %v2663
    %v3206 = vunpack.c.l.b16 %v2664
    %v3207 = vunpack.c.h.b16 %v2664
    %v3208 = vunpack.c.l.b16 %v2665
    %v3209 = vunpack.c.h.b16 %v2665
    %v3210 = vunpack.c.l.b16 %v2666
    %v3211 = vunpack.c.h.b16 %v2666
    %v3212 = vunpack.c.l.b16 %v2667
    %v3213 = vunpack.c.h.b16 %v2667
    %v3214 = vunpack.c.l.b16 %v2668
    %v3215 = vunpack.c.h.b16 %v2668
    %v3216 = vunpack.c.l.b16 %v2669
    %v3217 = vunpack.c.h.b16 %v2669
    %v3218 = vunpack.c.l.b16 %v2670
    %v3219 = vunpack.c.h.b16 %v2670
    %v3220 = vunpack.c.l.b16 %v2671
    %v3221 = vunpack.c.h.b16 %v2671
    %v3222 = vunpack.c.l.b16 %v2672
    %v3223 = vunpack.c.h.b16 %v2672
    %v3224 = vunpack.c.l.b16 %v2673
    %v3225 = vunpack.c.h.b16 %v2673
    %v3226 = vunpack.c.l.b16 %v2674
    %v3227 = vunpack.c.h.b16 %v2674
    %v3228 = vunpack.c.l.b16 %v2675
    %v3229 = vunpack.c.h.b16 %v2675
    %v3230 = vunpack.c.l.b16 %v2676
    %v3231 = vunpack.c.h.b16 %v2676
    %v3232 = vunpack.c.l.b16 %v2677
    %v3233 = vunpack.c.h.b16 %v2677
    %v3234 = vunpack.c.l.b16 %v2678
    %v3235 = vunpack.c.h.b16 %v2678
    %v3236 = vunpack.c.l.b16 %v2679
    %v3237 = vunpack.c.h.b16 %v2679
    %v3238 = vunpack.c.l.b16 %v2680
    %v3239 = vunpack.c.h.b16 %v2680
    %v3240 = vunpack.c.l.b16 %v2681
    %v3241 = vunpack.c.h.b16 %v2681
    %v3242 = vunpack.c.l.b16 %v2682
    %v3243 = vunpack.c.h.b16 %v2682
    %v3244 = vunpack.c.l.b16 %v2683
    %v3245 = vunpack.c.h.b16 %v2683
    %v3246 = vunpack.c.l.b16 %v2684
    %v3247 = vunpack.c.h.b16 %v2684
    %v3248 = vunpack.c.l.b16 %v2685
    %v3249 = vunpack.c.h.b16 %v2685
    %v3250 = vunpack.c.l.b16 %v2686
    %v3251 = vunpack.c.h.b16 %v2686
    %v3252 = vunpack.c.l.b16 %v2687
    %v3253 = vunpack.c.h.b16 %v2687
    %v3254 = vunpack.c.l.b16 %v2688
    %v3255 = vunpack.c.h.b16 %v2688
    %v3256 = vunpack.c.l.b16 %v2689
    %v3257 = vunpack.c.h.b16 %v2689
    %v3258 = vunpack.c.l.b16 %v2690
    %v3259 = vunpack.c.h.b16 %v2690
    %v3260 = vunpack.c.l.b16 %v2691
    %v3261 = vunpack.c.h.b16 %v2691
    %v3262 = vunpack.c.l.b16 %v2692
    %v3263 = vunpack.c.h.b16 %v2692
    %v3264 = vunpack.c.l.b16 %v2693
    %v3265 = vunpack.c.h.b16 %v2693
    %v3266 = vunpack.c.l.b16 %v2694
    %v3267 = vunpack.c.h.b16 %v2694
    %v3268 = vunpack.c.l.b16 %v2695
    %v3269 = vunpack.c.h.b16 %v2695
    %v3270 = vunpack.c.l.b16 %v2696
    %v3271 = vunpack.c.h.b16 %v2696
    %v3272 = vunpack.c.l.b16 %v2697
    %v3273 = vunpack.c.h.b16 %v2697
    %v3274 = vpack.c.b16 %v2896, %v2890
    %v3275 = vpack.c.b16 %v2897, %v2891
    %v3276 = vpack.c.b16 %v2898, %v2892
    %v3277 = vpack.c.b16 %v2899, %v2893
    %v3278 = vpack.c.b16 %v2900, %v2894
    %v3279 = vpack.c.b16 %v2901, %v2895
    %v3280 = vpack.c.b16 %v2908, %v2902
    %v3281 = vpack.c.b16 %v2909, %v2903
    %v3282 = vpack.c.b16 %v2910, %v2904
    %v3283 = vpack.c.b16 %v2911, %v2905
    %v3284 = vpack.c.b16 %v2912, %v2906
    %v3285 = vpack.c.b16 %v2913, %v2907
    %v3286 = vpack.c.b16 %v2920, %v2914
    %v3287 = vpack.c.b16 %v2921, %v2915
    %v3288 = vpack.c.b16 %v2922, %v2916
    %v3289 = vpack.c.b16 %v2923, %v2917
    %v3290 = vpack.c.b16 %v2924, %v2918
    %v3291 = vpack.c.b16 %v2925, %v2919
    %v3292 = vpack.c.b16 %v2932, %v2926
    %v3293 = vpack.c.b16 %v2933, %v2927
    %v3294 = vpack.c.b16 %v2934, %v2928
    %v3295 = vpack.c.b16 %v2935, %v2929
    %v3296 = vpack.c.b16 %v2936, %v2930
    %v3297 = vpack.c.b16 %v2937, %v2931
    %v3298 = vpack.c.b16 %v2944, %v2938
    %v3299 = vpack.c.b16 %v2945, %v2939
    %v3300 = vpack.c.b16 %v2946, %v2940
    %v3301 = vpack.c.b16 %v2947, %v2941
    %v3302 = vpack.c.b16 %v2948, %v2942
    %v3303 = vpack.c.b16 %v2949, %v2943
    %v3304 = vpack.c.b16 %v2956, %v2950
    %v3305 = vpack.c.b16 %v2957, %v2951
    %v3306 = vpack.c.b16 %v2958, %v2952
    %v3307 = vpack.c.b16 %v2959, %v2953
    %v3308 = vpack.c.b16 %v2960, %v2954
    %v3309 = vpack.c.b16 %v2961, %v2955
    %v3310 = vpack.c.b16 %v2968, %v2962
    %v3311 = vpack.c.b16 %v2969, %v2963
    %v3312 = vpack.c.b16 %v2970, %v2964
    %v3313 = vpack.c.b16 %v2971, %v2965
    %v3314 = vpack.c.b16 %v2972, %v2966
    %v3315 = vpack.c.b16 %v2973, %v2967
    %v3316 = vpack.c.b16 %v2980, %v2974
    %v3317 = vpack.c.b16 %v2981, %v2975
    %v3318 = vpack.c.b16 %v2982, %v2976
    %v3319 = vpack.c.b16 %v2983, %v2977
    %v3320 = vpack.c.b16 %v2984, %v2978
    %v3321 = vpack.c.b16 %v2985, %v2979
    %v3322 = vpack.c.b16 %v2992, %v2986
    %v3323 = vpack.c.b16 %v2993, %v2987
    %v3324 = vpack.c.b16 %v2994, %v2988
    %v3325 = vpack.c.b16 %v2995, %v2989
    %v3326 = vpack.c.b16 %v2996, %v2990
    %v3327 = vpack.c.b16 %v2997, %v2991
    %v3328 = vpack.c.b16 %v3004, %v2998
    %v3329 = vpack.c.b16 %v3005, %v2999
    %v3330 = vpack.c.b16 %v3006, %v3000
    %v3331 = vpack.c.b16 %v3007, %v3001
    %v3332 = vpack.c.b16 %v3008, %v3002
    %v3333 = vpack.c.b16 %v3009, %v3003
    %v3334 = vpack.c.b16 %v3016, %v3010
    %v3335 = vpack.c.b16 %v3017, %v3011
    %v3336 = vpack.c.b16 %v3018, %v3012
    %v3337 = vpack.c.b16 %v3019, %v3013
    %v3338 = vpack.c.b16 %v3020, %v3014
    %v3339 = vpack.c.b16 %v3021, %v3015
    %v3340 = vpack.c.b16 %v3028, %v3022
    %v3341 = vpack.c.b16 %v3029, %v3023
    %v3342 = vpack.c.b16 %v3030, %v3024
    %v3343 = vpack.c.b16 %v3031, %v3025
    %v3344 = vpack.c.b16 %v3032, %v3026
    %v3345 = vpack.c.b16 %v3033, %v3027
    %v3346 = vpack.c.b16 %v3040, %v3034
    %v3347 = vpack.c.b16 %v3041, %v3035
    %v3348 = vpack.c.b16 %v3042, %v3036
    %v3349 = vpack.c.b16 %v3043, %v3037
    %v3350 = vpack.c.b16 %v3044, %v3038
    %v3351 = vpack.c.b16 %v3045, %v3039
    %v3352 = vpack.c.b16 %v3052, %v3046
    %v3353 = vpack.c.b16 %v3053, %v3047
    %v3354 = vpack.c.b16 %v3054, %v3048
    %v3355 = vpack.c.b16 %v3055, %v3049
    %v3356 = vpack.c.b16 %v3056, %v3050
    %v3357 = vpack.c.b16 %v3057, %v3051
    %v3358 = vpack.c.b16 %v3064, %v3058
    %v3359 = vpack.c.b16 %v3065, %v3059
    %v3360 = vpack.c.b16 %v3066, %v3060
    %v3361 = vpack.c.b16 %v3067, %v3061
    %v3362 = vpack.c.b16 %v3068, %v3062
    %v3363 = vpack.c.b16 %v3069, %v3063
    %v3364 = vpack.c.b16 %v3076, %v3070
    %v3365 = vpack.c.b16 %v3077, %v3071
    %v3366 = vpack.c.b16 %v3078, %v3072
    %v3367 = vpack.c.b16 %v3079, %v3073
    %v3368 = vpack.c.b16 %v3080, %v3074
    %v3369 = vpack.c.b16 %v3081, %v3075
    %v3370 = vpack.c.b16 %v3088, %v3082
    %v3371 = vpack.c.b16 %v3089, %v3083
    %v3372 = vpack.c.b16 %v3090, %v3084
    %v3373 = vpack.c.b16 %v3091, %v3085
    %v3374 = vpack.c.b16 %v3092, %v3086
    %v3375 = vpack.c.b16 %v3093, %v3087
    %v3376 = vpack.c.b16 %v3100, %v3094
    %v3377 = vpack.c.b16 %v3101, %v3095
    %v3378 = vpack.c.b16 %v3102, %v3096
    %v3379 = vpack.c.b16 %v3103, %v3097
    %v3380 = vpack.c.b16 %v3104, %v3098
    %v3381 = vpack.c.b16 %v3105, %v3099
    %v3382 = vpack.c.b16 %v3112, %v3106
    %v3383 = vpack.c.b16 %v3113, %v3107
    %v3384 = vpack.c.b16 %v3114, %v3108
    %v3385 = vpack.c.b16 %v3115, %v3109
    %v3386 = vpack.c.b16 %v3116, %v3110
    %v3387 = vpack.c.b16 %v3117, %v3111
    %v3388 = vpack.c.b16 %v3124, %v3118
    %v3389 = vpack.c.b16 %v3125, %v3119
    %v3390 = vpack.c.b16 %v3126, %v3120
    %v3391 = vpack.c.b16 %v3127, %v3121
    %v3392 = vpack.c.b16 %v3128, %v3122
    %v3393 = vpack.c.b16 %v3129, %v3123
    %v3394 = vpack.c.b16 %v3136, %v3130
    %v3395 = vpack.c.b16 %v3137, %v3131
    %v3396 = vpack.c.b16 %v3138, %v3132
    %v3397 = vpack.c.b16 %v3139, %v3133
    %v3398 = vpack.c.b16 %v3140, %v3134
    %v3399 = vpack.c.b16 %v3141, %v3135
    %v3400 = vpack.c.b16 %v3148, %v3142
    %v3401 = vpack.c.b16 %v3149, %v3143
    %v3402 = vpack.c.b16 %v3150, %v3144
    %v3403 = vpack.c.b16 %v3151, %v3145
    %v3404 = vpack.c.b16 %v3152, %v3146
    %v3405 = vpack.c.b16 %v3153, %v3147
    %v3406 = vpack.c.b16 %v3160, %v3154
    %v3407 = vpack.c.b16 %v3161, %v3155
    %v3408 = vpack.c.b16 %v3162, %v3156
    %v3409 = vpack.c.b16 %v3163, %v3157
    %v3410 = vpack.c.b16 %v3164, %v3158
    %v3411 = vpack.c.b16 %v3165, %v3159
    %v3412 = vpack.c.b16 %v3172, %v3166
    %v3413 = vpack.c.b16 %v3173, %v3167
    %v3414 = vpack.c.b16 %v3174, %v3168
    %v3415 = vpack.c.b16 %v3175, %v3169
    %v3416 = vpack.c.b16 %v3176, %v3170
    %v3417 = vpack.c.b16 %v3177, %v3171
    %v3418 = vpack.c.b16 %v3184, %v3178
    %v3419 = vpack.c.b16 %v3185, %v3179
    %v3420 = vpack.c.b16 %v3186, %v3180
    %v3421 = vpack.c.b16 %v3187, %v3181
    %v3422 = vpack.c.b16 %v3188, %v3182
    %v3423 = vpack.c.b16 %v3189, %v3183
    %v3424 = vpack.c.b16 %v3196, %v3190
    %v3425 = vpack.c.b16 %v3197, %v3191
    %v3426 = vpack.c.b16 %v3198, %v3192
    %v3427 = vpack.c.b16 %v3199, %v3193
    %v3428 = vpack.c.b16 %v3200, %v3194
    %v3429 = vpack.c.b16 %v3201, %v3195
    %v3430 = vpack.c.b16 %v3208, %v3202
    %v3431 = vpack.c.b16 %v3209, %v3203
    %v3432 = vpack.c.b16 %v3210, %v3204
    %v3433 = vpack.c.b16 %v3211, %v3205
    %v3434 = vpack.c.b16 %v3212, %v3206
    %v3435 = vpack.c.b16 %v3213, %v3207
    %v3436 = vpack.c.b16 %v3220, %v3214
    %v3437 = vpack.c.b16 %v3221, %v3215
    %v3438 = vpack.c.b16 %v3222, %v3216
    %v3439 = vpack.c.b16 %v3223, %v3217
    %v3440 = vpack.c.b16 %v3224, %v3218
    %v3441 = vpack.c.b16 %v3225, %v3219
    %v3442 = vpack.c.b16 %v3232, %v3226
    %v3443 = vpack.c.b16 %v3233, %v3227
    %v3444 = vpack.c.b16 %v3234, %v3228
    %v3445 = vpack.c.b16 %v3235, %v3229
    %v3446 = vpack.c.b16 %v3236, %v3230
    %v3447 = vpack.c.b16 %v3237, %v3231
    %v3448 = vpack.c.b16 %v3244, %v3238
    %v3449 = vpack.c.b16 %v3245, %v3239
    %v3450 = vpack.c.b16 %v3246, %v3240
    %v3451 = vpack.c.b16 %v3247, %v3241
    %v3452 = vpack.c.b16 %v3248, %v3242
    %v3453 = vpack.c.b16 %v3249, %v3243
    %v3454 = vpack.c.b16 %v3256, %v3250
    %v3455 = vpack.c.b16 %v3257, %v3251
    %v3456 = vpack.c.b16 %v3258, %v3252
    %v3457 = vpack.c.b16 %v3259, %v3253
    %v3458 = vpack.c.b16 %v3260, %v3254
    %v3459 = vpack.c.b16 %v3261, %v3255
    %v3460 = vpack.c.b16 %v3268, %v3262
    %v3461 = vpack.c.b16 %v3269, %v3263
    %v3462 = vpack.c.b16 %v3270, %v3264
    %v3463 = vpack.c.b16 %v3271, %v3265
    %v3464 = vpack.c.b16 %v3272, %v3266
    %v3465 = vpack.c.b16 %v3273, %v3267
    %3658 = vmatpush.bf16.msra.mxu0 %v3316
    %3659 = vmatpush.bf16.msra.mxu0 %v3310
    %3660 = vmatpush.bf16.msra.mxu0 %v3304
    %3661 = vmatpush.bf16.msra.mxu0 %v3298
    %3662 = vmatpush.bf16.msra.mxu0 %v3292
    %3663 = vmatpush.bf16.msra.mxu0 %v3286
    %3664 = vmatpush.bf16.msra.mxu0 %v3280
    %3665 = vmatpush.bf16.msra.mxu0 %v3274
    %3666 = vmatmul.bf16.gmra.mxu0 %v2502
    %v3667 = vpop.f32.mrf.mxu0
    %v3668 = vadd.f32 0.0, %v3667
    %v3669 = vpop.f32.mrf.mxu0
    %3670 = vdwg.mxu0
    %3671 = vmatpush.bf16.msra.mxu0 %v3364
    %3672 = vmatpush.bf16.msra.mxu0 %v3358
    %3673 = vmatpush.bf16.msra.mxu0 %v3352
    %3674 = vmatpush.bf16.msra.mxu0 %v3346
    %3675 = vmatpush.bf16.msra.mxu0 %v3340
    %3676 = vmatpush.bf16.msra.mxu0 %v3334
    %3677 = vmatpush.bf16.msra.mxu0 %v3328
    %3678 = vmatpush.bf16.msra.mxu0 %v3322
    %3679 = vmatmul.bf16.gmra.mxu0 %v2503
    %v3680 = vpop.f32.mrf.mxu0
    %v3681 = vadd.f32 %v3668, %v3680
    %v3682 = vpop.f32.mrf.mxu0
    %3683 = vdwg.mxu0
    %3684 = vmatpush.bf16.msra.mxu0 %v3412
    %3685 = vmatpush.bf16.msra.mxu0 %v3406
    %3686 = vmatpush.bf16.msra.mxu0 %v3400
    %3687 = vmatpush.bf16.msra.mxu0 %v3394
    %3688 = vmatpush.bf16.msra.mxu0 %v3388
    %3689 = vmatpush.bf16.msra.mxu0 %v3382
    %3690 = vmatpush.bf16.msra.mxu0 %v3376
    %3691 = vmatpush.bf16.msra.mxu0 %v3370
    %3692 = vmatmul.bf16.gmra.mxu0 %v2504
    %v3693 = vpop.f32.mrf.mxu0
    %v3694 = vadd.f32 %v3681, %v3693
    %v3695 = vpop.f32.mrf.mxu0
    %3696 = vdwg.mxu0
    %3697 = vmatpush.bf16.msra.mxu0 %v3460
    %3698 = vmatpush.bf16.msra.mxu0 %v3454
    %3699 = vmatpush.bf16.msra.mxu0 %v3448
    %3700 = vmatpush.bf16.msra.mxu0 %v3442
    %3701 = vmatpush.bf16.msra.mxu0 %v3436
    %3702 = vmatpush.bf16.msra.mxu0 %v3430
    %3703 = vmatpush.bf16.msra.mxu0 %v3424
    %3704 = vmatpush.bf16.msra.mxu0 %v3418
    %3705 = vmatmul.bf16.gmra.mxu0 %v2505
    %v3706 = vpop.f32.mrf.mxu0
    %v3707 = vadd.f32 %v3694, %v3706
    %v3708 = vpop.f32.mrf.mxu0
    %3709 = vdwg.mxu0
    %3710 = vmatpush.bf16.msra.mxu0 %v3317
    %3711 = vmatpush.bf16.msra.mxu0 %v3311
    %3712 = vmatpush.bf16.msra.mxu0 %v3305
    %3713 = vmatpush.bf16.msra.mxu0 %v3299
    %3714 = vmatpush.bf16.msra.mxu0 %v3293
    %3715 = vmatpush.bf16.msra.mxu0 %v3287
    %3716 = vmatpush.bf16.msra.mxu0 %v3281
    %3717 = vmatpush.bf16.msra.mxu0 %v3275
    %3718 = vmatmul.bf16.gmra.mxu0 %v2502
    %v3719 = vpop.f32.mrf.mxu0
    %v3720 = vadd.f32 0.0, %v3719
    %v3721 = vpop.f32.mrf.mxu0
    %3722 = vdwg.mxu0
    %3723 = vmatpush.bf16.msra.mxu0 %v3365
    %3724 = vmatpush.bf16.msra.mxu0 %v3359
    %3725 = vmatpush.bf16.msra.mxu0 %v3353
    %3726 = vmatpush.bf16.msra.mxu0 %v3347
    %3727 = vmatpush.bf16.msra.mxu0 %v3341
    %3728 = vmatpush.bf16.msra.mxu0 %v3335
    %3729 = vmatpush.bf16.msra.mxu0 %v3329
    %3730 = vmatpush.bf16.msra.mxu0 %v3323
    %3731 = vmatmul.bf16.gmra.mxu0 %v2503
    %v3732 = vpop.f32.mrf.mxu0
    %v3733 = vadd.f32 %v3720, %v3732
    %v3734 = vpop.f32.mrf.mxu0
    %3735 = vdwg.mxu0
    %3736 = vmatpush.bf16.msra.mxu0 %v3413
    %3737 = vmatpush.bf16.msra.mxu0 %v3407
    %3738 = vmatpush.bf16.msra.mxu0 %v3401
    %3739 = vmatpush.bf16.msra.mxu0 %v3395
    %3740 = vmatpush.bf16.msra.mxu0 %v3389
    %3741 = vmatpush.bf16.msra.mxu0 %v3383
    %3742 = vmatpush.bf16.msra.mxu0 %v3377
    %3743 = vmatpush.bf16.msra.mxu0 %v3371
    %3744 = vmatmul.bf16.gmra.mxu0 %v2504
    %v3745 = vpop.f32.mrf.mxu0
    %v3746 = vadd.f32 %v3733, %v3745
    %v3747 = vpop.f32.mrf.mxu0
    %3748 = vdwg.mxu0
    %3749 = vmatpush.bf16.msra.mxu0 %v3461
    %3750 = vmatpush.bf16.msra.mxu0 %v3455
    %3751 = vmatpush.bf16.msra.mxu0 %v3449
    %3752 = vmatpush.bf16.msra.mxu0 %v3443
    %3753 = vmatpush.bf16.msra.mxu0 %v3437
    %3754 = vmatpush.bf16.msra.mxu0 %v3431
    %3755 = vmatpush.bf16.msra.mxu0 %v3425
    %3756 = vmatpush.bf16.msra.mxu0 %v3419
    %3757 = vmatmul.bf16.gmra.mxu0 %v2505
    %v3758 = vpop.f32.mrf.mxu0
    %v3759 = vadd.f32 %v3746, %v3758
    %v3760 = vpop.f32.mrf.mxu0
    %3761 = vdwg.mxu0
    %3762 = vmatpush.bf16.msra.mxu0 %v3318
    %3763 = vmatpush.bf16.msra.mxu0 %v3312
    %3764 = vmatpush.bf16.msra.mxu0 %v3306
    %3765 = vmatpush.bf16.msra.mxu0 %v3300
    %3766 = vmatpush.bf16.msra.mxu0 %v3294
    %3767 = vmatpush.bf16.msra.mxu0 %v3288
    %3768 = vmatpush.bf16.msra.mxu0 %v3282
    %3769 = vmatpush.bf16.msra.mxu0 %v3276
    %3770 = vmatmul.bf16.gmra.mxu0 %v2502
    %v3771 = vpop.f32.mrf.mxu0
    %v3772 = vadd.f32 0.0, %v3771
    %v3773 = vpop.f32.mrf.mxu0
    %3774 = vdwg.mxu0
    %3775 = vmatpush.bf16.msra.mxu0 %v3366
    %3776 = vmatpush.bf16.msra.mxu0 %v3360
    %3777 = vmatpush.bf16.msra.mxu0 %v3354
    %3778 = vmatpush.bf16.msra.mxu0 %v3348
    %3779 = vmatpush.bf16.msra.mxu0 %v3342
    %3780 = vmatpush.bf16.msra.mxu0 %v3336
    %3781 = vmatpush.bf16.msra.mxu0 %v3330
    %3782 = vmatpush.bf16.msra.mxu0 %v3324
    %3783 = vmatmul.bf16.gmra.mxu0 %v2503
    %v3784 = vpop.f32.mrf.mxu0
    %v3785 = vadd.f32 %v3772, %v3784
    %v3786 = vpop.f32.mrf.mxu0
    %3787 = vdwg.mxu0
    %3788 = vmatpush.bf16.msra.mxu0 %v3414
    %3789 = vmatpush.bf16.msra.mxu0 %v3408
    %3790 = vmatpush.bf16.msra.mxu0 %v3402
    %3791 = vmatpush.bf16.msra.mxu0 %v3396
    %3792 = vmatpush.bf16.msra.mxu0 %v3390
    %3793 = vmatpush.bf16.msra.mxu0 %v3384
    %3794 = vmatpush.bf16.msra.mxu0 %v3378
    %3795 = vmatpush.bf16.msra.mxu0 %v3372
    %3796 = vmatmul.bf16.gmra.mxu0 %v2504
    %v3797 = vpop.f32.mrf.mxu0
    %v3798 = vadd.f32 %v3785, %v3797
    %v3799 = vpop.f32.mrf.mxu0
    %3800 = vdwg.mxu0
    %3801 = vmatpush.bf16.msra.mxu0 %v3462
    %3802 = vmatpush.bf16.msra.mxu0 %v3456
    %3803 = vmatpush.bf16.msra.mxu0 %v3450
    %3804 = vmatpush.bf16.msra.mxu0 %v3444
    %3805 = vmatpush.bf16.msra.mxu0 %v3438
    %3806 = vmatpush.bf16.msra.mxu0 %v3432
    %3807 = vmatpush.bf16.msra.mxu0 %v3426
    %3808 = vmatpush.bf16.msra.mxu0 %v3420
    %3809 = vmatmul.bf16.gmra.mxu0 %v2505
    %v3810 = vpop.f32.mrf.mxu0
    %v3811 = vadd.f32 %v3798, %v3810
    %v3812 = vpop.f32.mrf.mxu0
    %3813 = vdwg.mxu0
    %3814 = vmatpush.bf16.msra.mxu0 %v3319
    %3815 = vmatpush.bf16.msra.mxu0 %v3313
    %3816 = vmatpush.bf16.msra.mxu0 %v3307
    %3817 = vmatpush.bf16.msra.mxu0 %v3301
    %3818 = vmatpush.bf16.msra.mxu0 %v3295
    %3819 = vmatpush.bf16.msra.mxu0 %v3289
    %3820 = vmatpush.bf16.msra.mxu0 %v3283
    %3821 = vmatpush.bf16.msra.mxu0 %v3277
    %3822 = vmatmul.bf16.gmra.mxu0 %v2502
    %v3823 = vpop.f32.mrf.mxu0
    %v3824 = vadd.f32 0.0, %v3823
    %v3825 = vpop.f32.mrf.mxu0
    %3826 = vdwg.mxu0
    %3827 = vmatpush.bf16.msra.mxu0 %v3367
    %3828 = vmatpush.bf16.msra.mxu0 %v3361
    %3829 = vmatpush.bf16.msra.mxu0 %v3355
    %3830 = vmatpush.bf16.msra.mxu0 %v3349
    %3831 = vmatpush.bf16.msra.mxu0 %v3343
    %3832 = vmatpush.bf16.msra.mxu0 %v3337
    %3833 = vmatpush.bf16.msra.mxu0 %v3331
    %3834 = vmatpush.bf16.msra.mxu0 %v3325
    %3835 = vmatmul.bf16.gmra.mxu0 %v2503
    %v3836 = vpop.f32.mrf.mxu0
    %v3837 = vadd.f32 %v3824, %v3836
    %v3838 = vpop.f32.mrf.mxu0
    %3839 = vdwg.mxu0
    %3840 = vmatpush.bf16.msra.mxu0 %v3415
    %3841 = vmatpush.bf16.msra.mxu0 %v3409
    %3842 = vmatpush.bf16.msra.mxu0 %v3403
    %3843 = vmatpush.bf16.msra.mxu0 %v3397
    %3844 = vmatpush.bf16.msra.mxu0 %v3391
    %3845 = vmatpush.bf16.msra.mxu0 %v3385
    %3846 = vmatpush.bf16.msra.mxu0 %v3379
    %3847 = vmatpush.bf16.msra.mxu0 %v3373
    %3848 = vmatmul.bf16.gmra.mxu0 %v2504
    %v3849 = vpop.f32.mrf.mxu0
    %v3850 = vadd.f32 %v3837, %v3849
    %v3851 = vpop.f32.mrf.mxu0
    %3852 = vdwg.mxu0
    %3853 = vmatpush.bf16.msra.mxu0 %v3463
    %3854 = vmatpush.bf16.msra.mxu0 %v3457
    %3855 = vmatpush.bf16.msra.mxu0 %v3451
    %3856 = vmatpush.bf16.msra.mxu0 %v3445
    %3857 = vmatpush.bf16.msra.mxu0 %v3439
    %3858 = vmatpush.bf16.msra.mxu0 %v3433
    %3859 = vmatpush.bf16.msra.mxu0 %v3427
    %3860 = vmatpush.bf16.msra.mxu0 %v3421
    %3861 = vmatmul.bf16.gmra.mxu0 %v2505
    %v3862 = vpop.f32.mrf.mxu0
    %v3863 = vadd.f32 %v3850, %v3862
    %v3864 = vpop.f32.mrf.mxu0
    %3865 = vdwg.mxu0
    %3866 = vmatpush.bf16.msra.mxu0 %v3320
    %3867 = vmatpush.bf16.msra.mxu0 %v3314
    %3868 = vmatpush.bf16.msra.mxu0 %v3308
    %3869 = vmatpush.bf16.msra.mxu0 %v3302
    %3870 = vmatpush.bf16.msra.mxu0 %v3296
    %3871 = vmatpush.bf16.msra.mxu0 %v3290
    %3872 = vmatpush.bf16.msra.mxu0 %v3284
    %3873 = vmatpush.bf16.msra.mxu0 %v3278
    %3874 = vmatmul.bf16.gmra.mxu0 %v2502
    %v3875 = vpop.f32.mrf.mxu0
    %v3876 = vadd.f32 0.0, %v3875
    %v3877 = vpop.f32.mrf.mxu0
    %3878 = vdwg.mxu0
    %3879 = vmatpush.bf16.msra.mxu0 %v3368
    %3880 = vmatpush.bf16.msra.mxu0 %v3362
    %3881 = vmatpush.bf16.msra.mxu0 %v3356
    %3882 = vmatpush.bf16.msra.mxu0 %v3350
    %3883 = vmatpush.bf16.msra.mxu0 %v3344
    %3884 = vmatpush.bf16.msra.mxu0 %v3338
    %3885 = vmatpush.bf16.msra.mxu0 %v3332
    %3886 = vmatpush.bf16.msra.mxu0 %v3326
    %3887 = vmatmul.bf16.gmra.mxu0 %v2503
    %v3888 = vpop.f32.mrf.mxu0
    %v3889 = vadd.f32 %v3876, %v3888
    %v3890 = vpop.f32.mrf.mxu0
    %3891 = vdwg.mxu0
    %3892 = vmatpush.bf16.msra.mxu0 %v3416
    %3893 = vmatpush.bf16.msra.mxu0 %v3410
    %3894 = vmatpush.bf16.msra.mxu0 %v3404
    %3895 = vmatpush.bf16.msra.mxu0 %v3398
    %3896 = vmatpush.bf16.msra.mxu0 %v3392
    %3897 = vmatpush.bf16.msra.mxu0 %v3386
    %3898 = vmatpush.bf16.msra.mxu0 %v3380
    %3899 = vmatpush.bf16.msra.mxu0 %v3374
    %3900 = vmatmul.bf16.gmra.mxu0 %v2504
    %v3901 = vpop.f32.mrf.mxu0
    %v3902 = vadd.f32 %v3889, %v3901
    %v3903 = vpop.f32.mrf.mxu0
    %3904 = vdwg.mxu0
    %3905 = vmatpush.bf16.msra.mxu0 %v3464
    %3906 = vmatpush.bf16.msra.mxu0 %v3458
    %3907 = vmatpush.bf16.msra.mxu0 %v3452
    %3908 = vmatpush.bf16.msra.mxu0 %v3446
    %3909 = vmatpush.bf16.msra.mxu0 %v3440
    %3910 = vmatpush.bf16.msra.mxu0 %v3434
    %3911 = vmatpush.bf16.msra.mxu0 %v3428
    %3912 = vmatpush.bf16.msra.mxu0 %v3422
    %3913 = vmatmul.bf16.gmra.mxu0 %v2505
    %v3914 = vpop.f32.mrf.mxu0
    %v3915 = vadd.f32 %v3902, %v3914
    %v3916 = vpop.f32.mrf.mxu0
    %3917 = vdwg.mxu0
    %3918 = vmatpush.bf16.msra.mxu0 %v3321
    %3919 = vmatpush.bf16.msra.mxu0 %v3315
    %3920 = vmatpush.bf16.msra.mxu0 %v3309
    %3921 = vmatpush.bf16.msra.mxu0 %v3303
    %3922 = vmatpush.bf16.msra.mxu0 %v3297
    %3923 = vmatpush.bf16.msra.mxu0 %v3291
    %3924 = vmatpush.bf16.msra.mxu0 %v3285
    %3925 = vmatpush.bf16.msra.mxu0 %v3279
    %3926 = vmatmul.bf16.gmra.mxu0 %v2502
    %v3927 = vpop.f32.mrf.mxu0
    %v3928 = vadd.f32 0.0, %v3927
    %v3929 = vpop.f32.mrf.mxu0
    %3930 = vdwg.mxu0
    %3931 = vmatpush.bf16.msra.mxu0 %v3369
    %3932 = vmatpush.bf16.msra.mxu0 %v3363
    %3933 = vmatpush.bf16.msra.mxu0 %v3357
    %3934 = vmatpush.bf16.msra.mxu0 %v3351
    %3935 = vmatpush.bf16.msra.mxu0 %v3345
    %3936 = vmatpush.bf16.msra.mxu0 %v3339
    %3937 = vmatpush.bf16.msra.mxu0 %v3333
    %3938 = vmatpush.bf16.msra.mxu0 %v3327
    %3939 = vmatmul.bf16.gmra.mxu0 %v2503
    %v3940 = vpop.f32.mrf.mxu0
    %v3941 = vadd.f32 %v3928, %v3940
    %v3942 = vpop.f32.mrf.mxu0
    %3943 = vdwg.mxu0
    %3944 = vmatpush.bf16.msra.mxu0 %v3417
    %3945 = vmatpush.bf16.msra.mxu0 %v3411
    %3946 = vmatpush.bf16.msra.mxu0 %v3405
    %3947 = vmatpush.bf16.msra.mxu0 %v3399
    %3948 = vmatpush.bf16.msra.mxu0 %v3393
    %3949 = vmatpush.bf16.msra.mxu0 %v3387
    %3950 = vmatpush.bf16.msra.mxu0 %v3381
    %3951 = vmatpush.bf16.msra.mxu0 %v3375
    %3952 = vmatmul.bf16.gmra.mxu0 %v2504
    %v3953 = vpop.f32.mrf.mxu0
    %v3954 = vadd.f32 %v3941, %v3953
    %v3955 = vpop.f32.mrf.mxu0
    %3956 = vdwg.mxu0
    %3957 = vmatpush.bf16.msra.mxu0 %v3465
    %3958 = vmatpush.bf16.msra.mxu0 %v3459
    %3959 = vmatpush.bf16.msra.mxu0 %v3453
    %3960 = vmatpush.bf16.msra.mxu0 %v3447
    %3961 = vmatpush.bf16.msra.mxu0 %v3441
    %3962 = vmatpush.bf16.msra.mxu0 %v3435
    %3963 = vmatpush.bf16.msra.mxu0 %v3429
    %3964 = vmatpush.bf16.msra.mxu0 %v3423
    %3965 = vmatmul.bf16.gmra.mxu0 %v2505
    %v3966 = vpop.f32.mrf.mxu0
    %v3967 = vadd.f32 %v3954, %v3966
    %v3968 = vpop.f32.mrf.mxu0
    %3969 = vdwg.mxu0
    %v3970 = vmax.f32 %v3707, 0.0
    %v3971 = vmax.f32 %v3759, 0.0
    %v3972 = vmax.f32 %v3811, 0.0
    %v3973 = vmax.f32 %v3863, 0.0
    %v3974 = vmax.f32 %v3915, 0.0
    %v3975 = vmax.f32 %v3967, 0.0
    %v3976 = vpack.c.bf16 %v3970, %v3970
    %v3977 = vpack.c.bf16 %v3971, %v3971
    %v3978 = vpack.c.bf16 %v3972, %v3972
    %v3979 = vpack.c.bf16 %v3973, %v3973
    %v3980 = vpack.c.bf16 %v3974, %v3974
    %v3981 = vpack.c.bf16 %v3975, %v3975
    %v3982 = vld [vmem:[%s6] sm:$0xf]
    %v3983 = vld [vmem:[%s6 + $0x4] sm:$0xf]
    %v3984 = vld [vmem:[%s6 + $0x8] sm:$0xf]
    %v3985 = vld [vmem:[%s6 + $0xc] sm:$0xf]
    %v3986 = vld [vmem:[%s6 + $0x10] sm:$0xf]
    %v3987 = vld [vmem:[%s6 + $0x14] sm:$0xf]
    %v3988 = vld [vmem:[%s6 + $0x18] sm:$0xf]
    %v3989 = vld [vmem:[%s6 + $0x1c] sm:$0xf]
    %v3990 = vld [vmem:[%s6 + $0x20] sm:$0xf]
    %v3991 = vld [vmem:[%s6 + $0x24] sm:$0xf]
    %v3992 = vld [vmem:[%s6 + $0x28] sm:$0xf]
    %v3993 = vld [vmem:[%s6 + $0x2c] sm:$0xf]
    %v3994 = vld [vmem:[%s6 + $0x30] sm:$0xf]
    %v3995 = vld [vmem:[%s6 + $0x34] sm:$0xf]
    %v3996 = vld [vmem:[%s6 + $0x38] sm:$0xf]
    %v3997 = vld [vmem:[%s6 + $0x3c] sm:$0xf]
    %v3998 = vld [vmem:[%s6 + $0x40] sm:$0xf]
    %v3999 = vld [vmem:[%s6 + $0x44] sm:$0xf]
    %v4000 = vld [vmem:[%s6 + $0x48] sm:$0xf]
    %v4001 = vld [vmem:[%s6 + $0x4c] sm:$0xf]
    %v4002 = vld [vmem:[%s6 + $0x50] sm:$0xf]
    %v4003 = vld [vmem:[%s6 + $0x54] sm:$0xf]
    %v4004 = vld [vmem:[%s6 + $0x58] sm:$0xf]
    %v4005 = vld [vmem:[%s6 + $0x5c] sm:$0xf]
    %v4006 = vld [vmem:[%s6 + $0x60] sm:$0xf]
    %v4007 = vld [vmem:[%s6 + $0x64] sm:$0xf]
    %v4008 = vld [vmem:[%s6 + $0x68] sm:$0xf]
    %v4009 = vld [vmem:[%s6 + $0x6c] sm:$0xf]
    %v4010 = vld [vmem:[%s6 + $0x70] sm:$0xf]
    %v4011 = vld [vmem:[%s6 + $0x74] sm:$0xf]
    %v4012 = vld [vmem:[%s6 + $0x78] sm:$0xf]
    %v4013 = vld [vmem:[%s6 + $0x7c] sm:$0xf]
    %v4014 = vld [vmem:[%s6 + $0x80] sm:$0xf]
    %v4015 = vld [vmem:[%s6 + $0x84] sm:$0xf]
    %v4016 = vld [vmem:[%s6 + $0x88] sm:$0xf]
    %v4017 = vld [vmem:[%s6 + $0x8c] sm:$0xf]
    %v4018 = vld [vmem:[%s6 + $0x90] sm:$0xf]
    %v4019 = vld [vmem:[%s6 + $0x94] sm:$0xf]
    %v4020 = vld [vmem:[%s6 + $0x98] sm:$0xf]
    %v4021 = vld [vmem:[%s6 + $0x9c] sm:$0xf]
    %v4022 = vld [vmem:[%s6 + $0xa0] sm:$0xf]
    %v4023 = vld [vmem:[%s6 + $0xa4] sm:$0xf]
    %v4024 = vld [vmem:[%s6 + $0xa8] sm:$0xf]
    %v4025 = vld [vmem:[%s6 + $0xac] sm:$0xf]
    %v4026 = vld [vmem:[%s6 + $0xb0] sm:$0xf]
    %v4027 = vld [vmem:[%s6 + $0xb4] sm:$0xf]
    %v4028 = vld [vmem:[%s6 + $0xb8] sm:$0xf]
    %v4029 = vld [vmem:[%s6 + $0xbc] sm:$0xf]
    %v4030 = vld [vmem:[%s6 + $0xc0] sm:$0xf]
    %v4031 = vld [vmem:[%s6 + $0xc4] sm:$0xf]
    %v4032 = vld [vmem:[%s6 + $0xc8] sm:$0xf]
    %v4033 = vld [vmem:[%s6 + $0xcc] sm:$0xf]
    %v4034 = vld [vmem:[%s6 + $0xd0] sm:$0xf]
    %v4035 = vld [vmem:[%s6 + $0xd4] sm:$0xf]
    %v4036 = vld [vmem:[%s6 + $0xd8] sm:$0xf]
    %v4037 = vld [vmem:[%s6 + $0xdc] sm:$0xf]
    %v4038 = vld [vmem:[%s6 + $0xe0] sm:$0xf]
    %v4039 = vld [vmem:[%s6 + $0xe4] sm:$0xf]
    %v4040 = vld [vmem:[%s6 + $0xe8] sm:$0xf]
    %v4041 = vld [vmem:[%s6 + $0xec] sm:$0xf]
    %v4042 = vld [vmem:[%s6 + $0xf0] sm:$0xf]
    %v4043 = vld [vmem:[%s6 + $0xf4] sm:$0xf]
    %v4044 = vld [vmem:[%s6 + $0xf8] sm:$0xf]
    %v4045 = vld [vmem:[%s6 + $0xfc] sm:$0xf]
    %v4046 = vld [vmem:[%s6 + $0x100] sm:$0xf]
    %v4047 = vld [vmem:[%s6 + $0x104] sm:$0xf]
    %v4048 = vld [vmem:[%s6 + $0x108] sm:$0xf]
    %v4049 = vld [vmem:[%s6 + $0x10c] sm:$0xf]
    %v4050 = vld [vmem:[%s6 + $0x110] sm:$0xf]
    %v4051 = vld [vmem:[%s6 + $0x114] sm:$0xf]
    %v4052 = vld [vmem:[%s6 + $0x118] sm:$0xf]
    %v4053 = vld [vmem:[%s6 + $0x11c] sm:$0xf]
    %v4054 = vld [vmem:[%s6 + $0x120] sm:$0xf]
    %v4055 = vld [vmem:[%s6 + $0x124] sm:$0xf]
    %v4056 = vld [vmem:[%s6 + $0x128] sm:$0xf]
    %v4057 = vld [vmem:[%s6 + $0x12c] sm:$0xf]
    %v4058 = vld [vmem:[%s6 + $0x130] sm:$0xf]
    %v4059 = vld [vmem:[%s6 + $0x134] sm:$0xf]
    %v4060 = vld [vmem:[%s6 + $0x138] sm:$0xf]
    %v4061 = vld [vmem:[%s6 + $0x13c] sm:$0xf]
    %v4062 = vld [vmem:[%s6 + $0x140] sm:$0xf]
    %v4063 = vld [vmem:[%s6 + $0x144] sm:$0xf]
    %v4064 = vld [vmem:[%s6 + $0x148] sm:$0xf]
    %v4065 = vld [vmem:[%s6 + $0x14c] sm:$0xf]
    %v4066 = vld [vmem:[%s6 + $0x150] sm:$0xf]
    %v4067 = vld [vmem:[%s6 + $0x154] sm:$0xf]
    %v4068 = vld [vmem:[%s6 + $0x158] sm:$0xf]
    %v4069 = vld [vmem:[%s6 + $0x15c] sm:$0xf]
    %v4070 = vld [vmem:[%s6 + $0x160] sm:$0xf]
    %v4071 = vld [vmem:[%s6 + $0x164] sm:$0xf]
    %v4072 = vld [vmem:[%s6 + $0x168] sm:$0xf]
    %v4073 = vld [vmem:[%s6 + $0x16c] sm:$0xf]
    %v4074 = vld [vmem:[%s6 + $0x170] sm:$0xf]
    %v4075 = vld [vmem:[%s6 + $0x174] sm:$0xf]
    %v4076 = vld [vmem:[%s6 + $0x178] sm:$0xf]
    %v4077 = vld [vmem:[%s6 + $0x17c] sm:$0xf]
    %v4078 = vld [vmem:[%s7] sm:$0x1]
    %v4080 = vperm.slane %v4078, 0
    %v4178 = vunpack.c.l.b16 %v3982
    %v4179 = vunpack.c.l.b16 %v3983
    %v4180 = vunpack.c.l.b16 %v3984
    %v4181 = vunpack.c.l.b16 %v3985
    %v4182 = vunpack.c.l.b16 %v3986
    %v4183 = vunpack.c.l.b16 %v3987
    %v4184 = vunpack.c.l.b16 %v3988
    %v4185 = vunpack.c.l.b16 %v3989
    %v4186 = vunpack.c.l.b16 %v3990
    %v4187 = vunpack.c.l.b16 %v3991
    %v4188 = vunpack.c.l.b16 %v3992
    %v4189 = vunpack.c.l.b16 %v3993
    %v4190 = vunpack.c.l.b16 %v3994
    %v4191 = vunpack.c.l.b16 %v3995
    %v4192 = vunpack.c.l.b16 %v3996
    %v4193 = vunpack.c.l.b16 %v3997
    %v4194 = vunpack.c.l.b16 %v3998
    %v4195 = vunpack.c.l.b16 %v3999
    %v4196 = vunpack.c.l.b16 %v4000
    %v4197 = vunpack.c.l.b16 %v4001
    %v4198 = vunpack.c.l.b16 %v4002
    %v4199 = vunpack.c.l.b16 %v4003
    %v4200 = vunpack.c.l.b16 %v4004
    %v4201 = vunpack.c.l.b16 %v4005
    %v4202 = vunpack.c.l.b16 %v4006
    %v4203 = vunpack.c.l.b16 %v4007
    %v4204 = vunpack.c.l.b16 %v4008
    %v4205 = vunpack.c.l.b16 %v4009
    %v4206 = vunpack.c.l.b16 %v4010
    %v4207 = vunpack.c.l.b16 %v4011
    %v4208 = vunpack.c.l.b16 %v4012
    %v4209 = vunpack.c.l.b16 %v4013
    %v4210 = vunpack.c.l.b16 %v4014
    %v4211 = vunpack.c.l.b16 %v4015
    %v4212 = vunpack.c.l.b16 %v4016
    %v4213 = vunpack.c.l.b16 %v4017
    %v4214 = vunpack.c.l.b16 %v4018
    %v4215 = vunpack.c.l.b16 %v4019
    %v4216 = vunpack.c.l.b16 %v4020
    %v4217 = vunpack.c.l.b16 %v4021
    %v4218 = vunpack.c.l.b16 %v4022
    %v4219 = vunpack.c.l.b16 %v4023
    %v4220 = vunpack.c.l.b16 %v4024
    %v4221 = vunpack.c.l.b16 %v4025
    %v4222 = vunpack.c.l.b16 %v4026
    %v4223 = vunpack.c.l.b16 %v4027
    %v4224 = vunpack.c.l.b16 %v4028
    %v4225 = vunpack.c.l.b16 %v4029
    %v4226 = vunpack.c.l.b16 %v4030
    %v4227 = vunpack.c.l.b16 %v4031
    %v4228 = vunpack.c.l.b16 %v4032
    %v4229 = vunpack.c.l.b16 %v4033
    %v4230 = vunpack.c.l.b16 %v4034
    %v4231 = vunpack.c.l.b16 %v4035
    %v4232 = vunpack.c.l.b16 %v4036
    %v4233 = vunpack.c.l.b16 %v4037
    %v4234 = vunpack.c.l.b16 %v4038
    %v4235 = vunpack.c.l.b16 %v4039
    %v4236 = vunpack.c.l.b16 %v4040
    %v4237 = vunpack.c.l.b16 %v4041
    %v4238 = vunpack.c.l.b16 %v4042
    %v4239 = vunpack.c.l.b16 %v4043
    %v4240 = vunpack.c.l.b16 %v4044
    %v4241 = vunpack.c.l.b16 %v4045
    %v4242 = vunpack.c.l.b16 %v4046
    %v4243 = vunpack.c.l.b16 %v4047
    %v4244 = vunpack.c.l.b16 %v4048
    %v4245 = vunpack.c.l.b16 %v4049
    %v4246 = vunpack.c.l.b16 %v4050
    %v4247 = vunpack.c.l.b16 %v4051
    %v4248 = vunpack.c.l.b16 %v4052
    %v4249 = vunpack.c.l.b16 %v4053
    %v4250 = vunpack.c.l.b16 %v4054
    %v4251 = vunpack.c.l.b16 %v4055
    %v4252 = vunpack.c.l.b16 %v4056
    %v4253 = vunpack.c.l.b16 %v4057
    %v4254 = vunpack.c.l.b16 %v4058
    %v4255 = vunpack.c.l.b16 %v4059
    %v4256 = vunpack.c.l.b16 %v4060
    %v4257 = vunpack.c.l.b16 %v4061
    %v4258 = vunpack.c.l.b16 %v4062
    %v4259 = vunpack.c.l.b16 %v4063
    %v4260 = vunpack.c.l.b16 %v4064
    %v4261 = vunpack.c.l.b16 %v4065
    %v4262 = vunpack.c.l.b16 %v4066
    %v4263 = vunpack.c.l.b16 %v4067
    %v4264 = vunpack.c.l.b16 %v4068
    %v4265 = vunpack.c.l.b16 %v4069
    %v4266 = vunpack.c.l.b16 %v4070
    %v4267 = vunpack.c.l.b16 %v4071
    %v4268 = vunpack.c.l.b16 %v4072
    %v4269 = vunpack.c.l.b16 %v4073
    %v4270 = vunpack.c.l.b16 %v4074
    %v4271 = vunpack.c.l.b16 %v4075
    %v4272 = vunpack.c.l.b16 %v4076
    %v4273 = vunpack.c.l.b16 %v4077
    %v4274 = vpack.c.b16 %v4179, %v4178
    %v4275 = vpack.c.b16 %v4181, %v4180
    %v4276 = vpack.c.b16 %v4183, %v4182
    %v4277 = vpack.c.b16 %v4185, %v4184
    %v4278 = vpack.c.b16 %v4187, %v4186
    %v4279 = vpack.c.b16 %v4189, %v4188
    %v4280 = vpack.c.b16 %v4191, %v4190
    %v4281 = vpack.c.b16 %v4193, %v4192
    %v4282 = vpack.c.b16 %v4195, %v4194
    %v4283 = vpack.c.b16 %v4197, %v4196
    %v4284 = vpack.c.b16 %v4199, %v4198
    %v4285 = vpack.c.b16 %v4201, %v4200
    %v4286 = vpack.c.b16 %v4203, %v4202
    %v4287 = vpack.c.b16 %v4205, %v4204
    %v4288 = vpack.c.b16 %v4207, %v4206
    %v4289 = vpack.c.b16 %v4209, %v4208
    %v4290 = vpack.c.b16 %v4211, %v4210
    %v4291 = vpack.c.b16 %v4213, %v4212
    %v4292 = vpack.c.b16 %v4215, %v4214
    %v4293 = vpack.c.b16 %v4217, %v4216
    %v4294 = vpack.c.b16 %v4219, %v4218
    %v4295 = vpack.c.b16 %v4221, %v4220
    %v4296 = vpack.c.b16 %v4223, %v4222
    %v4297 = vpack.c.b16 %v4225, %v4224
    %v4298 = vpack.c.b16 %v4227, %v4226
    %v4299 = vpack.c.b16 %v4229, %v4228
    %v4300 = vpack.c.b16 %v4231, %v4230
    %v4301 = vpack.c.b16 %v4233, %v4232
    %v4302 = vpack.c.b16 %v4235, %v4234
    %v4303 = vpack.c.b16 %v4237, %v4236
    %v4304 = vpack.c.b16 %v4239, %v4238
    %v4305 = vpack.c.b16 %v4241, %v4240
    %v4306 = vpack.c.b16 %v4243, %v4242
    %v4307 = vpack.c.b16 %v4245, %v4244
    %v4308 = vpack.c.b16 %v4247, %v4246
    %v4309 = vpack.c.b16 %v4249, %v4248
    %v4310 = vpack.c.b16 %v4251, %v4250
    %v4311 = vpack.c.b16 %v4253, %v4252
    %v4312 = vpack.c.b16 %v4255, %v4254
    %v4313 = vpack.c.b16 %v4257, %v4256
    %v4314 = vpack.c.b16 %v4259, %v4258
    %v4315 = vpack.c.b16 %v4261, %v4260
    %v4316 = vpack.c.b16 %v4263, %v4262
    %v4317 = vpack.c.b16 %v4265, %v4264
    %v4318 = vpack.c.b16 %v4267, %v4266
    %v4319 = vpack.c.b16 %v4269, %v4268
    %v4320 = vpack.c.b16 %v4271, %v4270
    %v4321 = vpack.c.b16 %v4273, %v4272
    %4370 = vmatpush.bf16.msra.mxu0 %v4281
    %4371 = vmatpush.bf16.msra.mxu0 %v4280
    %4372 = vmatpush.bf16.msra.mxu0 %v4279
    %4373 = vmatpush.bf16.msra.mxu0 %v4278
    %4374 = vmatpush.bf16.msra.mxu0 %v4277
    %4375 = vmatpush.bf16.msra.mxu0 %v4276
    %4376 = vmatpush.bf16.msra.mxu0 %v4275
    %4377 = vmatpush.bf16.msra.mxu0 %v4274
    %4378 = vmatmul.bf16.gmra.mxu0 %v3976
    %v4379 = vpop.f32.mrf.mxu0
    %v4380 = vadd.f32 %v4080, %v4379
    %v4381 = vpop.f32.mrf.mxu0
    %4382 = vdwg.mxu0
    %4383 = vmatpush.bf16.msra.mxu0 %v4289
    %4384 = vmatpush.bf16.msra.mxu0 %v4288
    %4385 = vmatpush.bf16.msra.mxu0 %v4287
    %4386 = vmatpush.bf16.msra.mxu0 %v4286
    %4387 = vmatpush.bf16.msra.mxu0 %v4285
    %4388 = vmatpush.bf16.msra.mxu0 %v4284
    %4389 = vmatpush.bf16.msra.mxu0 %v4283
    %4390 = vmatpush.bf16.msra.mxu0 %v4282
    %4391 = vmatmul.bf16.gmra.mxu0 %v3977
    %v4392 = vpop.f32.mrf.mxu0
    %v4393 = vadd.f32 %v4380, %v4392
    %v4394 = vpop.f32.mrf.mxu0
    %4395 = vdwg.mxu0
    %4396 = vmatpush.bf16.msra.mxu0 %v4297
    %4397 = vmatpush.bf16.msra.mxu0 %v4296
    %4398 = vmatpush.bf16.msra.mxu0 %v4295
    %4399 = vmatpush.bf16.msra.mxu0 %v4294
    %4400 = vmatpush.bf16.msra.mxu0 %v4293
    %4401 = vmatpush.bf16.msra.mxu0 %v4292
    %4402 = vmatpush.bf16.msra.mxu0 %v4291
    %4403 = vmatpush.bf16.msra.mxu0 %v4290
    %4404 = vmatmul.bf16.gmra.mxu0 %v3978
    %v4405 = vpop.f32.mrf.mxu0
    %v4406 = vadd.f32 %v4393, %v4405
    %v4407 = vpop.f32.mrf.mxu0
    %4408 = vdwg.mxu0
    %4409 = vmatpush.bf16.msra.mxu0 %v4305
    %4410 = vmatpush.bf16.msra.mxu0 %v4304
    %4411 = vmatpush.bf16.msra.mxu0 %v4303
    %4412 = vmatpush.bf16.msra.mxu0 %v4302
    %4413 = vmatpush.bf16.msra.mxu0 %v4301
    %4414 = vmatpush.bf16.msra.mxu0 %v4300
    %4415 = vmatpush.bf16.msra.mxu0 %v4299
    %4416 = vmatpush.bf16.msra.mxu0 %v4298
    %4417 = vmatmul.bf16.gmra.mxu0 %v3979
    %v4418 = vpop.f32.mrf.mxu0
    %v4419 = vadd.f32 %v4406, %v4418
    %v4420 = vpop.f32.mrf.mxu0
    %4421 = vdwg.mxu0
    %4422 = vmatpush.bf16.msra.mxu0 %v4313
    %4423 = vmatpush.bf16.msra.mxu0 %v4312
    %4424 = vmatpush.bf16.msra.mxu0 %v4311
    %4425 = vmatpush.bf16.msra.mxu0 %v4310
    %4426 = vmatpush.bf16.msra.mxu0 %v4309
    %4427 = vmatpush.bf16.msra.mxu0 %v4308
    %4428 = vmatpush.bf16.msra.mxu0 %v4307
    %4429 = vmatpush.bf16.msra.mxu0 %v4306
    %4430 = vmatmul.bf16.gmra.mxu0 %v3980
    %v4431 = vpop.f32.mrf.mxu0
    %v4432 = vadd.f32 %v4419, %v4431
    %v4433 = vpop.f32.mrf.mxu0
    %4434 = vdwg.mxu0
    %4435 = vmatpush.bf16.msra.mxu0 %v4321
    %4436 = vmatpush.bf16.msra.mxu0 %v4320
    %4437 = vmatpush.bf16.msra.mxu0 %v4319
    %4438 = vmatpush.bf16.msra.mxu0 %v4318
    %4439 = vmatpush.bf16.msra.mxu0 %v4317
    %4440 = vmatpush.bf16.msra.mxu0 %v4316
    %4441 = vmatpush.bf16.msra.mxu0 %v4315
    %4442 = vmatpush.bf16.msra.mxu0 %v4314
    %4443 = vmatmul.bf16.gmra.mxu0 %v3981
    %v4444 = vpop.f32.mrf.mxu0
    %v4445 = vadd.f32 %v4432, %v4444
    %v4446 = vpop.f32.mrf.mxu0
    %4447 = vdwg.mxu0
    %4448 = vst [vmem:[#allocation5] sm:$0xff] %v4445
    // Predicated region
    $region38: #{tpu_custom_call.1} parent=1 // pred_check
      _
    $region39: #{tpu_custom_call.1} parent=1 // pred_check_branch
      %4450 = sbr.rel (0) target = $region41
    $region40: #{tpu_custom_call.1} parent=1 // pred_region
      %4452 = vsyncadd [#allocation4], 0
      %s4454 = sshll.u32 [#allocation5], 4
      %s4455 = int_to_ptr.vmem [resolvable:$true] %s4454
      %s4456 = sshll.u32 %s8, 4
      %s4457 = int_to_ptr.hbm [resolvable:$true] %s4456
      %4459 = dma.vmem_to_hbm [thread:$0]  %s4455, 128, %s4457, [#allocation4]
    $region41: #{tpu_custom_call.1} parent=1 // pred_fallthru
      _
    // Predicated region
    $region42: #{tpu_custom_call.1} parent=1 // pred_check
      _
    $region43: #{tpu_custom_call.1} parent=1 // pred_check_branch
      %4461 = sbr.rel (0) target = $region45
    $region44: #{tpu_custom_call.1} parent=1 // pred_region
      %4463 = dma.done [#allocation4], 128
    $region45: #{tpu_custom_call.1} parent=1 // pred_fallthru
      _
    %4464 = vsyncpa [#allocation3], 1
    %4465 = vsyncpa [#allocation4], 1

</llo_original>
